<compile_context>
chip_gen: v7x
topology: tpu7x:2x2x1
jax: 0.10.0
libtpu: 0.0.40
codegen_flags: <defaults>
</compile_context>

<pallas_src>
import functools

import jax
import jax.numpy as jnp
from jax.experimental import pallas as pl
from jax.experimental.pallas import tpu as pltpu

_MM_TM = 256                      # M tile (multiple of 256 for the v7x MXU)
_VMEM_LIMIT = 32 * 1024 * 1024    # well under every chip's physical VMEM


def _mm_compiler_params():
    return pltpu.CompilerParams(
        dimension_semantics=("parallel",),
        vmem_limit_bytes=_VMEM_LIMIT,
    )


# ---------------------------------------------------------------------------
# Kernels
# ---------------------------------------------------------------------------
def _conv_mm_kernel(x_ref, w_ref, b_ref, o_ref):
    """o = relu(x @ w + b); bf16 MXU inputs, f32 accumulate + epilogue."""
    acc = jnp.dot(x_ref[...], w_ref[...], preferred_element_type=jnp.float32)
    o_ref[...] = jnp.maximum(acc + b_ref[...], 0.0).astype(o_ref.dtype)


def _fc_fused_kernel(x_ref, w1_ref, b1_ref, w2_ref, b2_ref, feat_ref, logit_ref):
    """feature = relu(x@w1+b1); logits_padded = feature@w2_pad + b2_pad."""
    h = jnp.dot(x_ref[...], w1_ref[...], preferred_element_type=jnp.float32)
    h = jnp.maximum(h + b1_ref[...], 0.0)
    feat_ref[...] = h.astype(feat_ref.dtype)
    l = jnp.dot(h.astype(w2_ref.dtype), w2_ref[...],
                preferred_element_type=jnp.float32)
    logit_ref[...] = (l + b2_ref[...]).astype(logit_ref.dtype)


def _maxpool_kernel(x_ref, o_ref, *, channels):
    """2x2 max pool: input block (TB, 2, Wo, 2C) -> output block (TB, Wo, C)."""
    x = x_ref[...]
    a = jnp.maximum(x[:, 0], x[:, 1])                       # pool over the H pair
    o_ref[...] = jnp.maximum(a[..., :channels], a[..., channels:])  # W pair


# ---------------------------------------------------------------------------
# Pallas wrappers
# ---------------------------------------------------------------------------
def conv_matmul(x, w, b):
    """relu(x @ w + b), M-tiled over the im2col rows. x:(M,K), w:(K,N), b:(N,)."""
    M, K = x.shape
    _, N = w.shape
    tm = min(_MM_TM, M)
    return pl.pallas_call(
        _conv_mm_kernel,
        out_shape=jax.ShapeDtypeStruct((M, N), jnp.float32),
        grid=(pl.cdiv(M, tm),),
        in_specs=[
            pl.BlockSpec((tm, K), lambda i: (i, 0)),
            pl.BlockSpec((K, N), lambda i: (0, 0)),   # weight resident across grid
            pl.BlockSpec((1, N), lambda i: (0, 0)),
        ],
        out_specs=pl.BlockSpec((tm, N), lambda i: (i, 0)),
        compiler_params=_mm_compiler_params(),
    )(x.astype(jnp.bfloat16), w.astype(jnp.bfloat16),
      b.reshape(1, N).astype(jnp.float32))


def fc_fused(x, w1, b1, w2_pad, b2_pad):
    """Fused fc1(+ReLU) and fc2 (padded to N=128). Returns (feature, logits_pad)."""
    M, K = x.shape
    N1 = w1.shape[1]
    N2 = w2_pad.shape[1]
    tm = min(_MM_TM, M)
    return pl.pallas_call(
        _fc_fused_kernel,
        out_shape=(jax.ShapeDtypeStruct((M, N1), jnp.float32),
                   jax.ShapeDtypeStruct((M, N2), jnp.float32)),
        grid=(pl.cdiv(M, tm),),
        in_specs=[
            pl.BlockSpec((tm, K), lambda i: (i, 0)),
            pl.BlockSpec((K, N1), lambda i: (0, 0)),
            pl.BlockSpec((1, N1), lambda i: (0, 0)),
            pl.BlockSpec((N1, N2), lambda i: (0, 0)),
            pl.BlockSpec((1, N2), lambda i: (0, 0)),
        ],
        out_specs=(pl.BlockSpec((tm, N1), lambda i: (i, 0)),
                   pl.BlockSpec((tm, N2), lambda i: (i, 0))),
        compiler_params=_mm_compiler_params(),
    )(x.astype(jnp.bfloat16), w1.astype(jnp.bfloat16),
      b1.reshape(1, N1).astype(jnp.float32),
      w2_pad.astype(jnp.bfloat16), b2_pad.reshape(1, N2).astype(jnp.float32))


def maxpool2x2(x):
    """x: (B, H, W, C) f32 NHWC -> (B, H//2, W//2, C), 2x2 max pool stride 2."""
    B, H, W, C = x.shape
    Ho, Wo = H // 2, W // 2
    # Free (contiguous) reshape: (B,H,W,C) -> (B*Ho, 2, Wo, 2C).  No strided
    # HBM slice copies; the pooling pairs are resolved inside the kernel.
    xr = x.reshape(B * Ho, 2, Wo, 2 * C)
    imgs_per_block = max(1, min(B, 8))
    tb = imgs_per_block * Ho
    out = pl.pallas_call(
        functools.partial(_maxpool_kernel, channels=C),
        out_shape=jax.ShapeDtypeStruct((B * Ho, Wo, C), x.dtype),
        grid=(pl.cdiv(B * Ho, tb),),
        in_specs=[pl.BlockSpec((tb, 2, Wo, 2 * C), lambda i: (i, 0, 0, 0))],
        out_specs=pl.BlockSpec((tb, Wo, C), lambda i: (i, 0, 0)),
        compiler_params=pltpu.CompilerParams(dimension_semantics=("parallel",)),
    )(xr)
    return out.reshape(B, Ho, Wo, C)


# ---------------------------------------------------------------------------
# Glue: im2col for 3x3 conv, padding=1, stride 1 (cheap, done in bf16)
# TODO(synk): im2col is still materialized in HBM via JAX glue; fully fusing
# the 9 shifted taps inside the conv kernel would cut that traffic further.
# ---------------------------------------------------------------------------
def im2col3x3(x):
    """x: (B, H, W, C) -> (B*H*W, 9*C) patches, ordered (kh, kw, C)."""
    B, H, W, C = x.shape
    xp = jnp.pad(x, ((0, 0), (1, 1), (1, 1), (0, 0)))
    patches = [xp[:, i:i + H, j:j + W, :] for i in range(3) for j in range(3)]
    return jnp.stack(patches, axis=3).reshape(B * H * W, 9 * C)


# ---------------------------------------------------------------------------
# Parameters (deterministic synthetic init; shapes match the PyTorch module)
# ---------------------------------------------------------------------------
def init_params(key):
    ks = jax.random.split(key, 8)

    def conv_w(k, kh, kw, cin, cout):
        fan_in = kh * kw * cin
        # (kh*kw*cin, cout) in (kh, kw, cin) order to match im2col.
        # NOTE: trained PyTorch Conv2d weights (cout,cin,kh,kw) need
        #       w.transpose(2, 3, 1, 0).reshape(kh*kw*cin, cout).
        return (jax.random.normal(k, (kh * kw * cin, cout), jnp.float32)
                * (1.0 / jnp.sqrt(fan_in)))

    def lin_w(k, cin, cout):
        return (jax.random.normal(k, (cin, cout), jnp.float32)
                * (1.0 / jnp.sqrt(cin)))

    # fc1 weight generated in PyTorch flatten order (C,H,W) rows, then
    # permuted ONCE to NHWC row order so the activation needs no runtime
    # transpose (exact PyTorch flatten semantics preserved).
    wf1_chw = lin_w(ks[4], 64 * 7 * 7, 128)
    wf1_nhwc = (wf1_chw.reshape(64, 7, 7, 128)
                .transpose(1, 2, 0, 3)
                .reshape(64 * 7 * 7, 128))

    # fc2 zero-padded from N=10 to N=128 (lane-dense output, fused into fc1).
    wf2 = lin_w(ks[6], 128, 10)
    bf2 = jax.random.normal(ks[7], (10,), jnp.float32) * 0.01
    wf2_p = jnp.zeros((128, 128), jnp.float32).at[:, :10].set(wf2)
    bf2_p = jnp.zeros((128,), jnp.float32).at[:10].set(bf2)

    return {
        "w1": conv_w(ks[0], 3, 3, 1, 32),
        "b1": jax.random.normal(ks[1], (32,), jnp.float32) * 0.01,
        "w2": conv_w(ks[2], 3, 3, 32, 64),
        "b2": jax.random.normal(ks[3], (64,), jnp.float32) * 0.01,
        "wf1": wf1_nhwc,
        "bf1": jax.random.normal(ks[5], (128,), jnp.float32) * 0.01,
        "wf2p": wf2_p,
        "bf2p": bf2_p,
    }


# ---------------------------------------------------------------------------
# Forward pass (returns (feature, logits) like the PyTorch module)
# ---------------------------------------------------------------------------
@jax.jit
def net_forward(params, x_nchw):
    B = x_nchw.shape[0]
    num_classes = 10
    x = jnp.transpose(x_nchw, (0, 2, 3, 1)).astype(jnp.bfloat16)  # NHWC (B,28,28,1)

    # conv1: 3x3 conv (pad=1) + bias + ReLU (fused MXU kernel) -> maxpool 2x2
    p1 = im2col3x3(x)                                   # (B*784, 9) bf16
    h1 = conv_matmul(p1, params["w1"], params["b1"])    # (B*784, 32) f32
    h1 = maxpool2x2(h1.reshape(B, 28, 28, 32))          # (B,14,14,32)

    # conv2: 3x3 conv (pad=1) + bias + ReLU -> maxpool 2x2
    p2 = im2col3x3(h1.astype(jnp.bfloat16))             # (B*196, 288) bf16
    h2 = conv_matmul(p2, params["w2"], params["b2"])    # (B*196, 64) f32
    h2 = maxpool2x2(h2.reshape(B, 14, 14, 64))          # (B,7,7,64)

    # NHWC flatten (wf1 rows pre-permuted -> no activation transpose needed)
    flat = h2.reshape(B, 7 * 7 * 64)

    # fc1 (+ReLU) and fc2 fused in one kernel; logits padded to 128 lanes.
    feature, logits_p = fc_fused(flat, params["wf1"], params["bf1"],
                                 params["wf2p"], params["bf2p"])
    return feature, logits_p[:, :num_classes]


# ---------------------------------------------------------------------------
if __name__ == "__main__":
    key = jax.random.PRNGKey(0)
    k_params, k_x = jax.random.split(key)

    params = init_params(k_params)
    # Input matching the PyTorch module: NCHW, channel=1, 28x28 (fc1 = 64*7*7)
    x = jax.random.normal(k_x, (2, 1, 28, 28), jnp.float32)

    feature, logits = net_forward(params, x)
    jax.block_until_ready((feature, logits))

    assert feature.shape == (2, 128)
    assert logits.shape == (2, 10)
    print("KERNEL_OK")
</pallas_src>

<mosaic_0001>
module attributes {stable_mosaic.version = 11 : i64} {
  func.func @_conv_mm_kernel(%arg0: i32, %arg1: memref<256x9xbf16, #tpu.memory_space<vmem>>, %arg2: memref<9x32xbf16, #tpu.memory_space<vmem>>, %arg3: memref<1x32xf32, #tpu.memory_space<vmem>>, %arg4: memref<256x32xf32, #tpu.memory_space<vmem>>) attributes {dimension_semantics = [#tpu.dimension_semantics<parallel>], iteration_bounds = array<i64: 7>, scalar_prefetch = 0 : i64, scratch_operands = 0 : i64, tpu.core_type = #tpu.core_type<tc>, window_params = [{transform_indices = @transform_0, window_bounds = array<i64: 256, 9>}, {pipeline_mode = #tpu.pipeline_mode<synchronous>, transform_indices = @transform_1, window_bounds = array<i64: 9, 32>}, {pipeline_mode = #tpu.pipeline_mode<synchronous>, transform_indices = @transform_2, window_bounds = array<i64: 1, 32>}, {transform_indices = @transform_3, window_bounds = array<i64: 256, 32>}]} {
    %c0 = arith.constant 0 : index
    %c0_0 = arith.constant 0 : index
    %0 = vector.load %arg1[%c0, %c0_0] : memref<256x9xbf16, #tpu.memory_space<vmem>>, vector<256x9xbf16>
    %c0_1 = arith.constant 0 : index
    %c0_2 = arith.constant 0 : index
    %1 = vector.load %arg2[%c0_1, %c0_2] : memref<9x32xbf16, #tpu.memory_space<vmem>>, vector<9x32xbf16>
    %cst = arith.constant dense<0.000000e+00> : vector<256x32xf32>
    %2 = tpu.matmul %0, %1, %cst {dimension_numbers = #tpu.dot_dimension_numbers<[1], [0], [0], [1], [0, 0, 1, 1], [], []>} : vector<256x9xbf16>, vector<9x32xbf16>, vector<256x32xf32> -> vector<256x32xf32>
    %c0_3 = arith.constant 0 : index
    %c0_4 = arith.constant 0 : index
    %3 = vector.load %arg3[%c0_3, %c0_4] : memref<1x32xf32, #tpu.memory_space<vmem>>, vector<1x32xf32>
    %4 = vector.broadcast %3 : vector<1x32xf32> to vector<256x32xf32>
    %5 = arith.addf %2, %4 : vector<256x32xf32>
    %cst_5 = arith.constant 0.000000e+00 : f32
    %6 = vector.broadcast %cst_5 : f32 to vector<256x32xf32>
    %7 = arith.maximumf %5, %6 : vector<256x32xf32>
    %c0_6 = arith.constant 0 : index
    %c0_7 = arith.constant 0 : index
    %8 = vector.load %arg4[%c0_6, %c0_7] : memref<256x32xf32, #tpu.memory_space<vmem>>, vector<256x32xf32>
    tpu.vector_store %arg4[%c0_6, %c0_7], %7 {strides = array<i32>} : memref<256x32xf32, #tpu.memory_space<vmem>>, vector<256x32xf32>,
    return
  }
  func.func @transform_0(%arg0: i32) -> (i32, i32) {
    %c0_i32 = arith.constant 0 : i32
    %c0_i32_0 = arith.constant 0 : i32
    return %arg0, %c0_i32 : i32, i32
  }
  func.func @transform_1(%arg0: i32) -> (i32, i32) {
    %c0_i32 = arith.constant 0 : i32
    %c0_i32_0 = arith.constant 0 : i32
    %c0_i32_1 = arith.constant 0 : i32
    return %c0_i32, %c0_i32_0 : i32, i32
  }
  func.func @transform_2(%arg0: i32) -> (i32, i32) {
    %c0_i32 = arith.constant 0 : i32
    %c0_i32_0 = arith.constant 0 : i32
    %c0_i32_1 = arith.constant 0 : i32
    return %c0_i32, %c0_i32_0 : i32, i32
  }
  func.func @transform_3(%arg0: i32) -> (i32, i32) {
    %c0_i32 = arith.constant 0 : i32
    %c0_i32_0 = arith.constant 0 : i32
    return %arg0, %c0_i32 : i32, i32
  }
}

module attributes {stable_mosaic.version = 11 : i64} {
  func.func @_maxpool_kernel(%arg0: i32, %arg1: memref<28x2x14x64xf32, #tpu.memory_space<vmem>>, %arg2: memref<28x14x32xf32, #tpu.memory_space<vmem>>) attributes {dimension_semantics = [#tpu.dimension_semantics<parallel>], iteration_bounds = array<i64: 1>, scalar_prefetch = 0 : i64, scratch_operands = 0 : i64, tpu.core_type = #tpu.core_type<tc>, window_params = [{transform_indices = @transform_0, window_bounds = array<i64: 28, 2, 14, 64>}, {transform_indices = @transform_1, window_bounds = array<i64: 28, 14, 32>}]} {
    %c0 = arith.constant 0 : index
    %c0_0 = arith.constant 0 : index
    %c0_1 = arith.constant 0 : index
    %c0_2 = arith.constant 0 : index
    %0 = vector.load %arg1[%c0, %c0_0, %c0_1, %c0_2] : memref<28x2x14x64xf32, #tpu.memory_space<vmem>>, vector<28x2x14x64xf32>
    %1 = vector.extract_strided_slice %0 {offsets = [0, 0, 0, 0], sizes = [28, 1, 14, 64], strides = [1, 1, 1, 1]} : vector<28x2x14x64xf32> to vector<28x1x14x64xf32>
    %2 = vector.shape_cast %1 : vector<28x1x14x64xf32> to vector<28x14x64xf32>
    %3 = vector.extract_strided_slice %0 {offsets = [0, 1, 0, 0], sizes = [28, 1, 14, 64], strides = [1, 1, 1, 1]} : vector<28x2x14x64xf32> to vector<28x1x14x64xf32>
    %4 = vector.shape_cast %3 : vector<28x1x14x64xf32> to vector<28x14x64xf32>
    %5 = arith.maximumf %2, %4 : vector<28x14x64xf32>
    %6 = vector.extract_strided_slice %5 {offsets = [0, 0, 0], sizes = [28, 14, 32], strides = [1, 1, 1]} : vector<28x14x64xf32> to vector<28x14x32xf32>
    %7 = vector.extract_strided_slice %5 {offsets = [0, 0, 32], sizes = [28, 14, 32], strides = [1, 1, 1]} : vector<28x14x64xf32> to vector<28x14x32xf32>
    %8 = arith.maximumf %6, %7 : vector<28x14x32xf32>
    %c0_3 = arith.constant 0 : index
    %c0_4 = arith.constant 0 : index
    %c0_5 = arith.constant 0 : index
    %9 = vector.load %arg2[%c0_3, %c0_4, %c0_5] : memref<28x14x32xf32, #tpu.memory_space<vmem>>, vector<28x14x32xf32>
    tpu.vector_store %arg2[%c0_3, %c0_4, %c0_5], %8 {strides = array<i32>} : memref<28x14x32xf32, #tpu.memory_space<vmem>>, vector<28x14x32xf32>,
    return
  }
  func.func @transform_0(%arg0: i32) -> (i32, i32, i32, i32) {
    %c0_i32 = arith.constant 0 : i32
    %c0_i32_0 = arith.constant 0 : i32
    %c0_i32_1 = arith.constant 0 : i32
    %c0_i32_2 = arith.constant 0 : i32
    return %arg0, %c0_i32, %c0_i32_0, %c0_i32_1 : i32, i32, i32, i32
  }
  func.func @transform_1(%arg0: i32) -> (i32, i32, i32) {
    %c0_i32 = arith.constant 0 : i32
    %c0_i32_0 = arith.constant 0 : i32
    %c0_i32_1 = arith.constant 0 : i32
    return %arg0, %c0_i32, %c0_i32_0 : i32, i32, i32
  }
}

module attributes {stable_mosaic.version = 11 : i64} {
  func.func @_conv_mm_kernel(%arg0: i32, %arg1: memref<256x288xbf16, #tpu.memory_space<vmem>>, %arg2: memref<288x64xbf16, #tpu.memory_space<vmem>>, %arg3: memref<1x64xf32, #tpu.memory_space<vmem>>, %arg4: memref<256x64xf32, #tpu.memory_space<vmem>>) attributes {dimension_semantics = [#tpu.dimension_semantics<parallel>], iteration_bounds = array<i64: 2>, scalar_prefetch = 0 : i64, scratch_operands = 0 : i64, tpu.core_type = #tpu.core_type<tc>, window_params = [{transform_indices = @transform_0, window_bounds = array<i64: 256, 288>}, {pipeline_mode = #tpu.pipeline_mode<synchronous>, transform_indices = @transform_1, window_bounds = array<i64: 288, 64>}, {pipeline_mode = #tpu.pipeline_mode<synchronous>, transform_indices = @transform_2, window_bounds = array<i64: 1, 64>}, {transform_indices = @transform_3, window_bounds = array<i64: 256, 64>}]} {
    %c0 = arith.constant 0 : index
    %c0_0 = arith.constant 0 : index
    %0 = vector.load %arg1[%c0, %c0_0] : memref<256x288xbf16, #tpu.memory_space<vmem>>, vector<256x288xbf16>
    %c0_1 = arith.constant 0 : index
    %c0_2 = arith.constant 0 : index
    %1 = vector.load %arg2[%c0_1, %c0_2] : memref<288x64xbf16, #tpu.memory_space<vmem>>, vector<288x64xbf16>
    %cst = arith.constant dense<0.000000e+00> : vector<256x64xf32>
    %2 = tpu.matmul %0, %1, %cst {dimension_numbers = #tpu.dot_dimension_numbers<[1], [0], [0], [1], [0, 0, 1, 1], [], []>} : vector<256x288xbf16>, vector<288x64xbf16>, vector<256x64xf32> -> vector<256x64xf32>
    %c0_3 = arith.constant 0 : index
    %c0_4 = arith.constant 0 : index
    %3 = vector.load %arg3[%c0_3, %c0_4] : memref<1x64xf32, #tpu.memory_space<vmem>>, vector<1x64xf32>
    %4 = vector.broadcast %3 : vector<1x64xf32> to vector<256x64xf32>
    %5 = arith.addf %2, %4 : vector<256x64xf32>
    %cst_5 = arith.constant 0.000000e+00 : f32
    %6 = vector.broadcast %cst_5 : f32 to vector<256x64xf32>
    %7 = arith.maximumf %5, %6 : vector<256x64xf32>
    %c0_6 = arith.constant 0 : index
    %c0_7 = arith.constant 0 : index
    %8 = vector.load %arg4[%c0_6, %c0_7] : memref<256x64xf32, #tpu.memory_space<vmem>>, vector<256x64xf32>
    tpu.vector_store %arg4[%c0_6, %c0_7], %7 {strides = array<i32>} : memref<256x64xf32, #tpu.memory_space<vmem>>, vector<256x64xf32>,
    return
  }
  func.func @transform_0(%arg0: i32) -> (i32, i32) {
    %c0_i32 = arith.constant 0 : i32
    %c0_i32_0 = arith.constant 0 : i32
    return %arg0, %c0_i32 : i32, i32
  }
  func.func @transform_1(%arg0: i32) -> (i32, i32) {
    %c0_i32 = arith.constant 0 : i32
    %c0_i32_0 = arith.constant 0 : i32
    %c0_i32_1 = arith.constant 0 : i32
    return %c0_i32, %c0_i32_0 : i32, i32
  }
  func.func @transform_2(%arg0: i32) -> (i32, i32) {
    %c0_i32 = arith.constant 0 : i32
    %c0_i32_0 = arith.constant 0 : i32
    %c0_i32_1 = arith.constant 0 : i32
    return %c0_i32, %c0_i32_0 : i32, i32
  }
  func.func @transform_3(%arg0: i32) -> (i32, i32) {
    %c0_i32 = arith.constant 0 : i32
    %c0_i32_0 = arith.constant 0 : i32
    return %arg0, %c0_i32 : i32, i32
  }
}

module attributes {stable_mosaic.version = 11 : i64} {
  func.func @_maxpool_kernel(%arg0: i32, %arg1: memref<14x2x7x128xf32, #tpu.memory_space<vmem>>, %arg2: memref<14x7x64xf32, #tpu.memory_space<vmem>>) attributes {dimension_semantics = [#tpu.dimension_semantics<parallel>], iteration_bounds = array<i64: 1>, scalar_prefetch = 0 : i64, scratch_operands = 0 : i64, tpu.core_type = #tpu.core_type<tc>, window_params = [{transform_indices = @transform_0, window_bounds = array<i64: 14, 2, 7, 128>}, {transform_indices = @transform_1, window_bounds = array<i64: 14, 7, 64>}]} {
    %c0 = arith.constant 0 : index
    %c0_0 = arith.constant 0 : index
    %c0_1 = arith.constant 0 : index
    %c0_2 = arith.constant 0 : index
    %0 = vector.load %arg1[%c0, %c0_0, %c0_1, %c0_2] : memref<14x2x7x128xf32, #tpu.memory_space<vmem>>, vector<14x2x7x128xf32>
    %1 = vector.extract_strided_slice %0 {offsets = [0, 0, 0, 0], sizes = [14, 1, 7, 128], strides = [1, 1, 1, 1]} : vector<14x2x7x128xf32> to vector<14x1x7x128xf32>
    %2 = vector.shape_cast %1 : vector<14x1x7x128xf32> to vector<14x7x128xf32>
    %3 = vector.extract_strided_slice %0 {offsets = [0, 1, 0, 0], sizes = [14, 1, 7, 128], strides = [1, 1, 1, 1]} : vector<14x2x7x128xf32> to vector<14x1x7x128xf32>
    %4 = vector.shape_cast %3 : vector<14x1x7x128xf32> to vector<14x7x128xf32>
    %5 = arith.maximumf %2, %4 : vector<14x7x128xf32>
    %6 = vector.extract_strided_slice %5 {offsets = [0, 0, 0], sizes = [14, 7, 64], strides = [1, 1, 1]} : vector<14x7x128xf32> to vector<14x7x64xf32>
    %7 = vector.extract_strided_slice %5 {offsets = [0, 0, 64], sizes = [14, 7, 64], strides = [1, 1, 1]} : vector<14x7x128xf32> to vector<14x7x64xf32>
    %8 = arith.maximumf %6, %7 : vector<14x7x64xf32>
    %c0_3 = arith.constant 0 : index
    %c0_4 = arith.constant 0 : index
    %c0_5 = arith.constant 0 : index
    %9 = vector.load %arg2[%c0_3, %c0_4, %c0_5] : memref<14x7x64xf32, #tpu.memory_space<vmem>>, vector<14x7x64xf32>
    tpu.vector_store %arg2[%c0_3, %c0_4, %c0_5], %8 {strides = array<i32>} : memref<14x7x64xf32, #tpu.memory_space<vmem>>, vector<14x7x64xf32>,
    return
  }
  func.func @transform_0(%arg0: i32) -> (i32, i32, i32, i32) {
    %c0_i32 = arith.constant 0 : i32
    %c0_i32_0 = arith.constant 0 : i32
    %c0_i32_1 = arith.constant 0 : i32
    %c0_i32_2 = arith.constant 0 : i32
    return %arg0, %c0_i32, %c0_i32_0, %c0_i32_1 : i32, i32, i32, i32
  }
  func.func @transform_1(%arg0: i32) -> (i32, i32, i32) {
    %c0_i32 = arith.constant 0 : i32
    %c0_i32_0 = arith.constant 0 : i32
    %c0_i32_1 = arith.constant 0 : i32
    return %arg0, %c0_i32, %c0_i32_0 : i32, i32, i32
  }
}

module attributes {stable_mosaic.version = 11 : i64} {
  func.func @_fc_fused_kernel(%arg0: i32, %arg1: memref<2x3136xbf16, #tpu.memory_space<vmem>>, %arg2: memref<3136x128xbf16, #tpu.memory_space<vmem>>, %arg3: memref<1x128xf32, #tpu.memory_space<vmem>>, %arg4: memref<128x128xbf16, #tpu.memory_space<vmem>>, %arg5: memref<1x128xf32, #tpu.memory_space<vmem>>, %arg6: memref<2x128xf32, #tpu.memory_space<vmem>>, %arg7: memref<2x128xf32, #tpu.memory_space<vmem>>) attributes {dimension_semantics = [#tpu.dimension_semantics<parallel>], iteration_bounds = array<i64: 1>, scalar_prefetch = 0 : i64, scratch_operands = 0 : i64, tpu.core_type = #tpu.core_type<tc>, window_params = [{transform_indices = @transform_0, window_bounds = array<i64: 2, 3136>}, {pipeline_mode = #tpu.pipeline_mode<synchronous>, transform_indices = @transform_1, window_bounds = array<i64: 3136, 128>}, {pipeline_mode = #tpu.pipeline_mode<synchronous>, transform_indices = @transform_2, window_bounds = array<i64: 1, 128>}, {pipeline_mode = #tpu.pipeline_mode<synchronous>, transform_indices = @transform_3, window_bounds = array<i64: 128, 128>}, {pipeline_mode = #tpu.pipeline_mode<synchronous>, transform_indices = @transform_4, window_bounds = array<i64: 1, 128>}, {transform_indices = @transform_5, window_bounds = array<i64: 2, 128>}, {transform_indices = @transform_6, window_bounds = array<i64: 2, 128>}]} {
    %c0 = arith.constant 0 : index
    %c0_0 = arith.constant 0 : index
    %0 = vector.load %arg1[%c0, %c0_0] : memref<2x3136xbf16, #tpu.memory_space<vmem>>, vector<2x3136xbf16>
    %c0_1 = arith.constant 0 : index
    %c0_2 = arith.constant 0 : index
    %1 = vector.load %arg2[%c0_1, %c0_2] : memref<3136x128xbf16, #tpu.memory_space<vmem>>, vector<3136x128xbf16>
    %cst = arith.constant dense<0.000000e+00> : vector<2x128xf32>
    %2 = tpu.matmul %0, %1, %cst {dimension_numbers = #tpu.dot_dimension_numbers<[1], [0], [0], [1], [0, 0, 1, 1], [], []>} : vector<2x3136xbf16>, vector<3136x128xbf16>, vector<2x128xf32> -> vector<2x128xf32>
    %c0_3 = arith.constant 0 : index
    %c0_4 = arith.constant 0 : index
    %3 = vector.load %arg3[%c0_3, %c0_4] : memref<1x128xf32, #tpu.memory_space<vmem>>, vector<1x128xf32>
    %4 = vector.broadcast %3 : vector<1x128xf32> to vector<2x128xf32>
    %5 = arith.addf %2, %4 : vector<2x128xf32>
    %cst_5 = arith.constant 0.000000e+00 : f32
    %6 = vector.broadcast %cst_5 : f32 to vector<2x128xf32>
    %7 = arith.maximumf %5, %6 : vector<2x128xf32>
    %c0_6 = arith.constant 0 : index
    %c0_7 = arith.constant 0 : index
    %8 = vector.load %arg6[%c0_6, %c0_7] : memref<2x128xf32, #tpu.memory_space<vmem>>, vector<2x128xf32>
    tpu.vector_store %arg6[%c0_6, %c0_7], %7 {strides = array<i32>} : memref<2x128xf32, #tpu.memory_space<vmem>>, vector<2x128xf32>,
    %9 = arith.truncf %7 : vector<2x128xf32> to vector<2x128xbf16>
    %c0_8 = arith.constant 0 : index
    %c0_9 = arith.constant 0 : index
    %10 = vector.load %arg4[%c0_8, %c0_9] : memref<128x128xbf16, #tpu.memory_space<vmem>>, vector<128x128xbf16>
    %cst_10 = arith.constant dense<0.000000e+00> : vector<2x128xf32>
    %11 = tpu.matmul %9, %10, %cst_10 {dimension_numbers = #tpu.dot_dimension_numbers<[1], [0], [0], [1], [0, 0, 1, 1], [], []>} : vector<2x128xbf16>, vector<128x128xbf16>, vector<2x128xf32> -> vector<2x128xf32>
    %c0_11 = arith.constant 0 : index
    %c0_12 = arith.constant 0 : index
    %12 = vector.load %arg5[%c0_11, %c0_12] : memref<1x128xf32, #tpu.memory_space<vmem>>, vector<1x128xf32>
    %13 = vector.broadcast %12 : vector<1x128xf32> to vector<2x128xf32>
    %14 = arith.addf %11, %13 : vector<2x128xf32>
    %c0_13 = arith.constant 0 : index
    %c0_14 = arith.constant 0 : index
    %15 = vector.load %arg7[%c0_13, %c0_14] : memref<2x128xf32, #tpu.memory_space<vmem>>, vector<2x128xf32>
    tpu.vector_store %arg7[%c0_13, %c0_14], %14 {strides = array<i32>} : memref<2x128xf32, #tpu.memory_space<vmem>>, vector<2x128xf32>,
    return
  }
  func.func @transform_0(%arg0: i32) -> (i32, i32) {
    %c0_i32 = arith.constant 0 : i32
    %c0_i32_0 = arith.constant 0 : i32
    return %arg0, %c0_i32 : i32, i32
  }
  func.func @transform_1(%arg0: i32) -> (i32, i32) {
    %c0_i32 = arith.constant 0 : i32
    %c0_i32_0 = arith.constant 0 : i32
    %c0_i32_1 = arith.constant 0 : i32
    return %c0_i32, %c0_i32_0 : i32, i32
  }
  func.func @transform_2(%arg0: i32) -> (i32, i32) {
    %c0_i32 = arith.constant 0 : i32
    %c0_i32_0 = arith.constant 0 : i32
    %c0_i32_1 = arith.constant 0 : i32
    return %c0_i32, %c0_i32_0 : i32, i32
  }
  func.func @transform_3(%arg0: i32) -> (i32, i32) {
    %c0_i32 = arith.constant 0 : i32
    %c0_i32_0 = arith.constant 0 : i32
    %c0_i32_1 = arith.constant 0 : i32
    return %c0_i32, %c0_i32_0 : i32, i32
  }
  func.func @transform_4(%arg0: i32) -> (i32, i32) {
    %c0_i32 = arith.constant 0 : i32
    %c0_i32_0 = arith.constant 0 : i32
    %c0_i32_1 = arith.constant 0 : i32
    return %c0_i32, %c0_i32_0 : i32, i32
  }
  func.func @transform_5(%arg0: i32) -> (i32, i32) {
    %c0_i32 = arith.constant 0 : i32
    %c0_i32_0 = arith.constant 0 : i32
    return %arg0, %c0_i32 : i32, i32
  }
  func.func @transform_6(%arg0: i32) -> (i32, i32) {
    %c0_i32 = arith.constant 0 : i32
    %c0_i32_0 = arith.constant 0 : i32
    return %arg0, %c0_i32 : i32, i32
  }
}

</mosaic_0001>

<llo_original>
// kernel: net_forward.6
$region0: #{net_forward.6}
  #allocation0 [shape = 'u32[]', space=smem, size = 0x4, offset = 0x4, fixed_abs, tag = 'smem constant byte address 0x4 - core index']
  #allocation1 [shape = 'u32[144,128]{1,0:T(1,128)}', space=vmem, size = 0x12000, scoped, tag = 'internal scratch']
  %s0 = inlined_call_operand.vmem [shape: f32[28,2,14,64], index: 0, kind: input, shape index: {}]
  %s1 = inlined_call_operand.vmem [shape: f32[28,14,32], index: 1, kind: output, shape index: {}]
  %s2 = sld [smem:[#allocation0]]
  $region14: #{net_forward.6} parent=0
    _
  %s4 = ssub.s32 1, %s2
  %s5 = scalar_select 0, %s4, %s2
  // Predicated region
  $region2: #{net_forward.6} parent=0 // pred_check
    _
  $region3: #{net_forward.6} parent=0 // pred_check_branch
    %7 = sbr.rel (0) target = $region5
  $region4: #{net_forward.6} parent=0 // pred_region
    _
  $region5: #{net_forward.6} parent=0 // pred_fallthru
    _
  %v8 = vld [vmem:[%s0] sm:$0xff]
  %v9 = vld [vmem:[%s0 + $0x8] sm:$0x3f]
  %v10 = vld [vmem:[%s0 + $0x10] sm:$0xff]
  %v11 = vld [vmem:[%s0 + $0x18] sm:$0x3f]
  %v12 = vld [vmem:[%s0 + $0x20] sm:$0xff]
  %v13 = vld [vmem:[%s0 + $0x28] sm:$0x3f]
  %v14 = vld [vmem:[%s0 + $0x30] sm:$0xff]
  %v15 = vld [vmem:[%s0 + $0x38] sm:$0x3f]
  %v16 = vld [vmem:[%s0 + $0x40] sm:$0xff]
  %v17 = vld [vmem:[%s0 + $0x48] sm:$0x3f]
  %v18 = vld [vmem:[%s0 + $0x50] sm:$0xff]
  %v19 = vld [vmem:[%s0 + $0x58] sm:$0x3f]
  %v20 = vld [vmem:[%s0 + $0x60] sm:$0xff]
  %v21 = vld [vmem:[%s0 + $0x68] sm:$0x3f]
  %v22 = vld [vmem:[%s0 + $0x70] sm:$0xff]
  %v23 = vld [vmem:[%s0 + $0x78] sm:$0x3f]
  %v24 = vld [vmem:[%s0 + $0x80] sm:$0xff]
  %v25 = vld [vmem:[%s0 + $0x88] sm:$0x3f]
  %v26 = vld [vmem:[%s0 + $0x90] sm:$0xff]
  %v27 = vld [vmem:[%s0 + $0x98] sm:$0x3f]
  %v28 = vld [vmem:[%s0 + $0xa0] sm:$0xff]
  %v29 = vld [vmem:[%s0 + $0xa8] sm:$0x3f]
  %v30 = vld [vmem:[%s0 + $0xb0] sm:$0xff]
  %v31 = vld [vmem:[%s0 + $0xb8] sm:$0x3f]
  %v32 = vld [vmem:[%s0 + $0xc0] sm:$0xff]
  %v33 = vld [vmem:[%s0 + $0xc8] sm:$0x3f]
  %v34 = vld [vmem:[%s0 + $0xd0] sm:$0xff]
  %v35 = vld [vmem:[%s0 + $0xd8] sm:$0x3f]
  %v36 = vld [vmem:[%s0 + $0xe0] sm:$0xff]
  %v37 = vld [vmem:[%s0 + $0xe8] sm:$0x3f]
  %v38 = vld [vmem:[%s0 + $0xf0] sm:$0xff]
  %v39 = vld [vmem:[%s0 + $0xf8] sm:$0x3f]
  %v40 = vld [vmem:[%s0 + $0x100] sm:$0xff]
  %v41 = vld [vmem:[%s0 + $0x108] sm:$0x3f]
  %v42 = vld [vmem:[%s0 + $0x110] sm:$0xff]
  %v43 = vld [vmem:[%s0 + $0x118] sm:$0x3f]
  %v44 = vld [vmem:[%s0 + $0x120] sm:$0xff]
  %v45 = vld [vmem:[%s0 + $0x128] sm:$0x3f]
  %v46 = vld [vmem:[%s0 + $0x130] sm:$0xff]
  %v47 = vld [vmem:[%s0 + $0x138] sm:$0x3f]
  %v48 = vld [vmem:[%s0 + $0x140] sm:$0xff]
  %v49 = vld [vmem:[%s0 + $0x148] sm:$0x3f]
  %v50 = vld [vmem:[%s0 + $0x150] sm:$0xff]
  %v51 = vld [vmem:[%s0 + $0x158] sm:$0x3f]
  %v52 = vld [vmem:[%s0 + $0x160] sm:$0xff]
  %v53 = vld [vmem:[%s0 + $0x168] sm:$0x3f]
  %v54 = vld [vmem:[%s0 + $0x170] sm:$0xff]
  %v55 = vld [vmem:[%s0 + $0x178] sm:$0x3f]
  %v56 = vld [vmem:[%s0 + $0x180] sm:$0xff]
  %v57 = vld [vmem:[%s0 + $0x188] sm:$0x3f]
  %v58 = vld [vmem:[%s0 + $0x190] sm:$0xff]
  %v59 = vld [vmem:[%s0 + $0x198] sm:$0x3f]
  %v60 = vld [vmem:[%s0 + $0x1a0] sm:$0xff]
  %v61 = vld [vmem:[%s0 + $0x1a8] sm:$0x3f]
  %v62 = vld [vmem:[%s0 + $0x1b0] sm:$0xff]
  %v63 = vld [vmem:[%s0 + $0x1b8] sm:$0x3f]
  %v64 = vld [vmem:[%s0 + $0x1c0] sm:$0xff]
  %v65 = vld [vmem:[%s0 + $0x1c8] sm:$0x3f]
  %v66 = vld [vmem:[%s0 + $0x1d0] sm:$0xff]
  %v67 = vld [vmem:[%s0 + $0x1d8] sm:$0x3f]
  %v68 = vld [vmem:[%s0 + $0x1e0] sm:$0xff]
  %v69 = vld [vmem:[%s0 + $0x1e8] sm:$0x3f]
  %v70 = vld [vmem:[%s0 + $0x1f0] sm:$0xff]
  %v71 = vld [vmem:[%s0 + $0x1f8] sm:$0x3f]
  %v72 = vld [vmem:[%s0 + $0x200] sm:$0xff]
  %v73 = vld [vmem:[%s0 + $0x208] sm:$0x3f]
  %v74 = vld [vmem:[%s0 + $0x210] sm:$0xff]
  %v75 = vld [vmem:[%s0 + $0x218] sm:$0x3f]
  %v76 = vld [vmem:[%s0 + $0x220] sm:$0xff]
  %v77 = vld [vmem:[%s0 + $0x228] sm:$0x3f]
  %v78 = vld [vmem:[%s0 + $0x230] sm:$0xff]
  %v79 = vld [vmem:[%s0 + $0x238] sm:$0x3f]
  %v80 = vld [vmem:[%s0 + $0x240] sm:$0xff]
  %v81 = vld [vmem:[%s0 + $0x248] sm:$0x3f]
  %v82 = vld [vmem:[%s0 + $0x250] sm:$0xff]
  %v83 = vld [vmem:[%s0 + $0x258] sm:$0x3f]
  %v84 = vld [vmem:[%s0 + $0x260] sm:$0xff]
  %v85 = vld [vmem:[%s0 + $0x268] sm:$0x3f]
  %v86 = vld [vmem:[%s0 + $0x270] sm:$0xff]
  %v87 = vld [vmem:[%s0 + $0x278] sm:$0x3f]
  %v88 = vld [vmem:[%s0 + $0x280] sm:$0xff]
  %v89 = vld [vmem:[%s0 + $0x288] sm:$0x3f]
  %v90 = vld [vmem:[%s0 + $0x290] sm:$0xff]
  %v91 = vld [vmem:[%s0 + $0x298] sm:$0x3f]
  %v92 = vld [vmem:[%s0 + $0x2a0] sm:$0xff]
  %v93 = vld [vmem:[%s0 + $0x2a8] sm:$0x3f]
  %v94 = vld [vmem:[%s0 + $0x2b0] sm:$0xff]
  %v95 = vld [vmem:[%s0 + $0x2b8] sm:$0x3f]
  %v96 = vld [vmem:[%s0 + $0x2c0] sm:$0xff]
  %v97 = vld [vmem:[%s0 + $0x2c8] sm:$0x3f]
  %v98 = vld [vmem:[%s0 + $0x2d0] sm:$0xff]
  %v99 = vld [vmem:[%s0 + $0x2d8] sm:$0x3f]
  %v100 = vld [vmem:[%s0 + $0x2e0] sm:$0xff]
  %v101 = vld [vmem:[%s0 + $0x2e8] sm:$0x3f]
  %v102 = vld [vmem:[%s0 + $0x2f0] sm:$0xff]
  %v103 = vld [vmem:[%s0 + $0x2f8] sm:$0x3f]
  %v104 = vld [vmem:[%s0 + $0x300] sm:$0xff]
  %v105 = vld [vmem:[%s0 + $0x308] sm:$0x3f]
  %v106 = vld [vmem:[%s0 + $0x310] sm:$0xff]
  %v107 = vld [vmem:[%s0 + $0x318] sm:$0x3f]
  %v108 = vld [vmem:[%s0 + $0x320] sm:$0xff]
  %v109 = vld [vmem:[%s0 + $0x328] sm:$0x3f]
  %v110 = vld [vmem:[%s0 + $0x330] sm:$0xff]
  %v111 = vld [vmem:[%s0 + $0x338] sm:$0x3f]
  %v112 = vld [vmem:[%s0 + $0x340] sm:$0xff]
  %v113 = vld [vmem:[%s0 + $0x348] sm:$0x3f]
  %v114 = vld [vmem:[%s0 + $0x350] sm:$0xff]
  %v115 = vld [vmem:[%s0 + $0x358] sm:$0x3f]
  %v116 = vld [vmem:[%s0 + $0x360] sm:$0xff]
  %v117 = vld [vmem:[%s0 + $0x368] sm:$0x3f]
  %v118 = vld [vmem:[%s0 + $0x370] sm:$0xff]
  %v119 = vld [vmem:[%s0 + $0x378] sm:$0x3f]
  %v120 = vmax.f32 %v8, %v10
  %v121 = vmax.f32 %v9, %v11
  %v122 = vmax.f32 %v12, %v14
  %v123 = vmax.f32 %v13, %v15
  %v124 = vmax.f32 %v16, %v18
  %v125 = vmax.f32 %v17, %v19
  %v126 = vmax.f32 %v20, %v22
  %v127 = vmax.f32 %v21, %v23
  %v128 = vmax.f32 %v24, %v26
  %v129 = vmax.f32 %v25, %v27
  %v130 = vmax.f32 %v28, %v30
  %v131 = vmax.f32 %v29, %v31
  %v132 = vmax.f32 %v32, %v34
  %v133 = vmax.f32 %v33, %v35
  %v134 = vmax.f32 %v36, %v38
  %v135 = vmax.f32 %v37, %v39
  %v136 = vmax.f32 %v40, %v42
  %v137 = vmax.f32 %v41, %v43
  %v138 = vmax.f32 %v44, %v46
  %v139 = vmax.f32 %v45, %v47
  %v140 = vmax.f32 %v48, %v50
  %v141 = vmax.f32 %v49, %v51
  %v142 = vmax.f32 %v52, %v54
  %v143 = vmax.f32 %v53, %v55
  %v144 = vmax.f32 %v56, %v58
  %v145 = vmax.f32 %v57, %v59
  %v146 = vmax.f32 %v60, %v62
  %v147 = vmax.f32 %v61, %v63
  %v148 = vmax.f32 %v64, %v66
  %v149 = vmax.f32 %v65, %v67
  %v150 = vmax.f32 %v68, %v70
  %v151 = vmax.f32 %v69, %v71
  %v152 = vmax.f32 %v72, %v74
  %v153 = vmax.f32 %v73, %v75
  %v154 = vmax.f32 %v76, %v78
  %v155 = vmax.f32 %v77, %v79
  %v156 = vmax.f32 %v80, %v82
  %v157 = vmax.f32 %v81, %v83
  %v158 = vmax.f32 %v84, %v86
  %v159 = vmax.f32 %v85, %v87
  %v160 = vmax.f32 %v88, %v90
  %v161 = vmax.f32 %v89, %v91
  %v162 = vmax.f32 %v92, %v94
  %v163 = vmax.f32 %v93, %v95
  %v164 = vmax.f32 %v96, %v98
  %v165 = vmax.f32 %v97, %v99
  %v166 = vmax.f32 %v100, %v102
  %v167 = vmax.f32 %v101, %v103
  %v168 = vmax.f32 %v104, %v106
  %v169 = vmax.f32 %v105, %v107
  %v170 = vmax.f32 %v108, %v110
  %v171 = vmax.f32 %v109, %v111
  %v172 = vmax.f32 %v112, %v114
  %v173 = vmax.f32 %v113, %v115
  %v174 = vmax.f32 %v116, %v118
  %v175 = vmax.f32 %v117, %v119
  %232 = vrot.lane.b32.xlu0 %v120, 96
  %v233 = vpop.permute.xlu0 %232
  %234 = vrot.lane.b32.xlu0 %v121, 96
  %v235 = vpop.permute.xlu0 %234
  %236 = vrot.lane.b32.xlu0 %v122, 96
  %v237 = vpop.permute.xlu0 %236
  %238 = vrot.lane.b32.xlu0 %v123, 96
  %v239 = vpop.permute.xlu0 %238
  %240 = vrot.lane.b32.xlu0 %v124, 96
  %v241 = vpop.permute.xlu0 %240
  %242 = vrot.lane.b32.xlu0 %v125, 96
  %v243 = vpop.permute.xlu0 %242
  %244 = vrot.lane.b32.xlu0 %v126, 96
  %v245 = vpop.permute.xlu0 %244
  %246 = vrot.lane.b32.xlu0 %v127, 96
  %v247 = vpop.permute.xlu0 %246
  %248 = vrot.lane.b32.xlu0 %v128, 96
  %v249 = vpop.permute.xlu0 %248
  %250 = vrot.lane.b32.xlu0 %v129, 96
  %v251 = vpop.permute.xlu0 %250
  %252 = vrot.lane.b32.xlu0 %v130, 96
  %v253 = vpop.permute.xlu0 %252
  %254 = vrot.lane.b32.xlu0 %v131, 96
  %v255 = vpop.permute.xlu0 %254
  %256 = vrot.lane.b32.xlu0 %v132, 96
  %v257 = vpop.permute.xlu0 %256
  %258 = vrot.lane.b32.xlu0 %v133, 96
  %v259 = vpop.permute.xlu0 %258
  %260 = vrot.lane.b32.xlu0 %v134, 96
  %v261 = vpop.permute.xlu0 %260
  %262 = vrot.lane.b32.xlu0 %v135, 96
  %v263 = vpop.permute.xlu0 %262
  %264 = vrot.lane.b32.xlu0 %v136, 96
  %v265 = vpop.permute.xlu0 %264
  %266 = vrot.lane.b32.xlu0 %v137, 96
  %v267 = vpop.permute.xlu0 %266
  %268 = vrot.lane.b32.xlu0 %v138, 96
  %v269 = vpop.permute.xlu0 %268
  %270 = vrot.lane.b32.xlu0 %v139, 96
  %v271 = vpop.permute.xlu0 %270
  %272 = vrot.lane.b32.xlu0 %v140, 96
  %v273 = vpop.permute.xlu0 %272
  %274 = vrot.lane.b32.xlu0 %v141, 96
  %v275 = vpop.permute.xlu0 %274
  %276 = vrot.lane.b32.xlu0 %v142, 96
  %v277 = vpop.permute.xlu0 %276
  %278 = vrot.lane.b32.xlu0 %v143, 96
  %v279 = vpop.permute.xlu0 %278
  %280 = vrot.lane.b32.xlu0 %v144, 96
  %v281 = vpop.permute.xlu0 %280
  %282 = vrot.lane.b32.xlu0 %v145, 96
  %v283 = vpop.permute.xlu0 %282
  %284 = vrot.lane.b32.xlu0 %v146, 96
  %v285 = vpop.permute.xlu0 %284
  %286 = vrot.lane.b32.xlu0 %v147, 96
  %v287 = vpop.permute.xlu0 %286
  %288 = vrot.lane.b32.xlu0 %v148, 96
  %v289 = vpop.permute.xlu0 %288
  %290 = vrot.lane.b32.xlu0 %v149, 96
  %v291 = vpop.permute.xlu0 %290
  %292 = vrot.lane.b32.xlu0 %v150, 96
  %v293 = vpop.permute.xlu0 %292
  %294 = vrot.lane.b32.xlu0 %v151, 96
  %v295 = vpop.permute.xlu0 %294
  %296 = vrot.lane.b32.xlu0 %v152, 96
  %v297 = vpop.permute.xlu0 %296
  %298 = vrot.lane.b32.xlu0 %v153, 96
  %v299 = vpop.permute.xlu0 %298
  %300 = vrot.lane.b32.xlu0 %v154, 96
  %v301 = vpop.permute.xlu0 %300
  %302 = vrot.lane.b32.xlu0 %v155, 96
  %v303 = vpop.permute.xlu0 %302
  %304 = vrot.lane.b32.xlu0 %v156, 96
  %v305 = vpop.permute.xlu0 %304
  %306 = vrot.lane.b32.xlu0 %v157, 96
  %v307 = vpop.permute.xlu0 %306
  %308 = vrot.lane.b32.xlu0 %v158, 96
  %v309 = vpop.permute.xlu0 %308
  %310 = vrot.lane.b32.xlu0 %v159, 96
  %v311 = vpop.permute.xlu0 %310
  %312 = vrot.lane.b32.xlu0 %v160, 96
  %v313 = vpop.permute.xlu0 %312
  %314 = vrot.lane.b32.xlu0 %v161, 96
  %v315 = vpop.permute.xlu0 %314
  %316 = vrot.lane.b32.xlu0 %v162, 96
  %v317 = vpop.permute.xlu0 %316
  %318 = vrot.lane.b32.xlu0 %v163, 96
  %v319 = vpop.permute.xlu0 %318
  %320 = vrot.lane.b32.xlu0 %v164, 96
  %v321 = vpop.permute.xlu0 %320
  %322 = vrot.lane.b32.xlu0 %v165, 96
  %v323 = vpop.permute.xlu0 %322
  %324 = vrot.lane.b32.xlu0 %v166, 96
  %v325 = vpop.permute.xlu0 %324
  %326 = vrot.lane.b32.xlu0 %v167, 96
  %v327 = vpop.permute.xlu0 %326
  %328 = vrot.lane.b32.xlu0 %v168, 96
  %v329 = vpop.permute.xlu0 %328
  %330 = vrot.lane.b32.xlu0 %v169, 96
  %v331 = vpop.permute.xlu0 %330
  %332 = vrot.lane.b32.xlu0 %v170, 96
  %v333 = vpop.permute.xlu0 %332
  %334 = vrot.lane.b32.xlu0 %v171, 96
  %v335 = vpop.permute.xlu0 %334
  %336 = vrot.lane.b32.xlu0 %v172, 96
  %v337 = vpop.permute.xlu0 %336
  %338 = vrot.lane.b32.xlu0 %v173, 96
  %v339 = vpop.permute.xlu0 %338
  %340 = vrot.lane.b32.xlu0 %v174, 96
  %v341 = vpop.permute.xlu0 %340
  %342 = vrot.lane.b32.xlu0 %v175, 96
  %v343 = vpop.permute.xlu0 %342
  %v400 = vmax.f32 %v120, %v233
  %v401 = vmax.f32 %v121, %v235
  %v402 = vmax.f32 %v122, %v237
  %v403 = vmax.f32 %v123, %v239
  %v404 = vmax.f32 %v124, %v241
  %v405 = vmax.f32 %v125, %v243
  %v406 = vmax.f32 %v126, %v245
  %v407 = vmax.f32 %v127, %v247
  %v408 = vmax.f32 %v128, %v249
  %v409 = vmax.f32 %v129, %v251
  %v410 = vmax.f32 %v130, %v253
  %v411 = vmax.f32 %v131, %v255
  %v412 = vmax.f32 %v132, %v257
  %v413 = vmax.f32 %v133, %v259
  %v414 = vmax.f32 %v134, %v261
  %v415 = vmax.f32 %v135, %v263
  %v416 = vmax.f32 %v136, %v265
  %v417 = vmax.f32 %v137, %v267
  %v418 = vmax.f32 %v138, %v269
  %v419 = vmax.f32 %v139, %v271
  %v420 = vmax.f32 %v140, %v273
  %v421 = vmax.f32 %v141, %v275
  %v422 = vmax.f32 %v142, %v277
  %v423 = vmax.f32 %v143, %v279
  %v424 = vmax.f32 %v144, %v281
  %v425 = vmax.f32 %v145, %v283
  %v426 = vmax.f32 %v146, %v285
  %v427 = vmax.f32 %v147, %v287
  %v428 = vmax.f32 %v148, %v289
  %v429 = vmax.f32 %v149, %v291
  %v430 = vmax.f32 %v150, %v293
  %v431 = vmax.f32 %v151, %v295
  %v432 = vmax.f32 %v152, %v297
  %v433 = vmax.f32 %v153, %v299
  %v434 = vmax.f32 %v154, %v301
  %v435 = vmax.f32 %v155, %v303
  %v436 = vmax.f32 %v156, %v305
  %v437 = vmax.f32 %v157, %v307
  %v438 = vmax.f32 %v158, %v309
  %v439 = vmax.f32 %v159, %v311
  %v440 = vmax.f32 %v160, %v313
  %v441 = vmax.f32 %v161, %v315
  %v442 = vmax.f32 %v162, %v317
  %v443 = vmax.f32 %v163, %v319
  %v444 = vmax.f32 %v164, %v321
  %v445 = vmax.f32 %v165, %v323
  %v446 = vmax.f32 %v166, %v325
  %v447 = vmax.f32 %v167, %v327
  %v448 = vmax.f32 %v168, %v329
  %v449 = vmax.f32 %v169, %v331
  %v450 = vmax.f32 %v170, %v333
  %v451 = vmax.f32 %v171, %v335
  %v452 = vmax.f32 %v172, %v337
  %v453 = vmax.f32 %v173, %v339
  %v454 = vmax.f32 %v174, %v341
  %v455 = vmax.f32 %v175, %v343
  %vm456 = vcmask 261120
  %457 = vst.msk [vmem:[%s1] sm:$0xff] %vm456, %v400
  %vm458 = vcmask 259072
  %459 = vst.msk [vmem:[%s1 + $0x8] sm:$0x3f] %vm458, %v401
  %460 = vst.msk [vmem:[%s1 + $0x10] sm:$0xff] %vm456, %v402
  %461 = vst.msk [vmem:[%s1 + $0x18] sm:$0x3f] %vm458, %v403
  %462 = vst.msk [vmem:[%s1 + $0x20] sm:$0xff] %vm456, %v404
  %463 = vst.msk [vmem:[%s1 + $0x28] sm:$0x3f] %vm458, %v405
  %464 = vst.msk [vmem:[%s1 + $0x30] sm:$0xff] %vm456, %v406
  %465 = vst.msk [vmem:[%s1 + $0x38] sm:$0x3f] %vm458, %v407
  %466 = vst.msk [vmem:[%s1 + $0x40] sm:$0xff] %vm456, %v408
  %467 = vst.msk [vmem:[%s1 + $0x48] sm:$0x3f] %vm458, %v409
  %468 = vst.msk [vmem:[%s1 + $0x50] sm:$0xff] %vm456, %v410
  %469 = vst.msk [vmem:[%s1 + $0x58] sm:$0x3f] %vm458, %v411
  %470 = vst.msk [vmem:[%s1 + $0x60] sm:$0xff] %vm456, %v412
  %471 = vst.msk [vmem:[%s1 + $0x68] sm:$0x3f] %vm458, %v413
  %472 = vst.msk [vmem:[%s1 + $0x70] sm:$0xff] %vm456, %v414
  %473 = vst.msk [vmem:[%s1 + $0x78] sm:$0x3f] %vm458, %v415
  %474 = vst.msk [vmem:[%s1 + $0x80] sm:$0xff] %vm456, %v416
  %475 = vst.msk [vmem:[%s1 + $0x88] sm:$0x3f] %vm458, %v417
  %476 = vst.msk [vmem:[%s1 + $0x90] sm:$0xff] %vm456, %v418
  %477 = vst.msk [vmem:[%s1 + $0x98] sm:$0x3f] %vm458, %v419
  %478 = vst.msk [vmem:[%s1 + $0xa0] sm:$0xff] %vm456, %v420
  %479 = vst.msk [vmem:[%s1 + $0xa8] sm:$0x3f] %vm458, %v421
  %480 = vst.msk [vmem:[%s1 + $0xb0] sm:$0xff] %vm456, %v422
  %481 = vst.msk [vmem:[%s1 + $0xb8] sm:$0x3f] %vm458, %v423
  %482 = vst.msk [vmem:[%s1 + $0xc0] sm:$0xff] %vm456, %v424
  %483 = vst.msk [vmem:[%s1 + $0xc8] sm:$0x3f] %vm458, %v425
  %484 = vst.msk [vmem:[%s1 + $0xd0] sm:$0xff] %vm456, %v426
  %485 = vst.msk [vmem:[%s1 + $0xd8] sm:$0x3f] %vm458, %v427
  %486 = vst.msk [vmem:[%s1 + $0xe0] sm:$0xff] %vm456, %v428
  %487 = vst.msk [vmem:[%s1 + $0xe8] sm:$0x3f] %vm458, %v429
  %488 = vst.msk [vmem:[%s1 + $0xf0] sm:$0xff] %vm456, %v430
  %489 = vst.msk [vmem:[%s1 + $0xf8] sm:$0x3f] %vm458, %v431
  %490 = vst.msk [vmem:[%s1 + $0x100] sm:$0xff] %vm456, %v432
  %491 = vst.msk [vmem:[%s1 + $0x108] sm:$0x3f] %vm458, %v433
  %492 = vst.msk [vmem:[%s1 + $0x110] sm:$0xff] %vm456, %v434
  %493 = vst.msk [vmem:[%s1 + $0x118] sm:$0x3f] %vm458, %v435
  %494 = vst.msk [vmem:[%s1 + $0x120] sm:$0xff] %vm456, %v436
  %495 = vst.msk [vmem:[%s1 + $0x128] sm:$0x3f] %vm458, %v437
  %496 = vst.msk [vmem:[%s1 + $0x130] sm:$0xff] %vm456, %v438
  %497 = vst.msk [vmem:[%s1 + $0x138] sm:$0x3f] %vm458, %v439
  %498 = vst.msk [vmem:[%s1 + $0x140] sm:$0xff] %vm456, %v440
  %499 = vst.msk [vmem:[%s1 + $0x148] sm:$0x3f] %vm458, %v441
  %500 = vst.msk [vmem:[%s1 + $0x150] sm:$0xff] %vm456, %v442
  %501 = vst.msk [vmem:[%s1 + $0x158] sm:$0x3f] %vm458, %v443
  %502 = vst.msk [vmem:[%s1 + $0x160] sm:$0xff] %vm456, %v444
  %503 = vst.msk [vmem:[%s1 + $0x168] sm:$0x3f] %vm458, %v445
  %504 = vst.msk [vmem:[%s1 + $0x170] sm:$0xff] %vm456, %v446
  %505 = vst.msk [vmem:[%s1 + $0x178] sm:$0x3f] %vm458, %v447
  %506 = vst.msk [vmem:[%s1 + $0x180] sm:$0xff] %vm456, %v448
  %507 = vst.msk [vmem:[%s1 + $0x188] sm:$0x3f] %vm458, %v449
  %508 = vst.msk [vmem:[%s1 + $0x190] sm:$0xff] %vm456, %v450
  %509 = vst.msk [vmem:[%s1 + $0x198] sm:$0x3f] %vm458, %v451
  %510 = vst.msk [vmem:[%s1 + $0x1a0] sm:$0xff] %vm456, %v452
  %511 = vst.msk [vmem:[%s1 + $0x1a8] sm:$0x3f] %vm458, %v453
  %512 = vst.msk [vmem:[%s1 + $0x1b0] sm:$0xff] %vm456, %v454
  %513 = vst.msk [vmem:[%s1 + $0x1b8] sm:$0x3f] %vm458, %v455
  // Predicated region
  $region6: #{net_forward.6} parent=0 // pred_check
    _
  $region7: #{net_forward.6} parent=0 // pred_check_branch
    %515 = sbr.rel (0) target = $region9
  $region8: #{net_forward.6} parent=0 // pred_region
    _
  $region9: #{net_forward.6} parent=0 // pred_fallthru
    _
  // Predicated region
  $region10: #{net_forward.6} parent=0 // pred_check
    _
  $region11: #{net_forward.6} parent=0 // pred_check_branch
    %517 = sbr.rel (0) target = $region13
  $region12: #{net_forward.6} parent=0 // pred_region
    _
  $region13: #{net_forward.6} parent=0 // pred_fallthru
    _

// kernel: net_forward.5
$region0: #{net_forward.5}
  #allocation0 [shape = 'u32[]', space=smem, size = 0x4, offset = 0x4, fixed_abs, tag = 'smem constant byte address 0x4 - core index']
  #allocation1 [shape = 'u32[144,128]{1,0:T(1,128)}', space=vmem, size = 0x12000, scoped, tag = 'internal scratch']
  %s0 = inlined_call_operand.vmem [shape: bf16[1568,9], index: 0, kind: input, shape index: {}]
  %s1 = inlined_call_operand.vmem [shape: bf16[9,32], index: 1, kind: input, shape index: {}]
  %s2 = inlined_call_operand.hbm [shape: f32[1,32], index: 2, kind: input, shape index: {}]
  %s3 = inlined_call_operand.vmem [shape: f32[1568,32], index: 3, kind: output, shape index: {}]
  %s4 = sld [smem:[#allocation0]]
  $region97: #{net_forward.5} parent=0
    _
  %s6 = ssub.s32 1, %s4
  %s7 = scalar_select 0, %s6, %s4
  $region1: #{net_forward.5} parent=0
    #allocation2 [shape = 'u8[512]{0}', space=vmem, size = 0x400, scoped, tag = 'input window, operand 2, single buffered']
    #allocation3 [shape = 's32[2]{0}', space=sflag, size = 0x8, scoped, tag = 'scoped memory for net_forward.5']
    #allocation4 [shape = 'u8[262144]{0}', space=vmem, size = 0x40000, scoped, tag = 'output window, operand 0']
    %8 = vsyncpa [#allocation3], 0
    loop: start=0, step=1, limit=9
    $region2: #{net_forward.5} parent=1 // loop_pre_header
      _
    $region3: #{net_forward.5} parent=1 // loop_header
      %s10 = sphi 0, %s14
      %p11 = scmp.ge.s32.totalorder %s10, 9
      %s20 = sphi 0, %s22
      %s23 = sphi 0, %s20
      %s24 = sphi 0, %s23
      %s40 = sphi 0, %s24
      %s44 = sphi 0, %s44
      %s46 = sphi 0, %s44
      %s47 = sphi 0, %s46
      %s61 = sphi 0, %s47
      %s65 = sphi 0, %s65
      %s67 = sphi 0, %s65
      %s68 = sphi 0, %s67
      %s82 = sphi 0, %s68
      %s88 = sphi 0, %s90
      %s91 = sphi 0, %s88
      %s92 = sphi 0, %s91
      %s108 = sphi 0, %s92
    $region4: #{net_forward.5} parent=1 // loop_header_branch
      %13 = sbr.rel (%p11) target = $region8
    $region5: #{net_forward.5} parent=1 // loop_body
      %s15 = ssub.s32 %s10, 1
      %s16 = ssub.s32 %s10, 2
      %s17 = sadd.s32 %s10, 1
      %s18 = ssub.s32 %s10, %s17
      %p19 = scmp.eq.s32.totalorder %s18, 0
      %s21 = sadd.s32 %s20, 1
      %s22 = scalar_select %p19, %s20, %s21
      %p25 = pneg %p19
      %p26 = scmp.eq.s32.totalorder %s10, 6
      %p27 = por %p25, %p26
      %p28 = scmp.ne.s32.totalorder %s20, %s23
      %p29 = scmp.eq.s32.totalorder %s10, 0
      %p30 = por %p28, %p29
      %p31 = scmp.ne.s32.totalorder %s20, %s23
      %p32 = scmp.eq.s32.totalorder %s15, 6
      %p33 = por %p31, %p32
      %p34 = scmp.ne.s32.totalorder %s23, %s24
      %p35 = scmp.eq.s32.totalorder %s15, 0
      %p36 = por %p34, %p35
      %p37 = scmp.ne.s32.totalorder %s23, %s24
      %p38 = scmp.eq.s32.totalorder %s16, 6
      %p39 = por %p37, %p38
      %p41 = scmp.ne.s32.totalorder %s24, %s40
      %p42 = scmp.eq.s32.totalorder %s16, 0
      %p43 = por %p41, %p42
      %s45 = sadd.s32 %s44, 1
      %p48 = scmp.eq.s32.totalorder %s10, 6
      %p49 = scmp.ne.s32.totalorder %s44, %s46
      %p50 = scmp.eq.s32.totalorder %s10, 0
      %p51 = por %p49, %p50
      %p52 = scmp.ne.s32.totalorder %s44, %s46
      %p53 = scmp.eq.s32.totalorder %s15, 6
      %p54 = por %p52, %p53
      %p55 = scmp.ne.s32.totalorder %s46, %s47
      %p56 = scmp.eq.s32.totalorder %s15, 0
      %p57 = por %p55, %p56
      %p58 = scmp.ne.s32.totalorder %s46, %s47
      %p59 = scmp.eq.s32.totalorder %s16, 6
      %p60 = por %p58, %p59
      %p62 = scmp.ne.s32.totalorder %s47, %s61
      %p63 = scmp.eq.s32.totalorder %s16, 0
      %p64 = por %p62, %p63
      %s66 = sadd.s32 %s65, 1
      %p69 = scmp.eq.s32.totalorder %s10, 6
      %p70 = scmp.ne.s32.totalorder %s65, %s67
      %p71 = scmp.eq.s32.totalorder %s10, 0
      %p72 = por %p70, %p71
      %p73 = scmp.ne.s32.totalorder %s65, %s67
      %p74 = scmp.eq.s32.totalorder %s15, 6
      %p75 = por %p73, %p74
      %p76 = scmp.ne.s32.totalorder %s67, %s68
      %p77 = scmp.eq.s32.totalorder %s15, 0
      %p78 = por %p76, %p77
      %p79 = scmp.ne.s32.totalorder %s67, %s68
      %p80 = scmp.eq.s32.totalorder %s16, 6
      %p81 = por %p79, %p80
      %p83 = scmp.ne.s32.totalorder %s68, %s82
      %p84 = scmp.eq.s32.totalorder %s16, 0
      %p85 = por %p83, %p84
      %s86 = ssub.s32 %s10, %s17
      %p87 = scmp.eq.s32.totalorder %s86, 0
      %s89 = sadd.s32 %s88, 1
      %s90 = scalar_select %p87, %s88, %s89
      %p93 = pneg %p87
      %p94 = scmp.eq.s32.totalorder %s10, 6
      %p95 = por %p93, %p94
      %p96 = scmp.ne.s32.totalorder %s88, %s91
      %p97 = scmp.eq.s32.totalorder %s10, 0
      %p98 = por %p96, %p97
      %p99 = scmp.ne.s32.totalorder %s88, %s91
      %p100 = scmp.eq.s32.totalorder %s15, 6
      %p101 = por %p99, %p100
      %p102 = scmp.ne.s32.totalorder %s91, %s92
      %p103 = scmp.eq.s32.totalorder %s15, 0
      %p104 = por %p102, %p103
      %p105 = scmp.ne.s32.totalorder %s91, %s92
      %p106 = scmp.eq.s32.totalorder %s16, 6
      %p107 = por %p105, %p106
      %p109 = scmp.ne.s32.totalorder %s92, %s108
      %p110 = scmp.eq.s32.totalorder %s16, 0
      %p111 = por %p109, %p110
      %p112 = scmp.le.s32.totalorder 1, %s10
      %p113 = scmp.lt.s32.totalorder %s10, 8
      %p114 = pnand %p112, %p113
      %p115 = pneg %p114
      // Predicated region
      $region9: #{net_forward.5} parent=5 // pred_check
        _
      $region10: #{net_forward.5} parent=5 // pred_check_branch
        %117 = sbr.rel (%p114) target = $region12
      $region11: #{net_forward.5} parent=5 // pred_region
        %s118 = ssub.s32 %s10, 1
        // Predicated region
        $region13: #{net_forward.5} parent=11 // pred_check
          %p119 = pneg %p57
        $region14: #{net_forward.5} parent=11 // pred_check_branch
          %121 = sbr.rel (%p119) target = $region16
        $region15: #{net_forward.5} parent=11 // pred_region
          _
        $region16: #{net_forward.5} parent=11 // pred_fallthru
          _
        // Predicated region
        $region17: #{net_forward.5} parent=11 // pred_check
          %p122 = pneg %p78
        $region18: #{net_forward.5} parent=11 // pred_check_branch
          %124 = sbr.rel (%p122) target = $region20
        $region19: #{net_forward.5} parent=11 // pred_region
          %s126 = ssub.s32 16, 16
          %127 = vsyncadd [#allocation3], %s126
          %s129 = sshll.u32 [#allocation2], 4
          %s130 = int_to_ptr.vmem [resolvable:$true] %s129
          %132 = dma.hbm_to_vmem [thread:$0]  %s2, 16, %s130, [#allocation3]
        $region20: #{net_forward.5} parent=11 // pred_fallthru
          _
      $region12: #{net_forward.5} parent=5 // pred_fallthru
        _
      %p133 = scmp.lt.s32.totalorder %s10, 7
      // Predicated region
      $region21: #{net_forward.5} parent=5 // pred_check
        %p134 = pneg %p133
      $region22: #{net_forward.5} parent=5 // pred_check_branch
        %136 = sbr.rel (%p134) target = $region24
      $region23: #{net_forward.5} parent=5 // pred_region
        // Predicated region
        $region25: #{net_forward.5} parent=23 // pred_check
          %p137 = pneg %p30
        $region26: #{net_forward.5} parent=23 // pred_check_branch
          %139 = sbr.rel (%p137) target = $region28
        $region27: #{net_forward.5} parent=23 // pred_region
          %s140 = smul.u32 32, %s10
          %s141 = ssub.s32 196, %s140
          %p142 = scmp.lt.s32.totalorder %s141, 32
          %s143 = scalar_select %p142, %s141, 32
          %s144 = smul.u32 64, %s143
          %p145 = scmp.lt.s32.totalorder %s140, 195
          %s146 = scalar_select %p145, %s140, 195
          %s147 = smul.addr %s146, 4
          %s148 = scalar_lea.vmem %s0, %s147
          %s149 = smul.u32 32, %s10
          %s150 = ssub.s32 196, %s149
          %p151 = scmp.lt.s32.totalorder %s150, 32
          %s152 = scalar_select %p151, %s150, 32
          %s153 = smul.u32 64, %s152
        $region28: #{net_forward.5} parent=23 // pred_fallthru
          _
      $region24: #{net_forward.5} parent=5 // pred_fallthru
        _
      %p154 = scmp.le.s32.totalorder 1, %s10
      %p155 = scmp.lt.s32.totalorder %s10, 8
      %p156 = pnand %p154, %p155
      %p157 = pneg %p156
      // Predicated region
      $region29: #{net_forward.5} parent=5 // pred_check
        _
      $region30: #{net_forward.5} parent=5 // pred_check_branch
        %159 = sbr.rel (%p156) target = $region32
      $region31: #{net_forward.5} parent=5 // pred_region
        %s160 = ssub.s32 %s10, 1
        // Predicated region
        $region33: #{net_forward.5} parent=31 // pred_check
          %p161 = pneg %p78
        $region34: #{net_forward.5} parent=31 // pred_check_branch
          %163 = sbr.rel (%p161) target = $region36
        $region35: #{net_forward.5} parent=31 // pred_region
          %164 = dma.done [#allocation3], 16
        $region36: #{net_forward.5} parent=31 // pred_fallthru
          _
        %s165 = smul.u32 32, %s15
        %s166 = ssub.s32 196, %s165
        %p167 = scmp.lt.s32.totalorder %s166, 32
        %s168 = scalar_select %p167, %s166, 32
        %s169 = smul.u32 64, %s168
        %p170 = scmp.lt.s32.totalorder %s165, 195
        %s171 = scalar_select %p170, %s165, 195
        %s172 = smul.addr %s171, 4
        %s173 = scalar_lea.vmem %s0, %s172
        %p174 = pneg %p36
        %p175 = pneg %p33
        %p176 = pneg %p57
        %p177 = pneg %p54
        %p178 = pneg %p78
        %p179 = pneg %p75
        %p180 = pneg %p104
        %p181 = pneg %p101
        %s182 = sand.u32 %s91, 1
        %s183 = sand.u32 %s91, 1
        %s184 = smul.addr %s183, 256
        %s185 = scalar_lea.vmem [#allocation4], %s184
        %s186 = smul.u32 32, %s15
        %s187 = ssub.s32 196, %s186
        %p188 = scmp.lt.s32.totalorder %s187, 32
        %s189 = scalar_select %p188, %s187, 32
        %s190 = smul.u32 64, %s189
        %p191 = scmp.lt.s32.totalorder %s186, 195
        %s192 = scalar_select %p191, %s186, 195
        %s193 = smul.addr %s192, 4
        %s194 = scalar_lea.vmem %s0, %s193
        %s195 = smul.u32 32, %s15
        %s196 = ssub.s32 196, %s195
        %p197 = scmp.lt.s32.totalorder %s196, 32
        %s198 = scalar_select %p197, %s196, 32
        %s199 = smul.u32 64, %s198
        %s200 = smul.u32 32, %s15
        %s201 = ssub.s32 196, %s200
        %p202 = scmp.lt.s32.totalorder %s201, 32
        %s203 = scalar_select %p202, %s201, 32
        %s204 = smul.u32 128, %s203
        %v206 = vld [vmem:[%s194] sm:$0xf]
        %v207 = vld [vmem:[%s194 + $0x4] sm:$0xf]
        %v208 = vld [vmem:[%s194 + $0x8] sm:$0xf]
        %v209 = vld [vmem:[%s194 + $0xc] sm:$0xf]
        %v210 = vld [vmem:[%s194 + $0x10] sm:$0xf]
        %v211 = vld [vmem:[%s194 + $0x14] sm:$0xf]
        %v212 = vld [vmem:[%s194 + $0x18] sm:$0xf]
        %v213 = vld [vmem:[%s194 + $0x1c] sm:$0xf]
        %v214 = vld [vmem:[%s194 + $0x20] sm:$0xf]
        %v215 = vld [vmem:[%s194 + $0x24] sm:$0xf]
        %v216 = vld [vmem:[%s194 + $0x28] sm:$0xf]
        %v217 = vld [vmem:[%s194 + $0x2c] sm:$0xf]
        %v218 = vld [vmem:[%s194 + $0x30] sm:$0xf]
        %v219 = vld [vmem:[%s194 + $0x34] sm:$0xf]
        %v220 = vld [vmem:[%s194 + $0x38] sm:$0xf]
        %v221 = vld [vmem:[%s194 + $0x3c] sm:$0xf]
        %v222 = vld [vmem:[%s194 + $0x40] sm:$0xf]
        %v223 = vld [vmem:[%s194 + $0x44] sm:$0xf]
        %v224 = vld [vmem:[%s194 + $0x48] sm:$0xf]
        %v225 = vld [vmem:[%s194 + $0x4c] sm:$0xf]
        %v226 = vld [vmem:[%s194 + $0x50] sm:$0xf]
        %v227 = vld [vmem:[%s194 + $0x54] sm:$0xf]
        %v228 = vld [vmem:[%s194 + $0x58] sm:$0xf]
        %v229 = vld [vmem:[%s194 + $0x5c] sm:$0xf]
        %v230 = vld [vmem:[%s194 + $0x60] sm:$0xf]
        %v231 = vld [vmem:[%s194 + $0x64] sm:$0xf]
        %v232 = vld [vmem:[%s194 + $0x68] sm:$0xf]
        %v233 = vld [vmem:[%s194 + $0x6c] sm:$0xf]
        %v234 = vld [vmem:[%s194 + $0x70] sm:$0xf]
        %v235 = vld [vmem:[%s194 + $0x74] sm:$0xf]
        %v236 = vld [vmem:[%s194 + $0x78] sm:$0xf]
        %v237 = vld [vmem:[%s194 + $0x7c] sm:$0xf]
        %v238 = vld [vmem:[%s1] sm:$0xf]
        %v239 = vld [vmem:[%s1 + $0x4] sm:$0x1]
        %v240 = vld [vmem:[#allocation2] sm:$0x1]
        %v242 = vlaneseq
        %v243 = vshrl.u32 %v242, 7
        %v244 = vsub.s32 0, %v243
        %v245 = vrot.slane %v240, %v244
        %v279 = vunpack.c.l.b16 %v206
        %v280 = vunpack.c.l.b16 %v207
        %v281 = vunpack.c.l.b16 %v208
        %v282 = vunpack.c.l.b16 %v209
        %v283 = vunpack.c.l.b16 %v210
        %v284 = vunpack.c.l.b16 %v211
        %v285 = vunpack.c.l.b16 %v212
        %v286 = vunpack.c.l.b16 %v213
        %v287 = vunpack.c.l.b16 %v214
        %v288 = vunpack.c.l.b16 %v215
        %v289 = vunpack.c.l.b16 %v216
        %v290 = vunpack.c.l.b16 %v217
        %v291 = vunpack.c.l.b16 %v218
        %v292 = vunpack.c.l.b16 %v219
        %v293 = vunpack.c.l.b16 %v220
        %v294 = vunpack.c.l.b16 %v221
        %v295 = vunpack.c.l.b16 %v222
        %v296 = vunpack.c.l.b16 %v223
        %v297 = vunpack.c.l.b16 %v224
        %v298 = vunpack.c.l.b16 %v225
        %v299 = vunpack.c.l.b16 %v226
        %v300 = vunpack.c.l.b16 %v227
        %v301 = vunpack.c.l.b16 %v228
        %v302 = vunpack.c.l.b16 %v229
        %v303 = vunpack.c.l.b16 %v230
        %v304 = vunpack.c.l.b16 %v231
        %v305 = vunpack.c.l.b16 %v232
        %v306 = vunpack.c.l.b16 %v233
        %v307 = vunpack.c.l.b16 %v234
        %v308 = vunpack.c.l.b16 %v235
        %v309 = vunpack.c.l.b16 %v236
        %v310 = vunpack.c.l.b16 %v237
        %v311 = vpack.c.b16 %v280, %v279
        %v312 = vpack.c.b16 %v282, %v281
        %v313 = vpack.c.b16 %v284, %v283
        %v314 = vpack.c.b16 %v286, %v285
        %v315 = vpack.c.b16 %v288, %v287
        %v316 = vpack.c.b16 %v290, %v289
        %v317 = vpack.c.b16 %v292, %v291
        %v318 = vpack.c.b16 %v294, %v293
        %v319 = vpack.c.b16 %v296, %v295
        %v320 = vpack.c.b16 %v298, %v297
        %v321 = vpack.c.b16 %v300, %v299
        %v322 = vpack.c.b16 %v302, %v301
        %v323 = vpack.c.b16 %v304, %v303
        %v324 = vpack.c.b16 %v306, %v305
        %v325 = vpack.c.b16 %v308, %v307
        %v326 = vpack.c.b16 %v310, %v309
        %v329 = vunpack.c.l.b16 %v238
        %v330 = vunpack.c.l.b16 %v239
        %v331 = vpack.c.b16 %v330, %v329
        %vm332 = vcmask 72704
        %v334 = vsel %vm332, %v311, 0
        %v337 = vsel %vm332, %v312, 0
        %v340 = vsel %vm332, %v313, 0
        %v343 = vsel %vm332, %v314, 0
        %v346 = vsel %vm332, %v315, 0
        %v349 = vsel %vm332, %v316, 0
        %v352 = vsel %vm332, %v317, 0
        %v355 = vsel %vm332, %v318, 0
        %v358 = vsel %vm332, %v319, 0
        %v361 = vsel %vm332, %v320, 0
        %v364 = vsel %vm332, %v321, 0
        %v367 = vsel %vm332, %v322, 0
        %v370 = vsel %vm332, %v323, 0
        %v373 = vsel %vm332, %v324, 0
        %v376 = vsel %vm332, %v325, 0
        %v379 = vsel %vm332, %v326, 0
        %vm381 = vcmask 1043456
        %vm382 = vcmask 1044480
        %v383 = vsel %vm381, 4294967295, 65535
        %v384 = vsel %vm382, %v383, 0
        %v386 = vand.u32 %v331, %v384
        %388 = vmatprep.subr.bf16.mxu0 0
        %389 = vmatpush1.bf16.msra.mxu0 %v386
        %390 = vmatprep.subr.bf16.mxu0 0
        %391 = vmatpush1.bf16.msra.mxu0 0
        %392 = vmatprep.subr.bf16.mxu0 0
        %393 = vmatpush1.bf16.msra.mxu0 0
        %394 = vmatprep.subr.bf16.mxu0 0
        %395 = vmatpush1.bf16.msra.mxu0 0
        %396 = vmatprep.subr.bf16.mxu0 0
        %397 = vmatpush1.bf16.msra.mxu0 0
        %398 = vmatprep.subr.bf16.mxu0 0
        %399 = vmatpush1.bf16.msra.mxu0 0
        %400 = vmatprep.subr.bf16.mxu0 0
        %401 = vmatpush1.bf16.msra.mxu0 0
        %402 = vmatprep.subr.bf16.mxu0 0
        %403 = vmatpush1.bf16.msra.mxu0 0
        %404 = vmatprep.subr.bf16.mxu0 0
        %405 = vmatpush1.bf16.msra.mxu0 0
        %406 = vmatprep.subr.bf16.mxu0 0
        %407 = vmatpush1.bf16.msra.mxu0 0
        %408 = vmatprep.subr.bf16.mxu0 0
        %409 = vmatpush1.bf16.msra.mxu0 0
        %410 = vmatprep.subr.bf16.mxu0 0
        %411 = vmatpush1.bf16.msra.mxu0 0
        %412 = vmatprep.subr.bf16.mxu0 0
        %413 = vmatpush1.bf16.msra.mxu0 0
        %414 = vmatprep.subr.bf16.mxu0 0
        %415 = vmatpush1.bf16.msra.mxu0 0
        %416 = vmatprep.subr.bf16.mxu0 0
        %417 = vmatpush1.bf16.msra.mxu0 0
        %418 = vmatprep.subr.bf16.mxu0 0
        %419 = vmatpush1.bf16.msra.mxu0 0
        %420 = vmatprep.mubr.bf16.mxu0 0
        %421 = vmatmul.mubr.bf16.gmra.mrb[0].mxu0 %v334
        %v422 = vpop.f32.mrb[0].mxu0
        %v423 = vadd.f32 %v245, %v422
        %v424 = vpop.f32.mrb[0].mxu0
        %v425 = vpop.f32.mrb[0].mxu0
        %v426 = vadd.f32 %v245, %v425
        %v427 = vpop.f32.mrb[0].mxu0
        %428 = vmatprep.mubr.bf16.mxu0 0
        %429 = vmatmul.mubr.bf16.gmra.mrb[0].mxu0 %v337
        %v430 = vpop.f32.mrb[0].mxu0
        %v431 = vadd.f32 %v245, %v430
        %v432 = vpop.f32.mrb[0].mxu0
        %v433 = vpop.f32.mrb[0].mxu0
        %v434 = vadd.f32 %v245, %v433
        %v435 = vpop.f32.mrb[0].mxu0
        %436 = vmatprep.mubr.bf16.mxu0 0
        %437 = vmatmul.mubr.bf16.gmra.mrb[0].mxu0 %v340
        %v438 = vpop.f32.mrb[0].mxu0
        %v439 = vadd.f32 %v245, %v438
        %v440 = vpop.f32.mrb[0].mxu0
        %v441 = vpop.f32.mrb[0].mxu0
        %v442 = vadd.f32 %v245, %v441
        %v443 = vpop.f32.mrb[0].mxu0
        %444 = vmatprep.mubr.bf16.mxu0 0
        %445 = vmatmul.mubr.bf16.gmra.mrb[0].mxu0 %v343
        %v446 = vpop.f32.mrb[0].mxu0
        %v447 = vadd.f32 %v245, %v446
        %v448 = vpop.f32.mrb[0].mxu0
        %v449 = vpop.f32.mrb[0].mxu0
        %v450 = vadd.f32 %v245, %v449
        %v451 = vpop.f32.mrb[0].mxu0
        %452 = vmatprep.mubr.bf16.mxu0 0
        %453 = vmatmul.mubr.bf16.gmra.mrb[0].mxu0 %v346
        %v454 = vpop.f32.mrb[0].mxu0
        %v455 = vadd.f32 %v245, %v454
        %v456 = vpop.f32.mrb[0].mxu0
        %v457 = vpop.f32.mrb[0].mxu0
        %v458 = vadd.f32 %v245, %v457
        %v459 = vpop.f32.mrb[0].mxu0
        %460 = vmatprep.mubr.bf16.mxu0 0
        %461 = vmatmul.mubr.bf16.gmra.mrb[0].mxu0 %v349
        %v462 = vpop.f32.mrb[0].mxu0
        %v463 = vadd.f32 %v245, %v462
        %v464 = vpop.f32.mrb[0].mxu0
        %v465 = vpop.f32.mrb[0].mxu0
        %v466 = vadd.f32 %v245, %v465
        %v467 = vpop.f32.mrb[0].mxu0
        %468 = vmatprep.mubr.bf16.mxu0 0
        %469 = vmatmul.mubr.bf16.gmra.mrb[0].mxu0 %v352
        %v470 = vpop.f32.mrb[0].mxu0
        %v471 = vadd.f32 %v245, %v470
        %v472 = vpop.f32.mrb[0].mxu0
        %v473 = vpop.f32.mrb[0].mxu0
        %v474 = vadd.f32 %v245, %v473
        %v475 = vpop.f32.mrb[0].mxu0
        %476 = vmatprep.mubr.bf16.mxu0 0
        %477 = vmatmul.mubr.bf16.gmra.mrb[0].mxu0 %v355
        %v478 = vpop.f32.mrb[0].mxu0
        %v479 = vadd.f32 %v245, %v478
        %v480 = vpop.f32.mrb[0].mxu0
        %v481 = vpop.f32.mrb[0].mxu0
        %v482 = vadd.f32 %v245, %v481
        %v483 = vpop.f32.mrb[0].mxu0
        %484 = vmatprep.mubr.bf16.mxu0 0
        %485 = vmatmul.mubr.bf16.gmra.mrb[0].mxu0 %v358
        %v486 = vpop.f32.mrb[0].mxu0
        %v487 = vadd.f32 %v245, %v486
        %v488 = vpop.f32.mrb[0].mxu0
        %v489 = vpop.f32.mrb[0].mxu0
        %v490 = vadd.f32 %v245, %v489
        %v491 = vpop.f32.mrb[0].mxu0
        %492 = vmatprep.mubr.bf16.mxu0 0
        %493 = vmatmul.mubr.bf16.gmra.mrb[0].mxu0 %v361
        %v494 = vpop.f32.mrb[0].mxu0
        %v495 = vadd.f32 %v245, %v494
        %v496 = vpop.f32.mrb[0].mxu0
        %v497 = vpop.f32.mrb[0].mxu0
        %v498 = vadd.f32 %v245, %v497
        %v499 = vpop.f32.mrb[0].mxu0
        %500 = vmatprep.mubr.bf16.mxu0 0
        %501 = vmatmul.mubr.bf16.gmra.mrb[0].mxu0 %v364
        %v502 = vpop.f32.mrb[0].mxu0
        %v503 = vadd.f32 %v245, %v502
        %v504 = vpop.f32.mrb[0].mxu0
        %v505 = vpop.f32.mrb[0].mxu0
        %v506 = vadd.f32 %v245, %v505
        %v507 = vpop.f32.mrb[0].mxu0
        %508 = vmatprep.mubr.bf16.mxu0 0
        %509 = vmatmul.mubr.bf16.gmra.mrb[0].mxu0 %v367
        %v510 = vpop.f32.mrb[0].mxu0
        %v511 = vadd.f32 %v245, %v510
        %v512 = vpop.f32.mrb[0].mxu0
        %v513 = vpop.f32.mrb[0].mxu0
        %v514 = vadd.f32 %v245, %v513
        %v515 = vpop.f32.mrb[0].mxu0
        %516 = vmatprep.mubr.bf16.mxu0 0
        %517 = vmatmul.mubr.bf16.gmra.mrb[0].mxu0 %v370
        %v518 = vpop.f32.mrb[0].mxu0
        %v519 = vadd.f32 %v245, %v518
        %v520 = vpop.f32.mrb[0].mxu0
        %v521 = vpop.f32.mrb[0].mxu0
        %v522 = vadd.f32 %v245, %v521
        %v523 = vpop.f32.mrb[0].mxu0
        %524 = vmatprep.mubr.bf16.mxu0 0
        %525 = vmatmul.mubr.bf16.gmra.mrb[0].mxu0 %v373
        %v526 = vpop.f32.mrb[0].mxu0
        %v527 = vadd.f32 %v245, %v526
        %v528 = vpop.f32.mrb[0].mxu0
        %v529 = vpop.f32.mrb[0].mxu0
        %v530 = vadd.f32 %v245, %v529
        %v531 = vpop.f32.mrb[0].mxu0
        %532 = vmatprep.mubr.bf16.mxu0 0
        %533 = vmatmul.mubr.bf16.gmra.mrb[0].mxu0 %v376
        %v534 = vpop.f32.mrb[0].mxu0
        %v535 = vadd.f32 %v245, %v534
        %v536 = vpop.f32.mrb[0].mxu0
        %v537 = vpop.f32.mrb[0].mxu0
        %v538 = vadd.f32 %v245, %v537
        %v539 = vpop.f32.mrb[0].mxu0
        %540 = vmatprep.mubr.bf16.mxu0 0
        %541 = vmatmul.mubr.bf16.gmra.mrb[0].mxu0 %v379
        %v542 = vpop.f32.mrb[0].mxu0
        %v543 = vadd.f32 %v245, %v542
        %v544 = vpop.f32.mrb[0].mxu0
        %v545 = vpop.f32.mrb[0].mxu0
        %v546 = vadd.f32 %v245, %v545
        %v547 = vpop.f32.mrb[0].mxu0
        %548 = vdwg.mxu0
        %v549 = vmax.f32 %v423, 0.0
        %v550 = vmax.f32 %v426, 0.0
        %v551 = vmax.f32 %v431, 0.0
        %v552 = vmax.f32 %v434, 0.0
        %v553 = vmax.f32 %v439, 0.0
        %v554 = vmax.f32 %v442, 0.0
        %v555 = vmax.f32 %v447, 0.0
        %v556 = vmax.f32 %v450, 0.0
        %v557 = vmax.f32 %v455, 0.0
        %v558 = vmax.f32 %v458, 0.0
        %v559 = vmax.f32 %v463, 0.0
        %v560 = vmax.f32 %v466, 0.0
        %v561 = vmax.f32 %v471, 0.0
        %v562 = vmax.f32 %v474, 0.0
        %v563 = vmax.f32 %v479, 0.0
        %v564 = vmax.f32 %v482, 0.0
        %v565 = vmax.f32 %v487, 0.0
        %v566 = vmax.f32 %v490, 0.0
        %v567 = vmax.f32 %v495, 0.0
        %v568 = vmax.f32 %v498, 0.0
        %v569 = vmax.f32 %v503, 0.0
        %v570 = vmax.f32 %v506, 0.0
        %v571 = vmax.f32 %v511, 0.0
        %v572 = vmax.f32 %v514, 0.0
        %v573 = vmax.f32 %v519, 0.0
        %v574 = vmax.f32 %v522, 0.0
        %v575 = vmax.f32 %v527, 0.0
        %v576 = vmax.f32 %v530, 0.0
        %v577 = vmax.f32 %v535, 0.0
        %v578 = vmax.f32 %v538, 0.0
        %v579 = vmax.f32 %v543, 0.0
        %v580 = vmax.f32 %v546, 0.0
        %vm581 = vcmask 261120
        %582 = vst.msk [vmem:[%s185] sm:$0xff] %vm581, %v549
        %583 = vst.msk [vmem:[%s185 + $0x8] sm:$0xff] %vm581, %v550
        %584 = vst.msk [vmem:[%s185 + $0x10] sm:$0xff] %vm581, %v551
        %585 = vst.msk [vmem:[%s185 + $0x18] sm:$0xff] %vm581, %v552
        %586 = vst.msk [vmem:[%s185 + $0x20] sm:$0xff] %vm581, %v553
        %587 = vst.msk [vmem:[%s185 + $0x28] sm:$0xff] %vm581, %v554
        %588 = vst.msk [vmem:[%s185 + $0x30] sm:$0xff] %vm581, %v555
        %589 = vst.msk [vmem:[%s185 + $0x38] sm:$0xff] %vm581, %v556
        %590 = vst.msk [vmem:[%s185 + $0x40] sm:$0xff] %vm581, %v557
        %591 = vst.msk [vmem:[%s185 + $0x48] sm:$0xff] %vm581, %v558
        %592 = vst.msk [vmem:[%s185 + $0x50] sm:$0xff] %vm581, %v559
        %593 = vst.msk [vmem:[%s185 + $0x58] sm:$0xff] %vm581, %v560
        %594 = vst.msk [vmem:[%s185 + $0x60] sm:$0xff] %vm581, %v561
        %595 = vst.msk [vmem:[%s185 + $0x68] sm:$0xff] %vm581, %v562
        %596 = vst.msk [vmem:[%s185 + $0x70] sm:$0xff] %vm581, %v563
        %597 = vst.msk [vmem:[%s185 + $0x78] sm:$0xff] %vm581, %v564
        %598 = vst.msk [vmem:[%s185 + $0x80] sm:$0xff] %vm581, %v565
        %599 = vst.msk [vmem:[%s185 + $0x88] sm:$0xff] %vm581, %v566
        %600 = vst.msk [vmem:[%s185 + $0x90] sm:$0xff] %vm581, %v567
        %601 = vst.msk [vmem:[%s185 + $0x98] sm:$0xff] %vm581, %v568
        %602 = vst.msk [vmem:[%s185 + $0xa0] sm:$0xff] %vm581, %v569
        %603 = vst.msk [vmem:[%s185 + $0xa8] sm:$0xff] %vm581, %v570
        %604 = vst.msk [vmem:[%s185 + $0xb0] sm:$0xff] %vm581, %v571
        %605 = vst.msk [vmem:[%s185 + $0xb8] sm:$0xff] %vm581, %v572
        %606 = vst.msk [vmem:[%s185 + $0xc0] sm:$0xff] %vm581, %v573
        %607 = vst.msk [vmem:[%s185 + $0xc8] sm:$0xff] %vm581, %v574
        %608 = vst.msk [vmem:[%s185 + $0xd0] sm:$0xff] %vm581, %v575
        %609 = vst.msk [vmem:[%s185 + $0xd8] sm:$0xff] %vm581, %v576
        %610 = vst.msk [vmem:[%s185 + $0xe0] sm:$0xff] %vm581, %v577
        %611 = vst.msk [vmem:[%s185 + $0xe8] sm:$0xff] %vm581, %v578
        %612 = vst.msk [vmem:[%s185 + $0xf0] sm:$0xff] %vm581, %v579
        %613 = vst.msk [vmem:[%s185 + $0xf8] sm:$0xff] %vm581, %v580
        %s614 = sand.u32 %s91, 1
        %s615 = sand.u32 %s91, 1
        %s616 = smul.addr %s615, 256
        %s617 = scalar_lea.vmem [#allocation4], %s616
        // Predicated region
        $region37: #{net_forward.5} parent=31 // pred_check
          %p618 = pneg %p101
        $region38: #{net_forward.5} parent=31 // pred_check_branch
          %620 = sbr.rel (%p618) target = $region40
        $region39: #{net_forward.5} parent=31 // pred_region
          %s621 = smul.u32 32, %s15
          %s622 = ssub.s32 196, %s621
          %p623 = scmp.lt.s32.totalorder %s622, 32
          %s624 = scalar_select %p623, %s622, 32
          %s625 = smul.u32 128, %s624
          %p626 = scmp.ne.s32.totalorder 0, %s625
          %s627 = smul.addr %s621, 8
          %s628 = scalar_lea.vmem %s3, %s627
          // Predicated region
          $region41: #{net_forward.5} parent=39 // pred_check
            %p629 = pneg %p626
          $region42: #{net_forward.5} parent=39 // pred_check_branch
            %631 = sbr.rel (%p629) target = $region44
          $region43: #{net_forward.5} parent=39 // pred_region
            // Predicated region
            $region45: #{net_forward.5} parent=43 // pred_check
              _
            $region46: #{net_forward.5} parent=43 // pred_check_branch
              %633 = sbr.rel (0) target = $region48
            $region47: #{net_forward.5} parent=43 // pred_region
              // Predicated region
              $region67: #{net_forward.5} parent=47 // pred_check
                _
              $region68: #{net_forward.5} parent=47 // pred_check_branch
                %744 = sbr.rel (0) target = $region70
              $region69: #{net_forward.5} parent=47 // pred_region
                %s745 = sshrl.u32 %s624, 5
                // While loop
                $region71: #{net_forward.5} parent=69 // loop_pre_header
                  _
                $region72: #{net_forward.5} parent=69 // loop_header
                  %s747 = sphi 0, %s749
                  %p748 = scmp.ge.s32.totalorder %s747, %s745
                  %s752 = sphi 0, %s821
                  %s753 = sphi %s617, %s824
                  %s754 = sphi %s628, %s825
                $region73: #{net_forward.5} parent=69 // loop_header_branch
                  %751 = sbr.rel (%p748) target = $region77
                $region74: #{net_forward.5} parent=69 // loop_body
                  %v755 = vld [vmem:[%s753] sm:$0xff]
                  %756 = vst [vmem:[%s754] sm:$0xff] %v755
                  %v757 = vld [vmem:[%s753 + $0x8] sm:$0xff]
                  %758 = vst [vmem:[%s754 + $0x8] sm:$0xff] %v757
                  %v759 = vld [vmem:[%s753 + $0x10] sm:$0xff]
                  %760 = vst [vmem:[%s754 + $0x10] sm:$0xff] %v759
                  %v761 = vld [vmem:[%s753 + $0x18] sm:$0xff]
                  %762 = vst [vmem:[%s754 + $0x18] sm:$0xff] %v761
                  %v763 = vld [vmem:[%s753 + $0x20] sm:$0xff]
                  %764 = vst [vmem:[%s754 + $0x20] sm:$0xff] %v763
                  %v765 = vld [vmem:[%s753 + $0x28] sm:$0xff]
                  %766 = vst [vmem:[%s754 + $0x28] sm:$0xff] %v765
                  %v767 = vld [vmem:[%s753 + $0x30] sm:$0xff]
                  %768 = vst [vmem:[%s754 + $0x30] sm:$0xff] %v767
                  %v769 = vld [vmem:[%s753 + $0x38] sm:$0xff]
                  %770 = vst [vmem:[%s754 + $0x38] sm:$0xff] %v769
                  %v771 = vld [vmem:[%s753 + $0x40] sm:$0xff]
                  %772 = vst [vmem:[%s754 + $0x40] sm:$0xff] %v771
                  %v773 = vld [vmem:[%s753 + $0x48] sm:$0xff]
                  %774 = vst [vmem:[%s754 + $0x48] sm:$0xff] %v773
                  %v775 = vld [vmem:[%s753 + $0x50] sm:$0xff]
                  %776 = vst [vmem:[%s754 + $0x50] sm:$0xff] %v775
                  %v777 = vld [vmem:[%s753 + $0x58] sm:$0xff]
                  %778 = vst [vmem:[%s754 + $0x58] sm:$0xff] %v777
                  %v779 = vld [vmem:[%s753 + $0x60] sm:$0xff]
                  %780 = vst [vmem:[%s754 + $0x60] sm:$0xff] %v779
                  %v781 = vld [vmem:[%s753 + $0x68] sm:$0xff]
                  %782 = vst [vmem:[%s754 + $0x68] sm:$0xff] %v781
                  %v783 = vld [vmem:[%s753 + $0x70] sm:$0xff]
                  %784 = vst [vmem:[%s754 + $0x70] sm:$0xff] %v783
                  %v785 = vld [vmem:[%s753 + $0x78] sm:$0xff]
                  %786 = vst [vmem:[%s754 + $0x78] sm:$0xff] %v785
                  %v787 = vld [vmem:[%s753 + $0x80] sm:$0xff]
                  %788 = vst [vmem:[%s754 + $0x80] sm:$0xff] %v787
                  %v789 = vld [vmem:[%s753 + $0x88] sm:$0xff]
                  %790 = vst [vmem:[%s754 + $0x88] sm:$0xff] %v789
                  %v791 = vld [vmem:[%s753 + $0x90] sm:$0xff]
                  %792 = vst [vmem:[%s754 + $0x90] sm:$0xff] %v791
                  %v793 = vld [vmem:[%s753 + $0x98] sm:$0xff]
                  %794 = vst [vmem:[%s754 + $0x98] sm:$0xff] %v793
                  %v795 = vld [vmem:[%s753 + $0xa0] sm:$0xff]
                  %796 = vst [vmem:[%s754 + $0xa0] sm:$0xff] %v795
                  %v797 = vld [vmem:[%s753 + $0xa8] sm:$0xff]
                  %798 = vst [vmem:[%s754 + $0xa8] sm:$0xff] %v797
                  %v799 = vld [vmem:[%s753 + $0xb0] sm:$0xff]
                  %800 = vst [vmem:[%s754 + $0xb0] sm:$0xff] %v799
                  %v801 = vld [vmem:[%s753 + $0xb8] sm:$0xff]
                  %802 = vst [vmem:[%s754 + $0xb8] sm:$0xff] %v801
                  %v803 = vld [vmem:[%s753 + $0xc0] sm:$0xff]
                  %804 = vst [vmem:[%s754 + $0xc0] sm:$0xff] %v803
                  %v805 = vld [vmem:[%s753 + $0xc8] sm:$0xff]
                  %806 = vst [vmem:[%s754 + $0xc8] sm:$0xff] %v805
                  %v807 = vld [vmem:[%s753 + $0xd0] sm:$0xff]
                  %808 = vst [vmem:[%s754 + $0xd0] sm:$0xff] %v807
                  %v809 = vld [vmem:[%s753 + $0xd8] sm:$0xff]
                  %810 = vst [vmem:[%s754 + $0xd8] sm:$0xff] %v809
                  %v811 = vld [vmem:[%s753 + $0xe0] sm:$0xff]
                  %812 = vst [vmem:[%s754 + $0xe0] sm:$0xff] %v811
                  %v813 = vld [vmem:[%s753 + $0xe8] sm:$0xff]
                  %814 = vst [vmem:[%s754 + $0xe8] sm:$0xff] %v813
                  %v815 = vld [vmem:[%s753 + $0xf0] sm:$0xff]
                  %816 = vst [vmem:[%s754 + $0xf0] sm:$0xff] %v815
                  %v817 = vld [vmem:[%s753 + $0xf8] sm:$0xff]
                  %818 = vst [vmem:[%s754 + $0xf8] sm:$0xff] %v817
                  %s819 = sadd.s32 1, %s752
                  %p820 = scmp.ge.s32.totalorder %s819, %s745
                  %s821 = scalar_select %p820, 0, %s819
                  %s822 = smul.u32 %s821, 256
                  %s823 = smul.u32 %s821, 256
                  %s824 = scalar_lea.vmem %s617, %s822 [#allocation4]
                  %s825 = scalar_lea.vmem %s628, %s823
                $region75: #{net_forward.5} parent=69 // loop_footer
                  %s749 = sadd.s32 %s747, 1
                $region76: #{net_forward.5} parent=69 // loop_footer_branch
                  %746 = sbr.rel target = $region72
                $region77: #{net_forward.5} parent=69 // loop_exit
                  _
                %s826 = sshrl.u32 %s624, 5
                %s827 = sand.u32 %s624, 31
                %s828 = smul.u32 %s826, 32
                %s829 = smul.u32 8, %s828
                %s830 = scalar_lea.vmem %s617, %s829 [#allocation4]
                %s831 = smul.u32 8, %s828
                %s832 = scalar_lea.vmem %s628, %s831
                // While loop
                $region78: #{net_forward.5} parent=69 // loop_pre_header
                  _
                $region79: #{net_forward.5} parent=69 // loop_header
                  %s834 = sphi 0, %s836
                  %p835 = scmp.ge.s32.totalorder %s834, %s827
                  %s839 = sphi 0, %s846
                  %s840 = sphi %s830, %s849
                  %s841 = sphi %s832, %s850
                $region80: #{net_forward.5} parent=69 // loop_header_branch
                  %838 = sbr.rel (%p835) target = $region84
                $region81: #{net_forward.5} parent=69 // loop_body
                  %v842 = vld [vmem:[%s840] sm:$0xff]
                  %843 = vst [vmem:[%s841] sm:$0xff] %v842
                  %s844 = sadd.s32 1, %s839
                  %p845 = scmp.ge.s32.totalorder %s844, %s827
                  %s846 = scalar_select %p845, 0, %s844
                  %s847 = smul.u32 %s846, 8
                  %s848 = smul.u32 %s846, 8
                  %s849 = scalar_lea.vmem %s830, %s847 [#allocation4]
                  %s850 = scalar_lea.vmem %s832, %s848
                $region82: #{net_forward.5} parent=69 // loop_footer
                  %s836 = sadd.s32 %s834, 1
                $region83: #{net_forward.5} parent=69 // loop_footer_branch
                  %833 = sbr.rel target = $region79
                $region84: #{net_forward.5} parent=69 // loop_exit
                  _
              $region70: #{net_forward.5} parent=47 // pred_fallthru
                _
              // Predicated region
              $region85: #{net_forward.5} parent=47 // pred_check
                _
              $region86: #{net_forward.5} parent=47 // pred_check_branch
                %852 = sbr.rel target = $region88
              $region87: #{net_forward.5} parent=47 // pred_region
                _
              $region88: #{net_forward.5} parent=47 // pred_fallthru
                _
            $region48: #{net_forward.5} parent=43 // pred_fallthru
              _
            // Predicated region
            $region49: #{net_forward.5} parent=43 // pred_check
              _
            $region50: #{net_forward.5} parent=43 // pred_check_branch
              %635 = sbr.rel target = $region52
            $region51: #{net_forward.5} parent=43 // pred_region
              %s637 = sshrl.u32 %s624, 5
              // While loop
              $region53: #{net_forward.5} parent=51 // loop_pre_header
                _
              $region54: #{net_forward.5} parent=51 // loop_header
                %s639 = sphi 0, %s641
                %p640 = scmp.ge.s32.totalorder %s639, %s637
                %s644 = sphi 0, %s713
                %s645 = sphi %s617, %s716
                %s646 = sphi %s628, %s717
              $region55: #{net_forward.5} parent=51 // loop_header_branch
                %643 = sbr.rel (%p640) target = $region59
              $region56: #{net_forward.5} parent=51 // loop_body
                %v647 = vld [vmem:[%s645] sm:$0xff]
                %648 = vst [vmem:[%s646] sm:$0xff] %v647
                %v649 = vld [vmem:[%s645 + $0x8] sm:$0xff]
                %650 = vst [vmem:[%s646 + $0x8] sm:$0xff] %v649
                %v651 = vld [vmem:[%s645 + $0x10] sm:$0xff]
                %652 = vst [vmem:[%s646 + $0x10] sm:$0xff] %v651
                %v653 = vld [vmem:[%s645 + $0x18] sm:$0xff]
                %654 = vst [vmem:[%s646 + $0x18] sm:$0xff] %v653
                %v655 = vld [vmem:[%s645 + $0x20] sm:$0xff]
                %656 = vst [vmem:[%s646 + $0x20] sm:$0xff] %v655
                %v657 = vld [vmem:[%s645 + $0x28] sm:$0xff]
                %658 = vst [vmem:[%s646 + $0x28] sm:$0xff] %v657
                %v659 = vld [vmem:[%s645 + $0x30] sm:$0xff]
                %660 = vst [vmem:[%s646 + $0x30] sm:$0xff] %v659
                %v661 = vld [vmem:[%s645 + $0x38] sm:$0xff]
                %662 = vst [vmem:[%s646 + $0x38] sm:$0xff] %v661
                %v663 = vld [vmem:[%s645 + $0x40] sm:$0xff]
                %664 = vst [vmem:[%s646 + $0x40] sm:$0xff] %v663
                %v665 = vld [vmem:[%s645 + $0x48] sm:$0xff]
                %666 = vst [vmem:[%s646 + $0x48] sm:$0xff] %v665
                %v667 = vld [vmem:[%s645 + $0x50] sm:$0xff]
                %668 = vst [vmem:[%s646 + $0x50] sm:$0xff] %v667
                %v669 = vld [vmem:[%s645 + $0x58] sm:$0xff]
                %670 = vst [vmem:[%s646 + $0x58] sm:$0xff] %v669
                %v671 = vld [vmem:[%s645 + $0x60] sm:$0xff]
                %672 = vst [vmem:[%s646 + $0x60] sm:$0xff] %v671
                %v673 = vld [vmem:[%s645 + $0x68] sm:$0xff]
                %674 = vst [vmem:[%s646 + $0x68] sm:$0xff] %v673
                %v675 = vld [vmem:[%s645 + $0x70] sm:$0xff]
                %676 = vst [vmem:[%s646 + $0x70] sm:$0xff] %v675
                %v677 = vld [vmem:[%s645 + $0x78] sm:$0xff]
                %678 = vst [vmem:[%s646 + $0x78] sm:$0xff] %v677
                %v679 = vld [vmem:[%s645 + $0x80] sm:$0xff]
                %680 = vst [vmem:[%s646 + $0x80] sm:$0xff] %v679
                %v681 = vld [vmem:[%s645 + $0x88] sm:$0xff]
                %682 = vst [vmem:[%s646 + $0x88] sm:$0xff] %v681
                %v683 = vld [vmem:[%s645 + $0x90] sm:$0xff]
                %684 = vst [vmem:[%s646 + $0x90] sm:$0xff] %v683
                %v685 = vld [vmem:[%s645 + $0x98] sm:$0xff]
                %686 = vst [vmem:[%s646 + $0x98] sm:$0xff] %v685
                %v687 = vld [vmem:[%s645 + $0xa0] sm:$0xff]
                %688 = vst [vmem:[%s646 + $0xa0] sm:$0xff] %v687
                %v689 = vld [vmem:[%s645 + $0xa8] sm:$0xff]
                %690 = vst [vmem:[%s646 + $0xa8] sm:$0xff] %v689
                %v691 = vld [vmem:[%s645 + $0xb0] sm:$0xff]
                %692 = vst [vmem:[%s646 + $0xb0] sm:$0xff] %v691
                %v693 = vld [vmem:[%s645 + $0xb8] sm:$0xff]
                %694 = vst [vmem:[%s646 + $0xb8] sm:$0xff] %v693
                %v695 = vld [vmem:[%s645 + $0xc0] sm:$0xff]
                %696 = vst [vmem:[%s646 + $0xc0] sm:$0xff] %v695
                %v697 = vld [vmem:[%s645 + $0xc8] sm:$0xff]
                %698 = vst [vmem:[%s646 + $0xc8] sm:$0xff] %v697
                %v699 = vld [vmem:[%s645 + $0xd0] sm:$0xff]
                %700 = vst [vmem:[%s646 + $0xd0] sm:$0xff] %v699
                %v701 = vld [vmem:[%s645 + $0xd8] sm:$0xff]
                %702 = vst [vmem:[%s646 + $0xd8] sm:$0xff] %v701
                %v703 = vld [vmem:[%s645 + $0xe0] sm:$0xff]
                %704 = vst [vmem:[%s646 + $0xe0] sm:$0xff] %v703
                %v705 = vld [vmem:[%s645 + $0xe8] sm:$0xff]
                %706 = vst [vmem:[%s646 + $0xe8] sm:$0xff] %v705
                %v707 = vld [vmem:[%s645 + $0xf0] sm:$0xff]
                %708 = vst [vmem:[%s646 + $0xf0] sm:$0xff] %v707
                %v709 = vld [vmem:[%s645 + $0xf8] sm:$0xff]
                %710 = vst [vmem:[%s646 + $0xf8] sm:$0xff] %v709
                %s711 = sadd.s32 1, %s644
                %p712 = scmp.ge.s32.totalorder %s711, %s637
                %s713 = scalar_select %p712, 0, %s711
                %s714 = smul.u32 %s713, 256
                %s715 = smul.u32 %s713, 256
                %s716 = scalar_lea.vmem %s617, %s714 [#allocation4]
                %s717 = scalar_lea.vmem %s628, %s715
              $region57: #{net_forward.5} parent=51 // loop_footer
                %s641 = sadd.s32 %s639, 1
              $region58: #{net_forward.5} parent=51 // loop_footer_branch
                %638 = sbr.rel target = $region54
              $region59: #{net_forward.5} parent=51 // loop_exit
                _
              %s718 = sshrl.u32 %s624, 5
              %s719 = sand.u32 %s624, 31
              %s720 = smul.u32 %s718, 32
              %s721 = smul.u32 8, %s720
              %s722 = scalar_lea.vmem %s617, %s721 [#allocation4]
              %s723 = smul.u32 8, %s720
              %s724 = scalar_lea.vmem %s628, %s723
              // While loop
              $region60: #{net_forward.5} parent=51 // loop_pre_header
                _
              $region61: #{net_forward.5} parent=51 // loop_header
                %s726 = sphi 0, %s728
                %p727 = scmp.ge.s32.totalorder %s726, %s719
                %s731 = sphi 0, %s738
                %s732 = sphi %s722, %s741
                %s733 = sphi %s724, %s742
              $region62: #{net_forward.5} parent=51 // loop_header_branch
                %730 = sbr.rel (%p727) target = $region66
              $region63: #{net_forward.5} parent=51 // loop_body
                %v734 = vld [vmem:[%s732] sm:$0xff]
                %735 = vst [vmem:[%s733] sm:$0xff] %v734
                %s736 = sadd.s32 1, %s731
                %p737 = scmp.ge.s32.totalorder %s736, %s719
                %s738 = scalar_select %p737, 0, %s736
                %s739 = smul.u32 %s738, 8
                %s740 = smul.u32 %s738, 8
                %s741 = scalar_lea.vmem %s722, %s739 [#allocation4]
                %s742 = scalar_lea.vmem %s724, %s740
              $region64: #{net_forward.5} parent=51 // loop_footer
                %s728 = sadd.s32 %s726, 1
              $region65: #{net_forward.5} parent=51 // loop_footer_branch
                %725 = sbr.rel target = $region61
              $region66: #{net_forward.5} parent=51 // loop_exit
                _
            $region52: #{net_forward.5} parent=43 // pred_fallthru
              _
          $region44: #{net_forward.5} parent=39 // pred_fallthru
            _
          %853 = vnop
        $region40: #{net_forward.5} parent=31 // pred_fallthru
          _
      $region32: #{net_forward.5} parent=5 // pred_fallthru
        _
      %p854 = scmp.le.s32.totalorder 2, %s10
      // Predicated region
      $region89: #{net_forward.5} parent=5 // pred_check
        %p855 = pneg %p854
      $region90: #{net_forward.5} parent=5 // pred_check_branch
        %857 = sbr.rel (%p855) target = $region92
      $region91: #{net_forward.5} parent=5 // pred_region
        %s858 = ssub.s32 %s10, 2
        // Predicated region
        $region93: #{net_forward.5} parent=91 // pred_check
          %p859 = pneg %p107
        $region94: #{net_forward.5} parent=91 // pred_check_branch
          %861 = sbr.rel (%p859) target = $region96
        $region95: #{net_forward.5} parent=91 // pred_region
          %s862 = sand.u32 %s92, 1
          %s863 = sand.u32 %s92, 1
          %s864 = smul.addr %s863, 256
          %s865 = scalar_lea.vmem [#allocation4], %s864
        $region96: #{net_forward.5} parent=91 // pred_fallthru
          _
      $region92: #{net_forward.5} parent=5 // pred_fallthru
        _
    $region6: #{net_forward.5} parent=1 // loop_footer
      %s14 = sadd.s32 1, %s10
    $region7: #{net_forward.5} parent=1 // loop_footer_branch
      %9 = sbr.rel target = $region3
    $region8: #{net_forward.5} parent=1 // loop_exit
      _
    %866 = vsyncpa [#allocation3], 1
    %s867 = scalar_lea.sflag [#allocation3], 1
    %868 = vsyncpa %s867, 1

// kernel: net_forward.8
$region0: #{net_forward.8}
  #allocation0 [shape = 'u32[]', space=smem, size = 0x4, offset = 0x4, fixed_abs, tag = 'smem constant byte address 0x4 - core index']
  #allocation1 [shape = 'u32[144,128]{1,0:T(1,128)}', space=vmem, size = 0x12000, scoped, tag = 'internal scratch']
  %s0 = inlined_call_operand.vmem [shape: f32[14,2,7,128], index: 0, kind: input, shape index: {}]
  %s1 = inlined_call_operand.vmem [shape: f32[14,7,64], index: 1, kind: output, shape index: {}]
  %s2 = sld [smem:[#allocation0]]
  $region14: #{net_forward.8} parent=0
    _
  %s4 = ssub.s32 1, %s2
  %s5 = scalar_select 0, %s4, %s2
  // Predicated region
  $region2: #{net_forward.8} parent=0 // pred_check
    _
  $region3: #{net_forward.8} parent=0 // pred_check_branch
    %7 = sbr.rel (0) target = $region5
  $region4: #{net_forward.8} parent=0 // pred_region
    _
  $region5: #{net_forward.8} parent=0 // pred_fallthru
    _
  %v8 = vld [vmem:[%s0] sm:$0x7f]
  %v9 = vld [vmem:[%s0 + $0x8] sm:$0x7f]
  %v10 = vld [vmem:[%s0 + $0x10] sm:$0x7f]
  %v11 = vld [vmem:[%s0 + $0x18] sm:$0x7f]
  %v12 = vld [vmem:[%s0 + $0x20] sm:$0x7f]
  %v13 = vld [vmem:[%s0 + $0x28] sm:$0x7f]
  %v14 = vld [vmem:[%s0 + $0x30] sm:$0x7f]
  %v15 = vld [vmem:[%s0 + $0x38] sm:$0x7f]
  %v16 = vld [vmem:[%s0 + $0x40] sm:$0x7f]
  %v17 = vld [vmem:[%s0 + $0x48] sm:$0x7f]
  %v18 = vld [vmem:[%s0 + $0x50] sm:$0x7f]
  %v19 = vld [vmem:[%s0 + $0x58] sm:$0x7f]
  %v20 = vld [vmem:[%s0 + $0x60] sm:$0x7f]
  %v21 = vld [vmem:[%s0 + $0x68] sm:$0x7f]
  %v22 = vld [vmem:[%s0 + $0x70] sm:$0x7f]
  %v23 = vld [vmem:[%s0 + $0x78] sm:$0x7f]
  %v24 = vld [vmem:[%s0 + $0x80] sm:$0x7f]
  %v25 = vld [vmem:[%s0 + $0x88] sm:$0x7f]
  %v26 = vld [vmem:[%s0 + $0x90] sm:$0x7f]
  %v27 = vld [vmem:[%s0 + $0x98] sm:$0x7f]
  %v28 = vld [vmem:[%s0 + $0xa0] sm:$0x7f]
  %v29 = vld [vmem:[%s0 + $0xa8] sm:$0x7f]
  %v30 = vld [vmem:[%s0 + $0xb0] sm:$0x7f]
  %v31 = vld [vmem:[%s0 + $0xb8] sm:$0x7f]
  %v32 = vld [vmem:[%s0 + $0xc0] sm:$0x7f]
  %v33 = vld [vmem:[%s0 + $0xc8] sm:$0x7f]
  %v34 = vld [vmem:[%s0 + $0xd0] sm:$0x7f]
  %v35 = vld [vmem:[%s0 + $0xd8] sm:$0x7f]
  %v36 = vmax.f32 %v8, %v9
  %v37 = vmax.f32 %v10, %v11
  %v38 = vmax.f32 %v12, %v13
  %v39 = vmax.f32 %v14, %v15
  %v40 = vmax.f32 %v16, %v17
  %v41 = vmax.f32 %v18, %v19
  %v42 = vmax.f32 %v20, %v21
  %v43 = vmax.f32 %v22, %v23
  %v44 = vmax.f32 %v24, %v25
  %v45 = vmax.f32 %v26, %v27
  %v46 = vmax.f32 %v28, %v29
  %v47 = vmax.f32 %v30, %v31
  %v48 = vmax.f32 %v32, %v33
  %v49 = vmax.f32 %v34, %v35
  %64 = vrot.lane.b32.xlu0 %v36, 64
  %v65 = vpop.permute.xlu0 %64
  %66 = vrot.lane.b32.xlu0 %v37, 64
  %v67 = vpop.permute.xlu0 %66
  %68 = vrot.lane.b32.xlu0 %v38, 64
  %v69 = vpop.permute.xlu0 %68
  %70 = vrot.lane.b32.xlu0 %v39, 64
  %v71 = vpop.permute.xlu0 %70
  %72 = vrot.lane.b32.xlu0 %v40, 64
  %v73 = vpop.permute.xlu0 %72
  %74 = vrot.lane.b32.xlu0 %v41, 64
  %v75 = vpop.permute.xlu0 %74
  %76 = vrot.lane.b32.xlu0 %v42, 64
  %v77 = vpop.permute.xlu0 %76
  %78 = vrot.lane.b32.xlu0 %v43, 64
  %v79 = vpop.permute.xlu0 %78
  %80 = vrot.lane.b32.xlu0 %v44, 64
  %v81 = vpop.permute.xlu0 %80
  %82 = vrot.lane.b32.xlu0 %v45, 64
  %v83 = vpop.permute.xlu0 %82
  %84 = vrot.lane.b32.xlu0 %v46, 64
  %v85 = vpop.permute.xlu0 %84
  %86 = vrot.lane.b32.xlu0 %v47, 64
  %v87 = vpop.permute.xlu0 %86
  %88 = vrot.lane.b32.xlu0 %v48, 64
  %v89 = vpop.permute.xlu0 %88
  %90 = vrot.lane.b32.xlu0 %v49, 64
  %v91 = vpop.permute.xlu0 %90
  %v106 = vmax.f32 %v36, %v65
  %v107 = vmax.f32 %v37, %v67
  %v108 = vmax.f32 %v38, %v69
  %v109 = vmax.f32 %v39, %v71
  %v110 = vmax.f32 %v40, %v73
  %v111 = vmax.f32 %v41, %v75
  %v112 = vmax.f32 %v42, %v77
  %v113 = vmax.f32 %v43, %v79
  %v114 = vmax.f32 %v44, %v81
  %v115 = vmax.f32 %v45, %v83
  %v116 = vmax.f32 %v46, %v85
  %v117 = vmax.f32 %v47, %v87
  %v118 = vmax.f32 %v48, %v89
  %v119 = vmax.f32 %v49, %v91
  %vm120 = vcmask 522240
  %121 = vst.msk [vmem:[%s1] sm:$0x7f] %vm120, %v106
  %122 = vst.msk [vmem:[%s1 + $0x8] sm:$0x7f] %vm120, %v107
  %123 = vst.msk [vmem:[%s1 + $0x10] sm:$0x7f] %vm120, %v108
  %124 = vst.msk [vmem:[%s1 + $0x18] sm:$0x7f] %vm120, %v109
  %125 = vst.msk [vmem:[%s1 + $0x20] sm:$0x7f] %vm120, %v110
  %126 = vst.msk [vmem:[%s1 + $0x28] sm:$0x7f] %vm120, %v111
  %127 = vst.msk [vmem:[%s1 + $0x30] sm:$0x7f] %vm120, %v112
  %128 = vst.msk [vmem:[%s1 + $0x38] sm:$0x7f] %vm120, %v113
  %129 = vst.msk [vmem:[%s1 + $0x40] sm:$0x7f] %vm120, %v114
  %130 = vst.msk [vmem:[%s1 + $0x48] sm:$0x7f] %vm120, %v115
  %131 = vst.msk [vmem:[%s1 + $0x50] sm:$0x7f] %vm120, %v116
  %132 = vst.msk [vmem:[%s1 + $0x58] sm:$0x7f] %vm120, %v117
  %133 = vst.msk [vmem:[%s1 + $0x60] sm:$0x7f] %vm120, %v118
  %134 = vst.msk [vmem:[%s1 + $0x68] sm:$0x7f] %vm120, %v119
  // Predicated region
  $region6: #{net_forward.8} parent=0 // pred_check
    _
  $region7: #{net_forward.8} parent=0 // pred_check_branch
    %136 = sbr.rel (0) target = $region9
  $region8: #{net_forward.8} parent=0 // pred_region
    _
  $region9: #{net_forward.8} parent=0 // pred_fallthru
    _
  // Predicated region
  $region10: #{net_forward.8} parent=0 // pred_check
    _
  $region11: #{net_forward.8} parent=0 // pred_check_branch
    %138 = sbr.rel (0) target = $region13
  $region12: #{net_forward.8} parent=0 // pred_region
    _
  $region13: #{net_forward.8} parent=0 // pred_fallthru
    _

// kernel: net_forward.7
$region0: #{net_forward.7}
  #allocation0 [shape = 'u32[]', space=smem, size = 0x4, offset = 0x4, fixed_abs, tag = 'smem constant byte address 0x4 - core index']
  #allocation1 [shape = 'u32[144,128]{1,0:T(1,128)}', space=vmem, size = 0x12000, scoped, tag = 'internal scratch']
  %s0 = inlined_call_operand.vmem [shape: bf16[392,288], index: 0, kind: input, shape index: {}]
  %s1 = inlined_call_operand.vmem [shape: bf16[288,64], index: 1, kind: input, shape index: {}]
  %s2 = inlined_call_operand.vmem [shape: f32[1,64], index: 2, kind: input, shape index: {}]
  %s3 = inlined_call_operand.vmem [shape: f32[392,64], index: 3, kind: output, shape index: {}]
  %s4 = sld [smem:[#allocation0]]
  $region93: #{net_forward.7} parent=0
    _
  %s6 = ssub.s32 1, %s4
  %s7 = scalar_select 0, %s6, %s4
  $region1: #{net_forward.7} parent=0
    #allocation2 [shape = 'u8[262144]{0}', space=vmem, size = 0x40000, scoped, tag = 'output window, operand 0']
    loop: start=0, step=1, limit=4
    $region2: #{net_forward.7} parent=1 // loop_pre_header
      _
    $region3: #{net_forward.7} parent=1 // loop_header
      %s9 = sphi 0, %s13
      %p10 = scmp.ge.s32.totalorder %s9, 4
      %s19 = sphi 0, %s21
      %s22 = sphi 0, %s19
      %s23 = sphi 0, %s22
      %s39 = sphi 0, %s23
      %s43 = sphi 0, %s43
      %s45 = sphi 0, %s43
      %s46 = sphi 0, %s45
      %s60 = sphi 0, %s46
      %s64 = sphi 0, %s64
      %s66 = sphi 0, %s64
      %s67 = sphi 0, %s66
      %s81 = sphi 0, %s67
      %s87 = sphi 0, %s89
      %s90 = sphi 0, %s87
      %s91 = sphi 0, %s90
      %s107 = sphi 0, %s91
    $region4: #{net_forward.7} parent=1 // loop_header_branch
      %12 = sbr.rel (%p10) target = $region8
    $region5: #{net_forward.7} parent=1 // loop_body
      %s14 = ssub.s32 %s9, 1
      %s15 = ssub.s32 %s9, 2
      %s16 = sadd.s32 %s9, 1
      %s17 = ssub.s32 %s9, %s16
      %p18 = scmp.eq.s32.totalorder %s17, 0
      %s20 = sadd.s32 %s19, 1
      %s21 = scalar_select %p18, %s19, %s20
      %p24 = pneg %p18
      %p25 = scmp.eq.s32.totalorder %s9, 1
      %p26 = por %p24, %p25
      %p27 = scmp.ne.s32.totalorder %s19, %s22
      %p28 = scmp.eq.s32.totalorder %s9, 0
      %p29 = por %p27, %p28
      %p30 = scmp.ne.s32.totalorder %s19, %s22
      %p31 = scmp.eq.s32.totalorder %s14, 1
      %p32 = por %p30, %p31
      %p33 = scmp.ne.s32.totalorder %s22, %s23
      %p34 = scmp.eq.s32.totalorder %s14, 0
      %p35 = por %p33, %p34
      %p36 = scmp.ne.s32.totalorder %s22, %s23
      %p37 = scmp.eq.s32.totalorder %s15, 1
      %p38 = por %p36, %p37
      %p40 = scmp.ne.s32.totalorder %s23, %s39
      %p41 = scmp.eq.s32.totalorder %s15, 0
      %p42 = por %p40, %p41
      %s44 = sadd.s32 %s43, 1
      %p47 = scmp.eq.s32.totalorder %s9, 1
      %p48 = scmp.ne.s32.totalorder %s43, %s45
      %p49 = scmp.eq.s32.totalorder %s9, 0
      %p50 = por %p48, %p49
      %p51 = scmp.ne.s32.totalorder %s43, %s45
      %p52 = scmp.eq.s32.totalorder %s14, 1
      %p53 = por %p51, %p52
      %p54 = scmp.ne.s32.totalorder %s45, %s46
      %p55 = scmp.eq.s32.totalorder %s14, 0
      %p56 = por %p54, %p55
      %p57 = scmp.ne.s32.totalorder %s45, %s46
      %p58 = scmp.eq.s32.totalorder %s15, 1
      %p59 = por %p57, %p58
      %p61 = scmp.ne.s32.totalorder %s46, %s60
      %p62 = scmp.eq.s32.totalorder %s15, 0
      %p63 = por %p61, %p62
      %s65 = sadd.s32 %s64, 1
      %p68 = scmp.eq.s32.totalorder %s9, 1
      %p69 = scmp.ne.s32.totalorder %s64, %s66
      %p70 = scmp.eq.s32.totalorder %s9, 0
      %p71 = por %p69, %p70
      %p72 = scmp.ne.s32.totalorder %s64, %s66
      %p73 = scmp.eq.s32.totalorder %s14, 1
      %p74 = por %p72, %p73
      %p75 = scmp.ne.s32.totalorder %s66, %s67
      %p76 = scmp.eq.s32.totalorder %s14, 0
      %p77 = por %p75, %p76
      %p78 = scmp.ne.s32.totalorder %s66, %s67
      %p79 = scmp.eq.s32.totalorder %s15, 1
      %p80 = por %p78, %p79
      %p82 = scmp.ne.s32.totalorder %s67, %s81
      %p83 = scmp.eq.s32.totalorder %s15, 0
      %p84 = por %p82, %p83
      %s85 = ssub.s32 %s9, %s16
      %p86 = scmp.eq.s32.totalorder %s85, 0
      %s88 = sadd.s32 %s87, 1
      %s89 = scalar_select %p86, %s87, %s88
      %p92 = pneg %p86
      %p93 = scmp.eq.s32.totalorder %s9, 1
      %p94 = por %p92, %p93
      %p95 = scmp.ne.s32.totalorder %s87, %s90
      %p96 = scmp.eq.s32.totalorder %s9, 0
      %p97 = por %p95, %p96
      %p98 = scmp.ne.s32.totalorder %s87, %s90
      %p99 = scmp.eq.s32.totalorder %s14, 1
      %p100 = por %p98, %p99
      %p101 = scmp.ne.s32.totalorder %s90, %s91
      %p102 = scmp.eq.s32.totalorder %s14, 0
      %p103 = por %p101, %p102
      %p104 = scmp.ne.s32.totalorder %s90, %s91
      %p105 = scmp.eq.s32.totalorder %s15, 1
      %p106 = por %p104, %p105
      %p108 = scmp.ne.s32.totalorder %s91, %s107
      %p109 = scmp.eq.s32.totalorder %s15, 0
      %p110 = por %p108, %p109
      %p111 = scmp.le.s32.totalorder 1, %s9
      %p112 = scmp.lt.s32.totalorder %s9, 3
      %p113 = pnand %p111, %p112
      %p114 = pneg %p113
      // Predicated region
      $region9: #{net_forward.7} parent=5 // pred_check
        _
      $region10: #{net_forward.7} parent=5 // pred_check_branch
        %116 = sbr.rel (%p113) target = $region12
      $region11: #{net_forward.7} parent=5 // pred_region
        %s117 = ssub.s32 %s9, 1
        // Predicated region
        $region13: #{net_forward.7} parent=11 // pred_check
          %p118 = pneg %p56
        $region14: #{net_forward.7} parent=11 // pred_check_branch
          %120 = sbr.rel (%p118) target = $region16
        $region15: #{net_forward.7} parent=11 // pred_region
          _
        $region16: #{net_forward.7} parent=11 // pred_fallthru
          _
        // Predicated region
        $region17: #{net_forward.7} parent=11 // pred_check
          %p121 = pneg %p77
        $region18: #{net_forward.7} parent=11 // pred_check_branch
          %123 = sbr.rel (%p121) target = $region20
        $region19: #{net_forward.7} parent=11 // pred_region
          _
        $region20: #{net_forward.7} parent=11 // pred_fallthru
          _
      $region12: #{net_forward.7} parent=5 // pred_fallthru
        _
      %p124 = scmp.lt.s32.totalorder %s9, 2
      // Predicated region
      $region21: #{net_forward.7} parent=5 // pred_check
        %p125 = pneg %p124
      $region22: #{net_forward.7} parent=5 // pred_check_branch
        %127 = sbr.rel (%p125) target = $region24
      $region23: #{net_forward.7} parent=5 // pred_region
        // Predicated region
        $region25: #{net_forward.7} parent=23 // pred_check
          %p128 = pneg %p29
        $region26: #{net_forward.7} parent=23 // pred_check_branch
          %130 = sbr.rel (%p128) target = $region28
        $region27: #{net_forward.7} parent=23 // pred_region
          %s131 = smul.u32 32, %s9
          %s132 = ssub.s32 49, %s131
          %p133 = scmp.lt.s32.totalorder %s132, 32
          %s134 = scalar_select %p133, %s132, 32
          %s135 = smul.u32 64, %s134
          %s136 = smul.u32 %s135, 3
          %p137 = scmp.lt.s32.totalorder %s131, 48
          %s138 = scalar_select %p137, %s131, 48
          %s139 = smul.addr %s138, 3
          %s140 = smul.addr %s139, 4
          %s141 = scalar_lea.vmem %s0, %s140
          %s142 = smul.u32 32, %s9
          %s143 = ssub.s32 49, %s142
          %p144 = scmp.lt.s32.totalorder %s143, 32
          %s145 = scalar_select %p144, %s143, 32
          %s146 = smul.u32 64, %s145
          %s147 = smul.u32 %s146, 3
        $region28: #{net_forward.7} parent=23 // pred_fallthru
          _
      $region24: #{net_forward.7} parent=5 // pred_fallthru
        _
      %p148 = scmp.le.s32.totalorder 1, %s9
      %p149 = scmp.lt.s32.totalorder %s9, 3
      %p150 = pnand %p148, %p149
      %p151 = pneg %p150
      // Predicated region
      $region29: #{net_forward.7} parent=5 // pred_check
        _
      $region30: #{net_forward.7} parent=5 // pred_check_branch
        %153 = sbr.rel (%p150) target = $region32
      $region31: #{net_forward.7} parent=5 // pred_region
        %s154 = ssub.s32 %s9, 1
        %s155 = smul.u32 32, %s14
        %s156 = ssub.s32 49, %s155
        %p157 = scmp.lt.s32.totalorder %s156, 32
        %s158 = scalar_select %p157, %s156, 32
        %s159 = smul.u32 64, %s158
        %s160 = smul.u32 %s159, 3
        %p161 = scmp.lt.s32.totalorder %s155, 48
        %s162 = scalar_select %p161, %s155, 48
        %s163 = smul.addr %s162, 3
        %s164 = smul.addr %s163, 4
        %s165 = scalar_lea.vmem %s0, %s164
        %p166 = pneg %p35
        %p167 = pneg %p32
        %p168 = pneg %p56
        %p169 = pneg %p53
        %p170 = pneg %p77
        %p171 = pneg %p74
        %p172 = pneg %p103
        %p173 = pneg %p100
        %s174 = sand.u32 %s90, 1
        %s175 = sand.u32 %s90, 1
        %s176 = smul.addr %s175, 256
        %s177 = scalar_lea.vmem [#allocation2], %s176
        %s178 = smul.u32 32, %s14
        %s179 = ssub.s32 49, %s178
        %p180 = scmp.lt.s32.totalorder %s179, 32
        %s181 = scalar_select %p180, %s179, 32
        %s182 = smul.u32 64, %s181
        %s183 = smul.u32 %s182, 3
        %p184 = scmp.lt.s32.totalorder %s178, 48
        %s185 = scalar_select %p184, %s178, 48
        %s186 = smul.addr %s185, 3
        %s187 = smul.addr %s186, 4
        %s188 = scalar_lea.vmem %s0, %s187
        %s189 = smul.u32 32, %s14
        %s190 = ssub.s32 49, %s189
        %p191 = scmp.lt.s32.totalorder %s190, 32
        %s192 = scalar_select %p191, %s190, 32
        %s193 = smul.u32 64, %s192
        %s194 = smul.u32 %s193, 3
        %s195 = smul.u32 32, %s14
        %s196 = ssub.s32 49, %s195
        %p197 = scmp.lt.s32.totalorder %s196, 32
        %s198 = scalar_select %p197, %s196, 32
        %s199 = smul.u32 128, %s198
        %v201 = vld [vmem:[%s188] sm:$0xff]
        %v202 = vld [vmem:[%s188 + $0x8] sm:$0xf]
        %v203 = vld [vmem:[%s188 + $0xc] sm:$0xff]
        %v204 = vld [vmem:[%s188 + $0x14] sm:$0xf]
        %v205 = vld [vmem:[%s188 + $0x18] sm:$0xff]
        %v206 = vld [vmem:[%s188 + $0x20] sm:$0xf]
        %v207 = vld [vmem:[%s188 + $0x24] sm:$0xff]
        %v208 = vld [vmem:[%s188 + $0x2c] sm:$0xf]
        %v209 = vld [vmem:[%s188 + $0x30] sm:$0xff]
        %v210 = vld [vmem:[%s188 + $0x38] sm:$0xf]
        %v211 = vld [vmem:[%s188 + $0x3c] sm:$0xff]
        %v212 = vld [vmem:[%s188 + $0x44] sm:$0xf]
        %v213 = vld [vmem:[%s188 + $0x48] sm:$0xff]
        %v214 = vld [vmem:[%s188 + $0x50] sm:$0xf]
        %v215 = vld [vmem:[%s188 + $0x54] sm:$0xff]
        %v216 = vld [vmem:[%s188 + $0x5c] sm:$0xf]
        %v217 = vld [vmem:[%s188 + $0x60] sm:$0xff]
        %v218 = vld [vmem:[%s188 + $0x68] sm:$0xf]
        %v219 = vld [vmem:[%s188 + $0x6c] sm:$0xff]
        %v220 = vld [vmem:[%s188 + $0x74] sm:$0xf]
        %v221 = vld [vmem:[%s188 + $0x78] sm:$0xff]
        %v222 = vld [vmem:[%s188 + $0x80] sm:$0xf]
        %v223 = vld [vmem:[%s188 + $0x84] sm:$0xff]
        %v224 = vld [vmem:[%s188 + $0x8c] sm:$0xf]
        %v225 = vld [vmem:[%s188 + $0x90] sm:$0xff]
        %v226 = vld [vmem:[%s188 + $0x98] sm:$0xf]
        %v227 = vld [vmem:[%s188 + $0x9c] sm:$0xff]
        %v228 = vld [vmem:[%s188 + $0xa4] sm:$0xf]
        %v229 = vld [vmem:[%s188 + $0xa8] sm:$0xff]
        %v230 = vld [vmem:[%s188 + $0xb0] sm:$0xf]
        %v231 = vld [vmem:[%s188 + $0xb4] sm:$0xff]
        %v232 = vld [vmem:[%s188 + $0xbc] sm:$0xf]
        %v233 = vld [vmem:[%s188 + $0xc0] sm:$0xff]
        %v234 = vld [vmem:[%s188 + $0xc8] sm:$0xf]
        %v235 = vld [vmem:[%s188 + $0xcc] sm:$0xff]
        %v236 = vld [vmem:[%s188 + $0xd4] sm:$0xf]
        %v237 = vld [vmem:[%s188 + $0xd8] sm:$0xff]
        %v238 = vld [vmem:[%s188 + $0xe0] sm:$0xf]
        %v239 = vld [vmem:[%s188 + $0xe4] sm:$0xff]
        %v240 = vld [vmem:[%s188 + $0xec] sm:$0xf]
        %v241 = vld [vmem:[%s188 + $0xf0] sm:$0xff]
        %v242 = vld [vmem:[%s188 + $0xf8] sm:$0xf]
        %v243 = vld [vmem:[%s188 + $0xfc] sm:$0xff]
        %v244 = vld [vmem:[%s188 + $0x104] sm:$0xf]
        %v245 = vld [vmem:[%s188 + $0x108] sm:$0xff]
        %v246 = vld [vmem:[%s188 + $0x110] sm:$0xf]
        %v247 = vld [vmem:[%s188 + $0x114] sm:$0xff]
        %v248 = vld [vmem:[%s188 + $0x11c] sm:$0xf]
        %v249 = vld [vmem:[%s188 + $0x120] sm:$0xff]
        %v250 = vld [vmem:[%s188 + $0x128] sm:$0xf]
        %v251 = vld [vmem:[%s188 + $0x12c] sm:$0xff]
        %v252 = vld [vmem:[%s188 + $0x134] sm:$0xf]
        %v253 = vld [vmem:[%s188 + $0x138] sm:$0xff]
        %v254 = vld [vmem:[%s188 + $0x140] sm:$0xf]
        %v255 = vld [vmem:[%s188 + $0x144] sm:$0xff]
        %v256 = vld [vmem:[%s188 + $0x14c] sm:$0xf]
        %v257 = vld [vmem:[%s188 + $0x150] sm:$0xff]
        %v258 = vld [vmem:[%s188 + $0x158] sm:$0xf]
        %v259 = vld [vmem:[%s188 + $0x15c] sm:$0xff]
        %v260 = vld [vmem:[%s188 + $0x164] sm:$0xf]
        %v261 = vld [vmem:[%s188 + $0x168] sm:$0xff]
        %v262 = vld [vmem:[%s188 + $0x170] sm:$0xf]
        %v263 = vld [vmem:[%s188 + $0x174] sm:$0xff]
        %v264 = vld [vmem:[%s188 + $0x17c] sm:$0xf]
        %v265 = vld [vmem:[%s1] sm:$0xf]
        %v266 = vld [vmem:[%s1 + $0x4] sm:$0xf]
        %v267 = vld [vmem:[%s1 + $0x8] sm:$0xf]
        %v268 = vld [vmem:[%s1 + $0xc] sm:$0xf]
        %v269 = vld [vmem:[%s1 + $0x10] sm:$0xf]
        %v270 = vld [vmem:[%s1 + $0x14] sm:$0xf]
        %v271 = vld [vmem:[%s1 + $0x18] sm:$0xf]
        %v272 = vld [vmem:[%s1 + $0x1c] sm:$0xf]
        %v273 = vld [vmem:[%s1 + $0x20] sm:$0xf]
        %v274 = vld [vmem:[%s1 + $0x24] sm:$0xf]
        %v275 = vld [vmem:[%s1 + $0x28] sm:$0xf]
        %v276 = vld [vmem:[%s1 + $0x2c] sm:$0xf]
        %v277 = vld [vmem:[%s1 + $0x30] sm:$0xf]
        %v278 = vld [vmem:[%s1 + $0x34] sm:$0xf]
        %v279 = vld [vmem:[%s1 + $0x38] sm:$0xf]
        %v280 = vld [vmem:[%s1 + $0x3c] sm:$0xf]
        %v281 = vld [vmem:[%s1 + $0x40] sm:$0xf]
        %v282 = vld [vmem:[%s1 + $0x44] sm:$0xf]
        %v283 = vld [vmem:[%s1 + $0x48] sm:$0xf]
        %v284 = vld [vmem:[%s1 + $0x4c] sm:$0xf]
        %v285 = vld [vmem:[%s1 + $0x50] sm:$0xf]
        %v286 = vld [vmem:[%s1 + $0x54] sm:$0xf]
        %v287 = vld [vmem:[%s1 + $0x58] sm:$0xf]
        %v288 = vld [vmem:[%s1 + $0x5c] sm:$0xf]
        %v289 = vld [vmem:[%s1 + $0x60] sm:$0xf]
        %v290 = vld [vmem:[%s1 + $0x64] sm:$0xf]
        %v291 = vld [vmem:[%s1 + $0x68] sm:$0xf]
        %v292 = vld [vmem:[%s1 + $0x6c] sm:$0xf]
        %v293 = vld [vmem:[%s1 + $0x70] sm:$0xf]
        %v294 = vld [vmem:[%s1 + $0x74] sm:$0xf]
        %v295 = vld [vmem:[%s1 + $0x78] sm:$0xf]
        %v296 = vld [vmem:[%s1 + $0x7c] sm:$0xf]
        %v297 = vld [vmem:[%s1 + $0x80] sm:$0xf]
        %v298 = vld [vmem:[%s1 + $0x84] sm:$0xf]
        %v299 = vld [vmem:[%s1 + $0x88] sm:$0xf]
        %v300 = vld [vmem:[%s1 + $0x8c] sm:$0xf]
        %v301 = vld [vmem:[%s2] sm:$0x1]
        %v303 = vlaneseq
        %v304 = vshrl.u32 %v303, 7
        %v305 = vsub.s32 0, %v304
        %v306 = vrot.slane %v301, %v305
        %v372 = vunpack.c.l.b16 %v201
        %v373 = vunpack.c.h.b16 %v201
        %v374 = vunpack.c.l.b16 %v202
        %v375 = vunpack.c.l.b16 %v203
        %v376 = vunpack.c.h.b16 %v203
        %v377 = vunpack.c.l.b16 %v204
        %v378 = vunpack.c.l.b16 %v205
        %v379 = vunpack.c.h.b16 %v205
        %v380 = vunpack.c.l.b16 %v206
        %v381 = vunpack.c.l.b16 %v207
        %v382 = vunpack.c.h.b16 %v207
        %v383 = vunpack.c.l.b16 %v208
        %v384 = vunpack.c.l.b16 %v209
        %v385 = vunpack.c.h.b16 %v209
        %v386 = vunpack.c.l.b16 %v210
        %v387 = vunpack.c.l.b16 %v211
        %v388 = vunpack.c.h.b16 %v211
        %v389 = vunpack.c.l.b16 %v212
        %v390 = vunpack.c.l.b16 %v213
        %v391 = vunpack.c.h.b16 %v213
        %v392 = vunpack.c.l.b16 %v214
        %v393 = vunpack.c.l.b16 %v215
        %v394 = vunpack.c.h.b16 %v215
        %v395 = vunpack.c.l.b16 %v216
        %v396 = vunpack.c.l.b16 %v217
        %v397 = vunpack.c.h.b16 %v217
        %v398 = vunpack.c.l.b16 %v218
        %v399 = vunpack.c.l.b16 %v219
        %v400 = vunpack.c.h.b16 %v219
        %v401 = vunpack.c.l.b16 %v220
        %v402 = vunpack.c.l.b16 %v221
        %v403 = vunpack.c.h.b16 %v221
        %v404 = vunpack.c.l.b16 %v222
        %v405 = vunpack.c.l.b16 %v223
        %v406 = vunpack.c.h.b16 %v223
        %v407 = vunpack.c.l.b16 %v224
        %v408 = vunpack.c.l.b16 %v225
        %v409 = vunpack.c.h.b16 %v225
        %v410 = vunpack.c.l.b16 %v226
        %v411 = vunpack.c.l.b16 %v227
        %v412 = vunpack.c.h.b16 %v227
        %v413 = vunpack.c.l.b16 %v228
        %v414 = vunpack.c.l.b16 %v229
        %v415 = vunpack.c.h.b16 %v229
        %v416 = vunpack.c.l.b16 %v230
        %v417 = vunpack.c.l.b16 %v231
        %v418 = vunpack.c.h.b16 %v231
        %v419 = vunpack.c.l.b16 %v232
        %v420 = vunpack.c.l.b16 %v233
        %v421 = vunpack.c.h.b16 %v233
        %v422 = vunpack.c.l.b16 %v234
        %v423 = vunpack.c.l.b16 %v235
        %v424 = vunpack.c.h.b16 %v235
        %v425 = vunpack.c.l.b16 %v236
        %v426 = vunpack.c.l.b16 %v237
        %v427 = vunpack.c.h.b16 %v237
        %v428 = vunpack.c.l.b16 %v238
        %v429 = vunpack.c.l.b16 %v239
        %v430 = vunpack.c.h.b16 %v239
        %v431 = vunpack.c.l.b16 %v240
        %v432 = vunpack.c.l.b16 %v241
        %v433 = vunpack.c.h.b16 %v241
        %v434 = vunpack.c.l.b16 %v242
        %v435 = vunpack.c.l.b16 %v243
        %v436 = vunpack.c.h.b16 %v243
        %v437 = vunpack.c.l.b16 %v244
        %v438 = vunpack.c.l.b16 %v245
        %v439 = vunpack.c.h.b16 %v245
        %v440 = vunpack.c.l.b16 %v246
        %v441 = vunpack.c.l.b16 %v247
        %v442 = vunpack.c.h.b16 %v247
        %v443 = vunpack.c.l.b16 %v248
        %v444 = vunpack.c.l.b16 %v249
        %v445 = vunpack.c.h.b16 %v249
        %v446 = vunpack.c.l.b16 %v250
        %v447 = vunpack.c.l.b16 %v251
        %v448 = vunpack.c.h.b16 %v251
        %v449 = vunpack.c.l.b16 %v252
        %v450 = vunpack.c.l.b16 %v253
        %v451 = vunpack.c.h.b16 %v253
        %v452 = vunpack.c.l.b16 %v254
        %v453 = vunpack.c.l.b16 %v255
        %v454 = vunpack.c.h.b16 %v255
        %v455 = vunpack.c.l.b16 %v256
        %v456 = vunpack.c.l.b16 %v257
        %v457 = vunpack.c.h.b16 %v257
        %v458 = vunpack.c.l.b16 %v258
        %v459 = vunpack.c.l.b16 %v259
        %v460 = vunpack.c.h.b16 %v259
        %v461 = vunpack.c.l.b16 %v260
        %v462 = vunpack.c.l.b16 %v261
        %v463 = vunpack.c.h.b16 %v261
        %v464 = vunpack.c.l.b16 %v262
        %v465 = vunpack.c.l.b16 %v263
        %v466 = vunpack.c.h.b16 %v263
        %v467 = vunpack.c.l.b16 %v264
        %v468 = vpack.c.b16 %v375, %v372
        %v469 = vpack.c.b16 %v376, %v373
        %v470 = vpack.c.b16 %v377, %v374
        %v471 = vpack.c.b16 %v381, %v378
        %v472 = vpack.c.b16 %v382, %v379
        %v473 = vpack.c.b16 %v383, %v380
        %v474 = vpack.c.b16 %v387, %v384
        %v475 = vpack.c.b16 %v388, %v385
        %v476 = vpack.c.b16 %v389, %v386
        %v477 = vpack.c.b16 %v393, %v390
        %v478 = vpack.c.b16 %v394, %v391
        %v479 = vpack.c.b16 %v395, %v392
        %v480 = vpack.c.b16 %v399, %v396
        %v481 = vpack.c.b16 %v400, %v397
        %v482 = vpack.c.b16 %v401, %v398
        %v483 = vpack.c.b16 %v405, %v402
        %v484 = vpack.c.b16 %v406, %v403
        %v485 = vpack.c.b16 %v407, %v404
        %v486 = vpack.c.b16 %v411, %v408
        %v487 = vpack.c.b16 %v412, %v409
        %v488 = vpack.c.b16 %v413, %v410
        %v489 = vpack.c.b16 %v417, %v414
        %v490 = vpack.c.b16 %v418, %v415
        %v491 = vpack.c.b16 %v419, %v416
        %v492 = vpack.c.b16 %v423, %v420
        %v493 = vpack.c.b16 %v424, %v421
        %v494 = vpack.c.b16 %v425, %v422
        %v495 = vpack.c.b16 %v429, %v426
        %v496 = vpack.c.b16 %v430, %v427
        %v497 = vpack.c.b16 %v431, %v428
        %v498 = vpack.c.b16 %v435, %v432
        %v499 = vpack.c.b16 %v436, %v433
        %v500 = vpack.c.b16 %v437, %v434
        %v501 = vpack.c.b16 %v441, %v438
        %v502 = vpack.c.b16 %v442, %v439
        %v503 = vpack.c.b16 %v443, %v440
        %v504 = vpack.c.b16 %v447, %v444
        %v505 = vpack.c.b16 %v448, %v445
        %v506 = vpack.c.b16 %v449, %v446
        %v507 = vpack.c.b16 %v453, %v450
        %v508 = vpack.c.b16 %v454, %v451
        %v509 = vpack.c.b16 %v455, %v452
        %v510 = vpack.c.b16 %v459, %v456
        %v511 = vpack.c.b16 %v460, %v457
        %v512 = vpack.c.b16 %v461, %v458
        %v513 = vpack.c.b16 %v465, %v462
        %v514 = vpack.c.b16 %v466, %v463
        %v515 = vpack.c.b16 %v467, %v464
        %v584 = vunpack.c.l.b16 %v265
        %v585 = vunpack.c.l.b16 %v266
        %v586 = vunpack.c.l.b16 %v267
        %v587 = vunpack.c.l.b16 %v268
        %v588 = vunpack.c.l.b16 %v269
        %v589 = vunpack.c.l.b16 %v270
        %v590 = vunpack.c.l.b16 %v271
        %v591 = vunpack.c.l.b16 %v272
        %v592 = vunpack.c.l.b16 %v273
        %v593 = vunpack.c.l.b16 %v274
        %v594 = vunpack.c.l.b16 %v275
        %v595 = vunpack.c.l.b16 %v276
        %v596 = vunpack.c.l.b16 %v277
        %v597 = vunpack.c.l.b16 %v278
        %v598 = vunpack.c.l.b16 %v279
        %v599 = vunpack.c.l.b16 %v280
        %v600 = vunpack.c.l.b16 %v281
        %v601 = vunpack.c.l.b16 %v282
        %v602 = vunpack.c.l.b16 %v283
        %v603 = vunpack.c.l.b16 %v284
        %v604 = vunpack.c.l.b16 %v285
        %v605 = vunpack.c.l.b16 %v286
        %v606 = vunpack.c.l.b16 %v287
        %v607 = vunpack.c.l.b16 %v288
        %v608 = vunpack.c.l.b16 %v289
        %v609 = vunpack.c.l.b16 %v290
        %v610 = vunpack.c.l.b16 %v291
        %v611 = vunpack.c.l.b16 %v292
        %v612 = vunpack.c.l.b16 %v293
        %v613 = vunpack.c.l.b16 %v294
        %v614 = vunpack.c.l.b16 %v295
        %v615 = vunpack.c.l.b16 %v296
        %v616 = vunpack.c.l.b16 %v297
        %v617 = vunpack.c.l.b16 %v298
        %v618 = vunpack.c.l.b16 %v299
        %v619 = vunpack.c.l.b16 %v300
        %v620 = vpack.c.b16 %v585, %v584
        %v621 = vpack.c.b16 %v587, %v586
        %v622 = vpack.c.b16 %v589, %v588
        %v623 = vpack.c.b16 %v591, %v590
        %v624 = vpack.c.b16 %v593, %v592
        %v625 = vpack.c.b16 %v595, %v594
        %v626 = vpack.c.b16 %v597, %v596
        %v627 = vpack.c.b16 %v599, %v598
        %v628 = vpack.c.b16 %v601, %v600
        %v629 = vpack.c.b16 %v603, %v602
        %v630 = vpack.c.b16 %v605, %v604
        %v631 = vpack.c.b16 %v607, %v606
        %v632 = vpack.c.b16 %v609, %v608
        %v633 = vpack.c.b16 %v611, %v610
        %v634 = vpack.c.b16 %v613, %v612
        %v635 = vpack.c.b16 %v615, %v614
        %v636 = vpack.c.b16 %v617, %v616
        %v637 = vpack.c.b16 %v619, %v618
        %vm656 = vcmask 261120
        %v658 = vsel %vm656, %v470, 0
        %v661 = vsel %vm656, %v473, 0
        %v664 = vsel %vm656, %v476, 0
        %v667 = vsel %vm656, %v479, 0
        %v670 = vsel %vm656, %v482, 0
        %v673 = vsel %vm656, %v485, 0
        %v676 = vsel %vm656, %v488, 0
        %v679 = vsel %vm656, %v491, 0
        %v682 = vsel %vm656, %v494, 0
        %v685 = vsel %vm656, %v497, 0
        %v688 = vsel %vm656, %v500, 0
        %v691 = vsel %vm656, %v503, 0
        %v694 = vsel %vm656, %v506, 0
        %v697 = vsel %vm656, %v509, 0
        %v700 = vsel %vm656, %v512, 0
        %v703 = vsel %vm656, %v515, 0
        %705 = vmatprep.subr.bf16.mxu0 0
        %706 = vmatpush1.bf16.msra.mxu0 %v620
        %707 = vmatprep.subr.bf16.mxu0 0
        %708 = vmatpush1.bf16.msra.mxu0 %v621
        %709 = vmatprep.subr.bf16.mxu0 0
        %710 = vmatpush1.bf16.msra.mxu0 %v622
        %711 = vmatprep.subr.bf16.mxu0 0
        %712 = vmatpush1.bf16.msra.mxu0 %v623
        %713 = vmatprep.subr.bf16.mxu0 0
        %714 = vmatpush1.bf16.msra.mxu0 %v624
        %715 = vmatprep.subr.bf16.mxu0 0
        %716 = vmatpush1.bf16.msra.mxu0 %v625
        %717 = vmatprep.subr.bf16.mxu0 0
        %718 = vmatpush1.bf16.msra.mxu0 %v626
        %719 = vmatprep.subr.bf16.mxu0 0
        %720 = vmatpush1.bf16.msra.mxu0 %v627
        %721 = vmatprep.subr.bf16.mxu0 0
        %722 = vmatpush1.bf16.msra.mxu0 %v628
        %723 = vmatprep.subr.bf16.mxu0 0
        %724 = vmatpush1.bf16.msra.mxu0 %v629
        %725 = vmatprep.subr.bf16.mxu0 0
        %726 = vmatpush1.bf16.msra.mxu0 %v630
        %727 = vmatprep.subr.bf16.mxu0 0
        %728 = vmatpush1.bf16.msra.mxu0 %v631
        %729 = vmatprep.subr.bf16.mxu0 0
        %730 = vmatpush1.bf16.msra.mxu0 %v632
        %731 = vmatprep.subr.bf16.mxu0 0
        %732 = vmatpush1.bf16.msra.mxu0 %v633
        %733 = vmatprep.subr.bf16.mxu0 0
        %734 = vmatpush1.bf16.msra.mxu0 %v634
        %735 = vmatprep.subr.bf16.mxu0 0
        %736 = vmatpush1.bf16.msra.mxu0 %v635
        %737 = vmatprep.mubr.bf16.mxu0 %v469
        %738 = vmatmul.mubr.bf16.gmra.mrb[0].mxu0 %v468
        %v739 = vpop.f32.mrb[0].mxu0
        %v740 = vadd.f32 %v306, %v739
        %v741 = vpop.f32.mrb[0].mxu0
        %v742 = vpop.f32.mrb[0].mxu0
        %v743 = vadd.f32 %v306, %v742
        %v744 = vpop.f32.mrb[0].mxu0
        %745 = vmatprep.mubr.bf16.mxu0 %v472
        %746 = vmatmul.mubr.bf16.gmra.mrb[0].mxu0 %v471
        %v747 = vpop.f32.mrb[0].mxu0
        %v748 = vadd.f32 %v306, %v747
        %v749 = vpop.f32.mrb[0].mxu0
        %v750 = vpop.f32.mrb[0].mxu0
        %v751 = vadd.f32 %v306, %v750
        %v752 = vpop.f32.mrb[0].mxu0
        %753 = vmatprep.mubr.bf16.mxu0 %v475
        %754 = vmatmul.mubr.bf16.gmra.mrb[0].mxu0 %v474
        %v755 = vpop.f32.mrb[0].mxu0
        %v756 = vadd.f32 %v306, %v755
        %v757 = vpop.f32.mrb[0].mxu0
        %v758 = vpop.f32.mrb[0].mxu0
        %v759 = vadd.f32 %v306, %v758
        %v760 = vpop.f32.mrb[0].mxu0
        %761 = vmatprep.mubr.bf16.mxu0 %v478
        %762 = vmatmul.mubr.bf16.gmra.mrb[0].mxu0 %v477
        %v763 = vpop.f32.mrb[0].mxu0
        %v764 = vadd.f32 %v306, %v763
        %v765 = vpop.f32.mrb[0].mxu0
        %v766 = vpop.f32.mrb[0].mxu0
        %v767 = vadd.f32 %v306, %v766
        %v768 = vpop.f32.mrb[0].mxu0
        %769 = vmatprep.mubr.bf16.mxu0 %v481
        %770 = vmatmul.mubr.bf16.gmra.mrb[0].mxu0 %v480
        %v771 = vpop.f32.mrb[0].mxu0
        %v772 = vadd.f32 %v306, %v771
        %v773 = vpop.f32.mrb[0].mxu0
        %v774 = vpop.f32.mrb[0].mxu0
        %v775 = vadd.f32 %v306, %v774
        %v776 = vpop.f32.mrb[0].mxu0
        %777 = vmatprep.mubr.bf16.mxu0 %v484
        %778 = vmatmul.mubr.bf16.gmra.mrb[0].mxu0 %v483
        %v779 = vpop.f32.mrb[0].mxu0
        %v780 = vadd.f32 %v306, %v779
        %v781 = vpop.f32.mrb[0].mxu0
        %v782 = vpop.f32.mrb[0].mxu0
        %v783 = vadd.f32 %v306, %v782
        %v784 = vpop.f32.mrb[0].mxu0
        %785 = vmatprep.mubr.bf16.mxu0 %v487
        %786 = vmatmul.mubr.bf16.gmra.mrb[0].mxu0 %v486
        %v787 = vpop.f32.mrb[0].mxu0
        %v788 = vadd.f32 %v306, %v787
        %v789 = vpop.f32.mrb[0].mxu0
        %v790 = vpop.f32.mrb[0].mxu0
        %v791 = vadd.f32 %v306, %v790
        %v792 = vpop.f32.mrb[0].mxu0
        %793 = vmatprep.mubr.bf16.mxu0 %v490
        %794 = vmatmul.mubr.bf16.gmra.mrb[0].mxu0 %v489
        %v795 = vpop.f32.mrb[0].mxu0
        %v796 = vadd.f32 %v306, %v795
        %v797 = vpop.f32.mrb[0].mxu0
        %v798 = vpop.f32.mrb[0].mxu0
        %v799 = vadd.f32 %v306, %v798
        %v800 = vpop.f32.mrb[0].mxu0
        %801 = vmatprep.mubr.bf16.mxu0 %v493
        %802 = vmatmul.mubr.bf16.gmra.mrb[0].mxu0 %v492
        %v803 = vpop.f32.mrb[0].mxu0
        %v804 = vadd.f32 %v306, %v803
        %v805 = vpop.f32.mrb[0].mxu0
        %v806 = vpop.f32.mrb[0].mxu0
        %v807 = vadd.f32 %v306, %v806
        %v808 = vpop.f32.mrb[0].mxu0
        %809 = vmatprep.mubr.bf16.mxu0 %v496
        %810 = vmatmul.mubr.bf16.gmra.mrb[0].mxu0 %v495
        %v811 = vpop.f32.mrb[0].mxu0
        %v812 = vadd.f32 %v306, %v811
        %v813 = vpop.f32.mrb[0].mxu0
        %v814 = vpop.f32.mrb[0].mxu0
        %v815 = vadd.f32 %v306, %v814
        %v816 = vpop.f32.mrb[0].mxu0
        %817 = vmatprep.mubr.bf16.mxu0 %v499
        %818 = vmatmul.mubr.bf16.gmra.mrb[0].mxu0 %v498
        %v819 = vpop.f32.mrb[0].mxu0
        %v820 = vadd.f32 %v306, %v819
        %v821 = vpop.f32.mrb[0].mxu0
        %v822 = vpop.f32.mrb[0].mxu0
        %v823 = vadd.f32 %v306, %v822
        %v824 = vpop.f32.mrb[0].mxu0
        %825 = vmatprep.mubr.bf16.mxu0 %v502
        %826 = vmatmul.mubr.bf16.gmra.mrb[0].mxu0 %v501
        %v827 = vpop.f32.mrb[0].mxu0
        %v828 = vadd.f32 %v306, %v827
        %v829 = vpop.f32.mrb[0].mxu0
        %v830 = vpop.f32.mrb[0].mxu0
        %v831 = vadd.f32 %v306, %v830
        %v832 = vpop.f32.mrb[0].mxu0
        %833 = vmatprep.mubr.bf16.mxu0 %v505
        %834 = vmatmul.mubr.bf16.gmra.mrb[0].mxu0 %v504
        %v835 = vpop.f32.mrb[0].mxu0
        %v836 = vadd.f32 %v306, %v835
        %v837 = vpop.f32.mrb[0].mxu0
        %v838 = vpop.f32.mrb[0].mxu0
        %v839 = vadd.f32 %v306, %v838
        %v840 = vpop.f32.mrb[0].mxu0
        %841 = vmatprep.mubr.bf16.mxu0 %v508
        %842 = vmatmul.mubr.bf16.gmra.mrb[0].mxu0 %v507
        %v843 = vpop.f32.mrb[0].mxu0
        %v844 = vadd.f32 %v306, %v843
        %v845 = vpop.f32.mrb[0].mxu0
        %v846 = vpop.f32.mrb[0].mxu0
        %v847 = vadd.f32 %v306, %v846
        %v848 = vpop.f32.mrb[0].mxu0
        %849 = vmatprep.mubr.bf16.mxu0 %v511
        %850 = vmatmul.mubr.bf16.gmra.mrb[0].mxu0 %v510
        %v851 = vpop.f32.mrb[0].mxu0
        %v852 = vadd.f32 %v306, %v851
        %v853 = vpop.f32.mrb[0].mxu0
        %v854 = vpop.f32.mrb[0].mxu0
        %v855 = vadd.f32 %v306, %v854
        %v856 = vpop.f32.mrb[0].mxu0
        %857 = vmatprep.mubr.bf16.mxu0 %v514
        %858 = vmatmul.mubr.bf16.gmra.mrb[0].mxu0 %v513
        %v859 = vpop.f32.mrb[0].mxu0
        %v860 = vadd.f32 %v306, %v859
        %v861 = vpop.f32.mrb[0].mxu0
        %v862 = vpop.f32.mrb[0].mxu0
        %v863 = vadd.f32 %v306, %v862
        %v864 = vpop.f32.mrb[0].mxu0
        %865 = vdwg.mxu0
        %866 = vmatprep.subr.bf16.mxu0 0
        %867 = vmatpush1.bf16.msra.mxu0 %v636
        %868 = vmatprep.subr.bf16.mxu0 0
        %869 = vmatpush1.bf16.msra.mxu0 %v637
        %870 = vmatprep.subr.bf16.mxu0 0
        %871 = vmatpush1.bf16.msra.mxu0 0
        %872 = vmatprep.subr.bf16.mxu0 0
        %873 = vmatpush1.bf16.msra.mxu0 0
        %874 = vmatprep.subr.bf16.mxu0 0
        %875 = vmatpush1.bf16.msra.mxu0 0
        %876 = vmatprep.subr.bf16.mxu0 0
        %877 = vmatpush1.bf16.msra.mxu0 0
        %878 = vmatprep.subr.bf16.mxu0 0
        %879 = vmatpush1.bf16.msra.mxu0 0
        %880 = vmatprep.subr.bf16.mxu0 0
        %881 = vmatpush1.bf16.msra.mxu0 0
        %882 = vmatprep.subr.bf16.mxu0 0
        %883 = vmatpush1.bf16.msra.mxu0 0
        %884 = vmatprep.subr.bf16.mxu0 0
        %885 = vmatpush1.bf16.msra.mxu0 0
        %886 = vmatprep.subr.bf16.mxu0 0
        %887 = vmatpush1.bf16.msra.mxu0 0
        %888 = vmatprep.subr.bf16.mxu0 0
        %889 = vmatpush1.bf16.msra.mxu0 0
        %890 = vmatprep.subr.bf16.mxu0 0
        %891 = vmatpush1.bf16.msra.mxu0 0
        %892 = vmatprep.subr.bf16.mxu0 0
        %893 = vmatpush1.bf16.msra.mxu0 0
        %894 = vmatprep.subr.bf16.mxu0 0
        %895 = vmatpush1.bf16.msra.mxu0 0
        %896 = vmatprep.subr.bf16.mxu0 0
        %897 = vmatpush1.bf16.msra.mxu0 0
        %898 = vmatprep.mubr.bf16.mxu0 0
        %899 = vmatmul.mubr.bf16.gmra.mrb[0].mxu0 %v658
        %v900 = vpop.f32.mrb[0].mxu0
        %v901 = vadd.f32 %v740, %v900
        %v902 = vpop.f32.mrb[0].mxu0
        %v903 = vpop.f32.mrb[0].mxu0
        %v904 = vadd.f32 %v743, %v903
        %v905 = vpop.f32.mrb[0].mxu0
        %906 = vmatprep.mubr.bf16.mxu0 0
        %907 = vmatmul.mubr.bf16.gmra.mrb[0].mxu0 %v661
        %v908 = vpop.f32.mrb[0].mxu0
        %v909 = vadd.f32 %v748, %v908
        %v910 = vpop.f32.mrb[0].mxu0
        %v911 = vpop.f32.mrb[0].mxu0
        %v912 = vadd.f32 %v751, %v911
        %v913 = vpop.f32.mrb[0].mxu0
        %914 = vmatprep.mubr.bf16.mxu0 0
        %915 = vmatmul.mubr.bf16.gmra.mrb[0].mxu0 %v664
        %v916 = vpop.f32.mrb[0].mxu0
        %v917 = vadd.f32 %v756, %v916
        %v918 = vpop.f32.mrb[0].mxu0
        %v919 = vpop.f32.mrb[0].mxu0
        %v920 = vadd.f32 %v759, %v919
        %v921 = vpop.f32.mrb[0].mxu0
        %922 = vmatprep.mubr.bf16.mxu0 0
        %923 = vmatmul.mubr.bf16.gmra.mrb[0].mxu0 %v667
        %v924 = vpop.f32.mrb[0].mxu0
        %v925 = vadd.f32 %v764, %v924
        %v926 = vpop.f32.mrb[0].mxu0
        %v927 = vpop.f32.mrb[0].mxu0
        %v928 = vadd.f32 %v767, %v927
        %v929 = vpop.f32.mrb[0].mxu0
        %930 = vmatprep.mubr.bf16.mxu0 0
        %931 = vmatmul.mubr.bf16.gmra.mrb[0].mxu0 %v670
        %v932 = vpop.f32.mrb[0].mxu0
        %v933 = vadd.f32 %v772, %v932
        %v934 = vpop.f32.mrb[0].mxu0
        %v935 = vpop.f32.mrb[0].mxu0
        %v936 = vadd.f32 %v775, %v935
        %v937 = vpop.f32.mrb[0].mxu0
        %938 = vmatprep.mubr.bf16.mxu0 0
        %939 = vmatmul.mubr.bf16.gmra.mrb[0].mxu0 %v673
        %v940 = vpop.f32.mrb[0].mxu0
        %v941 = vadd.f32 %v780, %v940
        %v942 = vpop.f32.mrb[0].mxu0
        %v943 = vpop.f32.mrb[0].mxu0
        %v944 = vadd.f32 %v783, %v943
        %v945 = vpop.f32.mrb[0].mxu0
        %946 = vmatprep.mubr.bf16.mxu0 0
        %947 = vmatmul.mubr.bf16.gmra.mrb[0].mxu0 %v676
        %v948 = vpop.f32.mrb[0].mxu0
        %v949 = vadd.f32 %v788, %v948
        %v950 = vpop.f32.mrb[0].mxu0
        %v951 = vpop.f32.mrb[0].mxu0
        %v952 = vadd.f32 %v791, %v951
        %v953 = vpop.f32.mrb[0].mxu0
        %954 = vmatprep.mubr.bf16.mxu0 0
        %955 = vmatmul.mubr.bf16.gmra.mrb[0].mxu0 %v679
        %v956 = vpop.f32.mrb[0].mxu0
        %v957 = vadd.f32 %v796, %v956
        %v958 = vpop.f32.mrb[0].mxu0
        %v959 = vpop.f32.mrb[0].mxu0
        %v960 = vadd.f32 %v799, %v959
        %v961 = vpop.f32.mrb[0].mxu0
        %962 = vmatprep.mubr.bf16.mxu0 0
        %963 = vmatmul.mubr.bf16.gmra.mrb[0].mxu0 %v682
        %v964 = vpop.f32.mrb[0].mxu0
        %v965 = vadd.f32 %v804, %v964
        %v966 = vpop.f32.mrb[0].mxu0
        %v967 = vpop.f32.mrb[0].mxu0
        %v968 = vadd.f32 %v807, %v967
        %v969 = vpop.f32.mrb[0].mxu0
        %970 = vmatprep.mubr.bf16.mxu0 0
        %971 = vmatmul.mubr.bf16.gmra.mrb[0].mxu0 %v685
        %v972 = vpop.f32.mrb[0].mxu0
        %v973 = vadd.f32 %v812, %v972
        %v974 = vpop.f32.mrb[0].mxu0
        %v975 = vpop.f32.mrb[0].mxu0
        %v976 = vadd.f32 %v815, %v975
        %v977 = vpop.f32.mrb[0].mxu0
        %978 = vmatprep.mubr.bf16.mxu0 0
        %979 = vmatmul.mubr.bf16.gmra.mrb[0].mxu0 %v688
        %v980 = vpop.f32.mrb[0].mxu0
        %v981 = vadd.f32 %v820, %v980
        %v982 = vpop.f32.mrb[0].mxu0
        %v983 = vpop.f32.mrb[0].mxu0
        %v984 = vadd.f32 %v823, %v983
        %v985 = vpop.f32.mrb[0].mxu0
        %986 = vmatprep.mubr.bf16.mxu0 0
        %987 = vmatmul.mubr.bf16.gmra.mrb[0].mxu0 %v691
        %v988 = vpop.f32.mrb[0].mxu0
        %v989 = vadd.f32 %v828, %v988
        %v990 = vpop.f32.mrb[0].mxu0
        %v991 = vpop.f32.mrb[0].mxu0
        %v992 = vadd.f32 %v831, %v991
        %v993 = vpop.f32.mrb[0].mxu0
        %994 = vmatprep.mubr.bf16.mxu0 0
        %995 = vmatmul.mubr.bf16.gmra.mrb[0].mxu0 %v694
        %v996 = vpop.f32.mrb[0].mxu0
        %v997 = vadd.f32 %v836, %v996
        %v998 = vpop.f32.mrb[0].mxu0
        %v999 = vpop.f32.mrb[0].mxu0
        %v1000 = vadd.f32 %v839, %v999
        %v1001 = vpop.f32.mrb[0].mxu0
        %1002 = vmatprep.mubr.bf16.mxu0 0
        %1003 = vmatmul.mubr.bf16.gmra.mrb[0].mxu0 %v697
        %v1004 = vpop.f32.mrb[0].mxu0
        %v1005 = vadd.f32 %v844, %v1004
        %v1006 = vpop.f32.mrb[0].mxu0
        %v1007 = vpop.f32.mrb[0].mxu0
        %v1008 = vadd.f32 %v847, %v1007
        %v1009 = vpop.f32.mrb[0].mxu0
        %1010 = vmatprep.mubr.bf16.mxu0 0
        %1011 = vmatmul.mubr.bf16.gmra.mrb[0].mxu0 %v700
        %v1012 = vpop.f32.mrb[0].mxu0
        %v1013 = vadd.f32 %v852, %v1012
        %v1014 = vpop.f32.mrb[0].mxu0
        %v1015 = vpop.f32.mrb[0].mxu0
        %v1016 = vadd.f32 %v855, %v1015
        %v1017 = vpop.f32.mrb[0].mxu0
        %1018 = vmatprep.mubr.bf16.mxu0 0
        %1019 = vmatmul.mubr.bf16.gmra.mrb[0].mxu0 %v703
        %v1020 = vpop.f32.mrb[0].mxu0
        %v1021 = vadd.f32 %v860, %v1020
        %v1022 = vpop.f32.mrb[0].mxu0
        %v1023 = vpop.f32.mrb[0].mxu0
        %v1024 = vadd.f32 %v863, %v1023
        %v1025 = vpop.f32.mrb[0].mxu0
        %1026 = vdwg.mxu0
        %v1027 = vmax.f32 %v901, 0.0
        %v1028 = vmax.f32 %v904, 0.0
        %v1029 = vmax.f32 %v909, 0.0
        %v1030 = vmax.f32 %v912, 0.0
        %v1031 = vmax.f32 %v917, 0.0
        %v1032 = vmax.f32 %v920, 0.0
        %v1033 = vmax.f32 %v925, 0.0
        %v1034 = vmax.f32 %v928, 0.0
        %v1035 = vmax.f32 %v933, 0.0
        %v1036 = vmax.f32 %v936, 0.0
        %v1037 = vmax.f32 %v941, 0.0
        %v1038 = vmax.f32 %v944, 0.0
        %v1039 = vmax.f32 %v949, 0.0
        %v1040 = vmax.f32 %v952, 0.0
        %v1041 = vmax.f32 %v957, 0.0
        %v1042 = vmax.f32 %v960, 0.0
        %v1043 = vmax.f32 %v965, 0.0
        %v1044 = vmax.f32 %v968, 0.0
        %v1045 = vmax.f32 %v973, 0.0
        %v1046 = vmax.f32 %v976, 0.0
        %v1047 = vmax.f32 %v981, 0.0
        %v1048 = vmax.f32 %v984, 0.0
        %v1049 = vmax.f32 %v989, 0.0
        %v1050 = vmax.f32 %v992, 0.0
        %v1051 = vmax.f32 %v997, 0.0
        %v1052 = vmax.f32 %v1000, 0.0
        %v1053 = vmax.f32 %v1005, 0.0
        %v1054 = vmax.f32 %v1008, 0.0
        %v1055 = vmax.f32 %v1013, 0.0
        %v1056 = vmax.f32 %v1016, 0.0
        %v1057 = vmax.f32 %v1021, 0.0
        %v1058 = vmax.f32 %v1024, 0.0
        %vm1059 = vcmask 523264
        %1060 = vst.msk [vmem:[%s177] sm:$0xff] %vm1059, %v1027
        %1061 = vst.msk [vmem:[%s177 + $0x8] sm:$0xff] %vm1059, %v1028
        %1062 = vst.msk [vmem:[%s177 + $0x10] sm:$0xff] %vm1059, %v1029
        %1063 = vst.msk [vmem:[%s177 + $0x18] sm:$0xff] %vm1059, %v1030
        %1064 = vst.msk [vmem:[%s177 + $0x20] sm:$0xff] %vm1059, %v1031
        %1065 = vst.msk [vmem:[%s177 + $0x28] sm:$0xff] %vm1059, %v1032
        %1066 = vst.msk [vmem:[%s177 + $0x30] sm:$0xff] %vm1059, %v1033
        %1067 = vst.msk [vmem:[%s177 + $0x38] sm:$0xff] %vm1059, %v1034
        %1068 = vst.msk [vmem:[%s177 + $0x40] sm:$0xff] %vm1059, %v1035
        %1069 = vst.msk [vmem:[%s177 + $0x48] sm:$0xff] %vm1059, %v1036
        %1070 = vst.msk [vmem:[%s177 + $0x50] sm:$0xff] %vm1059, %v1037
        %1071 = vst.msk [vmem:[%s177 + $0x58] sm:$0xff] %vm1059, %v1038
        %1072 = vst.msk [vmem:[%s177 + $0x60] sm:$0xff] %vm1059, %v1039
        %1073 = vst.msk [vmem:[%s177 + $0x68] sm:$0xff] %vm1059, %v1040
        %1074 = vst.msk [vmem:[%s177 + $0x70] sm:$0xff] %vm1059, %v1041
        %1075 = vst.msk [vmem:[%s177 + $0x78] sm:$0xff] %vm1059, %v1042
        %1076 = vst.msk [vmem:[%s177 + $0x80] sm:$0xff] %vm1059, %v1043
        %1077 = vst.msk [vmem:[%s177 + $0x88] sm:$0xff] %vm1059, %v1044
        %1078 = vst.msk [vmem:[%s177 + $0x90] sm:$0xff] %vm1059, %v1045
        %1079 = vst.msk [vmem:[%s177 + $0x98] sm:$0xff] %vm1059, %v1046
        %1080 = vst.msk [vmem:[%s177 + $0xa0] sm:$0xff] %vm1059, %v1047
        %1081 = vst.msk [vmem:[%s177 + $0xa8] sm:$0xff] %vm1059, %v1048
        %1082 = vst.msk [vmem:[%s177 + $0xb0] sm:$0xff] %vm1059, %v1049
        %1083 = vst.msk [vmem:[%s177 + $0xb8] sm:$0xff] %vm1059, %v1050
        %1084 = vst.msk [vmem:[%s177 + $0xc0] sm:$0xff] %vm1059, %v1051
        %1085 = vst.msk [vmem:[%s177 + $0xc8] sm:$0xff] %vm1059, %v1052
        %1086 = vst.msk [vmem:[%s177 + $0xd0] sm:$0xff] %vm1059, %v1053
        %1087 = vst.msk [vmem:[%s177 + $0xd8] sm:$0xff] %vm1059, %v1054
        %1088 = vst.msk [vmem:[%s177 + $0xe0] sm:$0xff] %vm1059, %v1055
        %1089 = vst.msk [vmem:[%s177 + $0xe8] sm:$0xff] %vm1059, %v1056
        %1090 = vst.msk [vmem:[%s177 + $0xf0] sm:$0xff] %vm1059, %v1057
        %1091 = vst.msk [vmem:[%s177 + $0xf8] sm:$0xff] %vm1059, %v1058
        %s1092 = sand.u32 %s90, 1
        %s1093 = sand.u32 %s90, 1
        %s1094 = smul.addr %s1093, 256
        %s1095 = scalar_lea.vmem [#allocation2], %s1094
        // Predicated region
        $region33: #{net_forward.7} parent=31 // pred_check
          %p1096 = pneg %p100
        $region34: #{net_forward.7} parent=31 // pred_check_branch
          %1098 = sbr.rel (%p1096) target = $region36
        $region35: #{net_forward.7} parent=31 // pred_region
          %s1099 = smul.u32 32, %s14
          %s1100 = ssub.s32 49, %s1099
          %p1101 = scmp.lt.s32.totalorder %s1100, 32
          %s1102 = scalar_select %p1101, %s1100, 32
          %s1103 = smul.u32 128, %s1102
          %p1104 = scmp.ne.s32.totalorder 0, %s1103
          %s1105 = smul.addr %s1099, 8
          %s1106 = scalar_lea.vmem %s3, %s1105
          // Predicated region
          $region37: #{net_forward.7} parent=35 // pred_check
            %p1107 = pneg %p1104
          $region38: #{net_forward.7} parent=35 // pred_check_branch
            %1109 = sbr.rel (%p1107) target = $region40
          $region39: #{net_forward.7} parent=35 // pred_region
            // Predicated region
            $region41: #{net_forward.7} parent=39 // pred_check
              _
            $region42: #{net_forward.7} parent=39 // pred_check_branch
              %1111 = sbr.rel (0) target = $region44
            $region43: #{net_forward.7} parent=39 // pred_region
              // Predicated region
              $region63: #{net_forward.7} parent=43 // pred_check
                _
              $region64: #{net_forward.7} parent=43 // pred_check_branch
                %1222 = sbr.rel (0) target = $region66
              $region65: #{net_forward.7} parent=43 // pred_region
                %s1223 = sshrl.u32 %s1102, 5
                // While loop
                $region67: #{net_forward.7} parent=65 // loop_pre_header
                  _
                $region68: #{net_forward.7} parent=65 // loop_header
                  %s1225 = sphi 0, %s1227
                  %p1226 = scmp.ge.s32.totalorder %s1225, %s1223
                  %s1230 = sphi 0, %s1299
                  %s1231 = sphi %s1095, %s1302
                  %s1232 = sphi %s1106, %s1303
                $region69: #{net_forward.7} parent=65 // loop_header_branch
                  %1229 = sbr.rel (%p1226) target = $region73
                $region70: #{net_forward.7} parent=65 // loop_body
                  %v1233 = vld [vmem:[%s1231] sm:$0xff]
                  %1234 = vst [vmem:[%s1232] sm:$0xff] %v1233
                  %v1235 = vld [vmem:[%s1231 + $0x8] sm:$0xff]
                  %1236 = vst [vmem:[%s1232 + $0x8] sm:$0xff] %v1235
                  %v1237 = vld [vmem:[%s1231 + $0x10] sm:$0xff]
                  %1238 = vst [vmem:[%s1232 + $0x10] sm:$0xff] %v1237
                  %v1239 = vld [vmem:[%s1231 + $0x18] sm:$0xff]
                  %1240 = vst [vmem:[%s1232 + $0x18] sm:$0xff] %v1239
                  %v1241 = vld [vmem:[%s1231 + $0x20] sm:$0xff]
                  %1242 = vst [vmem:[%s1232 + $0x20] sm:$0xff] %v1241
                  %v1243 = vld [vmem:[%s1231 + $0x28] sm:$0xff]
                  %1244 = vst [vmem:[%s1232 + $0x28] sm:$0xff] %v1243
                  %v1245 = vld [vmem:[%s1231 + $0x30] sm:$0xff]
                  %1246 = vst [vmem:[%s1232 + $0x30] sm:$0xff] %v1245
                  %v1247 = vld [vmem:[%s1231 + $0x38] sm:$0xff]
                  %1248 = vst [vmem:[%s1232 + $0x38] sm:$0xff] %v1247
                  %v1249 = vld [vmem:[%s1231 + $0x40] sm:$0xff]
                  %1250 = vst [vmem:[%s1232 + $0x40] sm:$0xff] %v1249
                  %v1251 = vld [vmem:[%s1231 + $0x48] sm:$0xff]
                  %1252 = vst [vmem:[%s1232 + $0x48] sm:$0xff] %v1251
                  %v1253 = vld [vmem:[%s1231 + $0x50] sm:$0xff]
                  %1254 = vst [vmem:[%s1232 + $0x50] sm:$0xff] %v1253
                  %v1255 = vld [vmem:[%s1231 + $0x58] sm:$0xff]
                  %1256 = vst [vmem:[%s1232 + $0x58] sm:$0xff] %v1255
                  %v1257 = vld [vmem:[%s1231 + $0x60] sm:$0xff]
                  %1258 = vst [vmem:[%s1232 + $0x60] sm:$0xff] %v1257
                  %v1259 = vld [vmem:[%s1231 + $0x68] sm:$0xff]
                  %1260 = vst [vmem:[%s1232 + $0x68] sm:$0xff] %v1259
                  %v1261 = vld [vmem:[%s1231 + $0x70] sm:$0xff]
                  %1262 = vst [vmem:[%s1232 + $0x70] sm:$0xff] %v1261
                  %v1263 = vld [vmem:[%s1231 + $0x78] sm:$0xff]
                  %1264 = vst [vmem:[%s1232 + $0x78] sm:$0xff] %v1263
                  %v1265 = vld [vmem:[%s1231 + $0x80] sm:$0xff]
                  %1266 = vst [vmem:[%s1232 + $0x80] sm:$0xff] %v1265
                  %v1267 = vld [vmem:[%s1231 + $0x88] sm:$0xff]
                  %1268 = vst [vmem:[%s1232 + $0x88] sm:$0xff] %v1267
                  %v1269 = vld [vmem:[%s1231 + $0x90] sm:$0xff]
                  %1270 = vst [vmem:[%s1232 + $0x90] sm:$0xff] %v1269
                  %v1271 = vld [vmem:[%s1231 + $0x98] sm:$0xff]
                  %1272 = vst [vmem:[%s1232 + $0x98] sm:$0xff] %v1271
                  %v1273 = vld [vmem:[%s1231 + $0xa0] sm:$0xff]
                  %1274 = vst [vmem:[%s1232 + $0xa0] sm:$0xff] %v1273
                  %v1275 = vld [vmem:[%s1231 + $0xa8] sm:$0xff]
                  %1276 = vst [vmem:[%s1232 + $0xa8] sm:$0xff] %v1275
                  %v1277 = vld [vmem:[%s1231 + $0xb0] sm:$0xff]
                  %1278 = vst [vmem:[%s1232 + $0xb0] sm:$0xff] %v1277
                  %v1279 = vld [vmem:[%s1231 + $0xb8] sm:$0xff]
                  %1280 = vst [vmem:[%s1232 + $0xb8] sm:$0xff] %v1279
                  %v1281 = vld [vmem:[%s1231 + $0xc0] sm:$0xff]
                  %1282 = vst [vmem:[%s1232 + $0xc0] sm:$0xff] %v1281
                  %v1283 = vld [vmem:[%s1231 + $0xc8] sm:$0xff]
                  %1284 = vst [vmem:[%s1232 + $0xc8] sm:$0xff] %v1283
                  %v1285 = vld [vmem:[%s1231 + $0xd0] sm:$0xff]
                  %1286 = vst [vmem:[%s1232 + $0xd0] sm:$0xff] %v1285
                  %v1287 = vld [vmem:[%s1231 + $0xd8] sm:$0xff]
                  %1288 = vst [vmem:[%s1232 + $0xd8] sm:$0xff] %v1287
                  %v1289 = vld [vmem:[%s1231 + $0xe0] sm:$0xff]
                  %1290 = vst [vmem:[%s1232 + $0xe0] sm:$0xff] %v1289
                  %v1291 = vld [vmem:[%s1231 + $0xe8] sm:$0xff]
                  %1292 = vst [vmem:[%s1232 + $0xe8] sm:$0xff] %v1291
                  %v1293 = vld [vmem:[%s1231 + $0xf0] sm:$0xff]
                  %1294 = vst [vmem:[%s1232 + $0xf0] sm:$0xff] %v1293
                  %v1295 = vld [vmem:[%s1231 + $0xf8] sm:$0xff]
                  %1296 = vst [vmem:[%s1232 + $0xf8] sm:$0xff] %v1295
                  %s1297 = sadd.s32 1, %s1230
                  %p1298 = scmp.ge.s32.totalorder %s1297, %s1223
                  %s1299 = scalar_select %p1298, 0, %s1297
                  %s1300 = smul.u32 %s1299, 256
                  %s1301 = smul.u32 %s1299, 256
                  %s1302 = scalar_lea.vmem %s1095, %s1300 [#allocation2]
                  %s1303 = scalar_lea.vmem %s1106, %s1301
                $region71: #{net_forward.7} parent=65 // loop_footer
                  %s1227 = sadd.s32 %s1225, 1
                $region72: #{net_forward.7} parent=65 // loop_footer_branch
                  %1224 = sbr.rel target = $region68
                $region73: #{net_forward.7} parent=65 // loop_exit
                  _
                %s1304 = sshrl.u32 %s1102, 5
                %s1305 = sand.u32 %s1102, 31
                %s1306 = smul.u32 %s1304, 32
                %s1307 = smul.u32 8, %s1306
                %s1308 = scalar_lea.vmem %s1095, %s1307 [#allocation2]
                %s1309 = smul.u32 8, %s1306
                %s1310 = scalar_lea.vmem %s1106, %s1309
                // While loop
                $region74: #{net_forward.7} parent=65 // loop_pre_header
                  _
                $region75: #{net_forward.7} parent=65 // loop_header
                  %s1312 = sphi 0, %s1314
                  %p1313 = scmp.ge.s32.totalorder %s1312, %s1305
                  %s1317 = sphi 0, %s1324
                  %s1318 = sphi %s1308, %s1327
                  %s1319 = sphi %s1310, %s1328
                $region76: #{net_forward.7} parent=65 // loop_header_branch
                  %1316 = sbr.rel (%p1313) target = $region80
                $region77: #{net_forward.7} parent=65 // loop_body
                  %v1320 = vld [vmem:[%s1318] sm:$0xff]
                  %1321 = vst [vmem:[%s1319] sm:$0xff] %v1320
                  %s1322 = sadd.s32 1, %s1317
                  %p1323 = scmp.ge.s32.totalorder %s1322, %s1305
                  %s1324 = scalar_select %p1323, 0, %s1322
                  %s1325 = smul.u32 %s1324, 8
                  %s1326 = smul.u32 %s1324, 8
                  %s1327 = scalar_lea.vmem %s1308, %s1325 [#allocation2]
                  %s1328 = scalar_lea.vmem %s1310, %s1326
                $region78: #{net_forward.7} parent=65 // loop_footer
                  %s1314 = sadd.s32 %s1312, 1
                $region79: #{net_forward.7} parent=65 // loop_footer_branch
                  %1311 = sbr.rel target = $region75
                $region80: #{net_forward.7} parent=65 // loop_exit
                  _
              $region66: #{net_forward.7} parent=43 // pred_fallthru
                _
              // Predicated region
              $region81: #{net_forward.7} parent=43 // pred_check
                _
              $region82: #{net_forward.7} parent=43 // pred_check_branch
                %1330 = sbr.rel target = $region84
              $region83: #{net_forward.7} parent=43 // pred_region
                _
              $region84: #{net_forward.7} parent=43 // pred_fallthru
                _
            $region44: #{net_forward.7} parent=39 // pred_fallthru
              _
            // Predicated region
            $region45: #{net_forward.7} parent=39 // pred_check
              _
            $region46: #{net_forward.7} parent=39 // pred_check_branch
              %1113 = sbr.rel target = $region48
            $region47: #{net_forward.7} parent=39 // pred_region
              %s1115 = sshrl.u32 %s1102, 5
              // While loop
              $region49: #{net_forward.7} parent=47 // loop_pre_header
                _
              $region50: #{net_forward.7} parent=47 // loop_header
                %s1117 = sphi 0, %s1119
                %p1118 = scmp.ge.s32.totalorder %s1117, %s1115
                %s1122 = sphi 0, %s1191
                %s1123 = sphi %s1095, %s1194
                %s1124 = sphi %s1106, %s1195
              $region51: #{net_forward.7} parent=47 // loop_header_branch
                %1121 = sbr.rel (%p1118) target = $region55
              $region52: #{net_forward.7} parent=47 // loop_body
                %v1125 = vld [vmem:[%s1123] sm:$0xff]
                %1126 = vst [vmem:[%s1124] sm:$0xff] %v1125
                %v1127 = vld [vmem:[%s1123 + $0x8] sm:$0xff]
                %1128 = vst [vmem:[%s1124 + $0x8] sm:$0xff] %v1127
                %v1129 = vld [vmem:[%s1123 + $0x10] sm:$0xff]
                %1130 = vst [vmem:[%s1124 + $0x10] sm:$0xff] %v1129
                %v1131 = vld [vmem:[%s1123 + $0x18] sm:$0xff]
                %1132 = vst [vmem:[%s1124 + $0x18] sm:$0xff] %v1131
                %v1133 = vld [vmem:[%s1123 + $0x20] sm:$0xff]
                %1134 = vst [vmem:[%s1124 + $0x20] sm:$0xff] %v1133
                %v1135 = vld [vmem:[%s1123 + $0x28] sm:$0xff]
                %1136 = vst [vmem:[%s1124 + $0x28] sm:$0xff] %v1135
                %v1137 = vld [vmem:[%s1123 + $0x30] sm:$0xff]
                %1138 = vst [vmem:[%s1124 + $0x30] sm:$0xff] %v1137
                %v1139 = vld [vmem:[%s1123 + $0x38] sm:$0xff]
                %1140 = vst [vmem:[%s1124 + $0x38] sm:$0xff] %v1139
                %v1141 = vld [vmem:[%s1123 + $0x40] sm:$0xff]
                %1142 = vst [vmem:[%s1124 + $0x40] sm:$0xff] %v1141
                %v1143 = vld [vmem:[%s1123 + $0x48] sm:$0xff]
                %1144 = vst [vmem:[%s1124 + $0x48] sm:$0xff] %v1143
                %v1145 = vld [vmem:[%s1123 + $0x50] sm:$0xff]
                %1146 = vst [vmem:[%s1124 + $0x50] sm:$0xff] %v1145
                %v1147 = vld [vmem:[%s1123 + $0x58] sm:$0xff]
                %1148 = vst [vmem:[%s1124 + $0x58] sm:$0xff] %v1147
                %v1149 = vld [vmem:[%s1123 + $0x60] sm:$0xff]
                %1150 = vst [vmem:[%s1124 + $0x60] sm:$0xff] %v1149
                %v1151 = vld [vmem:[%s1123 + $0x68] sm:$0xff]
                %1152 = vst [vmem:[%s1124 + $0x68] sm:$0xff] %v1151
                %v1153 = vld [vmem:[%s1123 + $0x70] sm:$0xff]
                %1154 = vst [vmem:[%s1124 + $0x70] sm:$0xff] %v1153
                %v1155 = vld [vmem:[%s1123 + $0x78] sm:$0xff]
                %1156 = vst [vmem:[%s1124 + $0x78] sm:$0xff] %v1155
                %v1157 = vld [vmem:[%s1123 + $0x80] sm:$0xff]
                %1158 = vst [vmem:[%s1124 + $0x80] sm:$0xff] %v1157
                %v1159 = vld [vmem:[%s1123 + $0x88] sm:$0xff]
                %1160 = vst [vmem:[%s1124 + $0x88] sm:$0xff] %v1159
                %v1161 = vld [vmem:[%s1123 + $0x90] sm:$0xff]
                %1162 = vst [vmem:[%s1124 + $0x90] sm:$0xff] %v1161
                %v1163 = vld [vmem:[%s1123 + $0x98] sm:$0xff]
                %1164 = vst [vmem:[%s1124 + $0x98] sm:$0xff] %v1163
                %v1165 = vld [vmem:[%s1123 + $0xa0] sm:$0xff]
                %1166 = vst [vmem:[%s1124 + $0xa0] sm:$0xff] %v1165
                %v1167 = vld [vmem:[%s1123 + $0xa8] sm:$0xff]
                %1168 = vst [vmem:[%s1124 + $0xa8] sm:$0xff] %v1167
                %v1169 = vld [vmem:[%s1123 + $0xb0] sm:$0xff]
                %1170 = vst [vmem:[%s1124 + $0xb0] sm:$0xff] %v1169
                %v1171 = vld [vmem:[%s1123 + $0xb8] sm:$0xff]
                %1172 = vst [vmem:[%s1124 + $0xb8] sm:$0xff] %v1171
                %v1173 = vld [vmem:[%s1123 + $0xc0] sm:$0xff]
                %1174 = vst [vmem:[%s1124 + $0xc0] sm:$0xff] %v1173
                %v1175 = vld [vmem:[%s1123 + $0xc8] sm:$0xff]
                %1176 = vst [vmem:[%s1124 + $0xc8] sm:$0xff] %v1175
                %v1177 = vld [vmem:[%s1123 + $0xd0] sm:$0xff]
                %1178 = vst [vmem:[%s1124 + $0xd0] sm:$0xff] %v1177
                %v1179 = vld [vmem:[%s1123 + $0xd8] sm:$0xff]
                %1180 = vst [vmem:[%s1124 + $0xd8] sm:$0xff] %v1179
                %v1181 = vld [vmem:[%s1123 + $0xe0] sm:$0xff]
                %1182 = vst [vmem:[%s1124 + $0xe0] sm:$0xff] %v1181
                %v1183 = vld [vmem:[%s1123 + $0xe8] sm:$0xff]
                %1184 = vst [vmem:[%s1124 + $0xe8] sm:$0xff] %v1183
                %v1185 = vld [vmem:[%s1123 + $0xf0] sm:$0xff]
                %1186 = vst [vmem:[%s1124 + $0xf0] sm:$0xff] %v1185
                %v1187 = vld [vmem:[%s1123 + $0xf8] sm:$0xff]
                %1188 = vst [vmem:[%s1124 + $0xf8] sm:$0xff] %v1187
                %s1189 = sadd.s32 1, %s1122
                %p1190 = scmp.ge.s32.totalorder %s1189, %s1115
                %s1191 = scalar_select %p1190, 0, %s1189
                %s1192 = smul.u32 %s1191, 256
                %s1193 = smul.u32 %s1191, 256
                %s1194 = scalar_lea.vmem %s1095, %s1192 [#allocation2]
                %s1195 = scalar_lea.vmem %s1106, %s1193
              $region53: #{net_forward.7} parent=47 // loop_footer
                %s1119 = sadd.s32 %s1117, 1
              $region54: #{net_forward.7} parent=47 // loop_footer_branch
                %1116 = sbr.rel target = $region50
              $region55: #{net_forward.7} parent=47 // loop_exit
                _
              %s1196 = sshrl.u32 %s1102, 5
              %s1197 = sand.u32 %s1102, 31
              %s1198 = smul.u32 %s1196, 32
              %s1199 = smul.u32 8, %s1198
              %s1200 = scalar_lea.vmem %s1095, %s1199 [#allocation2]
              %s1201 = smul.u32 8, %s1198
              %s1202 = scalar_lea.vmem %s1106, %s1201
              // While loop
              $region56: #{net_forward.7} parent=47 // loop_pre_header
                _
              $region57: #{net_forward.7} parent=47 // loop_header
                %s1204 = sphi 0, %s1206
                %p1205 = scmp.ge.s32.totalorder %s1204, %s1197
                %s1209 = sphi 0, %s1216
                %s1210 = sphi %s1200, %s1219
                %s1211 = sphi %s1202, %s1220
              $region58: #{net_forward.7} parent=47 // loop_header_branch
                %1208 = sbr.rel (%p1205) target = $region62
              $region59: #{net_forward.7} parent=47 // loop_body
                %v1212 = vld [vmem:[%s1210] sm:$0xff]
                %1213 = vst [vmem:[%s1211] sm:$0xff] %v1212
                %s1214 = sadd.s32 1, %s1209
                %p1215 = scmp.ge.s32.totalorder %s1214, %s1197
                %s1216 = scalar_select %p1215, 0, %s1214
                %s1217 = smul.u32 %s1216, 8
                %s1218 = smul.u32 %s1216, 8
                %s1219 = scalar_lea.vmem %s1200, %s1217 [#allocation2]
                %s1220 = scalar_lea.vmem %s1202, %s1218
              $region60: #{net_forward.7} parent=47 // loop_footer
                %s1206 = sadd.s32 %s1204, 1
              $region61: #{net_forward.7} parent=47 // loop_footer_branch
                %1203 = sbr.rel target = $region57
              $region62: #{net_forward.7} parent=47 // loop_exit
                _
            $region48: #{net_forward.7} parent=39 // pred_fallthru
              _
          $region40: #{net_forward.7} parent=35 // pred_fallthru
            _
          %1331 = vnop
        $region36: #{net_forward.7} parent=31 // pred_fallthru
          _
      $region32: #{net_forward.7} parent=5 // pred_fallthru
        _
      %p1332 = scmp.le.s32.totalorder 2, %s9
      // Predicated region
      $region85: #{net_forward.7} parent=5 // pred_check
        %p1333 = pneg %p1332
      $region86: #{net_forward.7} parent=5 // pred_check_branch
        %1335 = sbr.rel (%p1333) target = $region88
      $region87: #{net_forward.7} parent=5 // pred_region
        %s1336 = ssub.s32 %s9, 2
        // Predicated region
        $region89: #{net_forward.7} parent=87 // pred_check
          %p1337 = pneg %p106
        $region90: #{net_forward.7} parent=87 // pred_check_branch
          %1339 = sbr.rel (%p1337) target = $region92
        $region91: #{net_forward.7} parent=87 // pred_region
          %s1340 = sand.u32 %s91, 1
          %s1341 = sand.u32 %s91, 1
          %s1342 = smul.addr %s1341, 256
          %s1343 = scalar_lea.vmem [#allocation2], %s1342
        $region92: #{net_forward.7} parent=87 // pred_fallthru
          _
      $region88: #{net_forward.7} parent=5 // pred_fallthru
        _
    $region6: #{net_forward.7} parent=1 // loop_footer
      %s13 = sadd.s32 1, %s9
    $region7: #{net_forward.7} parent=1 // loop_footer_branch
      %8 = sbr.rel target = $region3
    $region8: #{net_forward.7} parent=1 // loop_exit
      _

// kernel: net_forward.9
$region0: #{net_forward.9}
  #allocation0 [shape = 'u32[]', space=smem, size = 0x4, offset = 0x4, fixed_abs, tag = 'smem constant byte address 0x4 - core index']
  #allocation1 [shape = 'u32[144,128]{1,0:T(1,128)}', space=vmem, size = 0x12000, scoped, tag = 'internal scratch']
  %s0 = inlined_call_operand.vmem [shape: bf16[2,3136], index: 0, kind: input, shape index: {}]
  %s1 = inlined_call_operand.vmem [shape: bf16[3136,128], index: 1, kind: input, shape index: {}]
  %s2 = inlined_call_operand.vmem [shape: f32[1,128], index: 2, kind: input, shape index: {}]
  %s3 = inlined_call_operand.vmem [shape: bf16[128,128], index: 3, kind: input, shape index: {}]
  %s4 = inlined_call_operand.vmem [shape: f32[1,128], index: 4, kind: input, shape index: {}]
  %s5 = inlined_call_operand.hbm [shape: f32[2,128], index: 5, kind: output, shape index: {0}]
  %s6 = inlined_call_operand.hbm [shape: f32[2,128], index: 6, kind: output, shape index: {1}]
  %7 = xla_tuple %s5, %s6
  %s8 = sld [smem:[#allocation0]]
  $region38: #{net_forward.9} parent=0
    _
  %s10 = ssub.s32 1, %s8
  %s11 = scalar_select 0, %s10, %s8
  $region1: #{net_forward.9} parent=0
    #allocation2 [shape = 'u8[1024]{0}', space=vmem, size = 0x400, scoped, tag = 'output window, operand 0, single buffered']
    #allocation3 [shape = 's32[1]{0}', space=sflag, size = 0x4, scoped, tag = 'scoped memory for net_forward.9']
    #allocation4 [shape = 'u8[1024]{0}', space=vmem, size = 0x400, scoped, tag = 'output window, operand 1, single buffered']
    #allocation5 [shape = 's32[1]{0}', space=sflag, size = 0x4, scoped, tag = 'scoped memory for net_forward.9']
    %12 = vsyncpa [#allocation3], 0
    %13 = vsyncpa [#allocation5], 0
    // Predicated region
    $region2: #{net_forward.9} parent=1 // pred_check
      _
    $region3: #{net_forward.9} parent=1 // pred_check_branch
      %15 = sbr.rel (0) target = $region5
    $region4: #{net_forward.9} parent=1 // pred_region
      _
    $region5: #{net_forward.9} parent=1 // pred_fallthru
      _
    // Predicated region
    $region6: #{net_forward.9} parent=1 // pred_check
      _
    $region7: #{net_forward.9} parent=1 // pred_check_branch
      %17 = sbr.rel (0) target = $region9
    $region8: #{net_forward.9} parent=1 // pred_region
      _
    $region9: #{net_forward.9} parent=1 // pred_fallthru
      _
    // Predicated region
    $region10: #{net_forward.9} parent=1 // pred_check
      _
    $region11: #{net_forward.9} parent=1 // pred_check_branch
      %19 = sbr.rel (0) target = $region13
    $region12: #{net_forward.9} parent=1 // pred_region
      _
    $region13: #{net_forward.9} parent=1 // pred_fallthru
      _
    // Predicated region
    $region14: #{net_forward.9} parent=1 // pred_check
      _
    $region15: #{net_forward.9} parent=1 // pred_check_branch
      %21 = sbr.rel (0) target = $region17
    $region16: #{net_forward.9} parent=1 // pred_region
      _
    $region17: #{net_forward.9} parent=1 // pred_fallthru
      _
    // Predicated region
    $region18: #{net_forward.9} parent=1 // pred_check
      _
    $region19: #{net_forward.9} parent=1 // pred_check_branch
      %23 = sbr.rel (0) target = $region21
    $region20: #{net_forward.9} parent=1 // pred_region
      _
    $region21: #{net_forward.9} parent=1 // pred_fallthru
      _
    %v25 = vld [vmem:[%s0] sm:$0xff]
    %v26 = vld [vmem:[%s0 + $0x8] sm:$0xff]
    %v27 = vld [vmem:[%s0 + $0x10] sm:$0xff]
    %v28 = vld [vmem:[%s0 + $0x18] sm:$0x1]
    %v29 = vld [vmem:[%s1] sm:$0xf]
    %v30 = vld [vmem:[%s1 + $0x4] sm:$0xf]
    %v31 = vld [vmem:[%s1 + $0x8] sm:$0xf]
    %v32 = vld [vmem:[%s1 + $0xc] sm:$0xf]
    %v33 = vld [vmem:[%s1 + $0x10] sm:$0xf]
    %v34 = vld [vmem:[%s1 + $0x14] sm:$0xf]
    %v35 = vld [vmem:[%s1 + $0x18] sm:$0xf]
    %v36 = vld [vmem:[%s1 + $0x1c] sm:$0xf]
    %v37 = vld [vmem:[%s1 + $0x20] sm:$0xf]
    %v38 = vld [vmem:[%s1 + $0x24] sm:$0xf]
    %v39 = vld [vmem:[%s1 + $0x28] sm:$0xf]
    %v40 = vld [vmem:[%s1 + $0x2c] sm:$0xf]
    %v41 = vld [vmem:[%s1 + $0x30] sm:$0xf]
    %v42 = vld [vmem:[%s1 + $0x34] sm:$0xf]
    %v43 = vld [vmem:[%s1 + $0x38] sm:$0xf]
    %v44 = vld [vmem:[%s1 + $0x3c] sm:$0xf]
    %v45 = vld [vmem:[%s1 + $0x40] sm:$0xf]
    %v46 = vld [vmem:[%s1 + $0x44] sm:$0xf]
    %v47 = vld [vmem:[%s1 + $0x48] sm:$0xf]
    %v48 = vld [vmem:[%s1 + $0x4c] sm:$0xf]
    %v49 = vld [vmem:[%s1 + $0x50] sm:$0xf]
    %v50 = vld [vmem:[%s1 + $0x54] sm:$0xf]
    %v51 = vld [vmem:[%s1 + $0x58] sm:$0xf]
    %v52 = vld [vmem:[%s1 + $0x5c] sm:$0xf]
    %v53 = vld [vmem:[%s1 + $0x60] sm:$0xf]
    %v54 = vld [vmem:[%s1 + $0x64] sm:$0xf]
    %v55 = vld [vmem:[%s1 + $0x68] sm:$0xf]
    %v56 = vld [vmem:[%s1 + $0x6c] sm:$0xf]
    %v57 = vld [vmem:[%s1 + $0x70] sm:$0xf]
    %v58 = vld [vmem:[%s1 + $0x74] sm:$0xf]
    %v59 = vld [vmem:[%s1 + $0x78] sm:$0xf]
    %v60 = vld [vmem:[%s1 + $0x7c] sm:$0xf]
    %v61 = vld [vmem:[%s1 + $0x80] sm:$0xf]
    %v62 = vld [vmem:[%s1 + $0x84] sm:$0xf]
    %v63 = vld [vmem:[%s1 + $0x88] sm:$0xf]
    %v64 = vld [vmem:[%s1 + $0x8c] sm:$0xf]
    %v65 = vld [vmem:[%s1 + $0x90] sm:$0xf]
    %v66 = vld [vmem:[%s1 + $0x94] sm:$0xf]
    %v67 = vld [vmem:[%s1 + $0x98] sm:$0xf]
    %v68 = vld [vmem:[%s1 + $0x9c] sm:$0xf]
    %v69 = vld [vmem:[%s1 + $0xa0] sm:$0xf]
    %v70 = vld [vmem:[%s1 + $0xa4] sm:$0xf]
    %v71 = vld [vmem:[%s1 + $0xa8] sm:$0xf]
    %v72 = vld [vmem:[%s1 + $0xac] sm:$0xf]
    %v73 = vld [vmem:[%s1 + $0xb0] sm:$0xf]
    %v74 = vld [vmem:[%s1 + $0xb4] sm:$0xf]
    %v75 = vld [vmem:[%s1 + $0xb8] sm:$0xf]
    %v76 = vld [vmem:[%s1 + $0xbc] sm:$0xf]
    %v77 = vld [vmem:[%s1 + $0xc0] sm:$0xf]
    %v78 = vld [vmem:[%s1 + $0xc4] sm:$0xf]
    %v79 = vld [vmem:[%s1 + $0xc8] sm:$0xf]
    %v80 = vld [vmem:[%s1 + $0xcc] sm:$0xf]
    %v81 = vld [vmem:[%s1 + $0xd0] sm:$0xf]
    %v82 = vld [vmem:[%s1 + $0xd4] sm:$0xf]
    %v83 = vld [vmem:[%s1 + $0xd8] sm:$0xf]
    %v84 = vld [vmem:[%s1 + $0xdc] sm:$0xf]
    %v85 = vld [vmem:[%s1 + $0xe0] sm:$0xf]
    %v86 = vld [vmem:[%s1 + $0xe4] sm:$0xf]
    %v87 = vld [vmem:[%s1 + $0xe8] sm:$0xf]
    %v88 = vld [vmem:[%s1 + $0xec] sm:$0xf]
    %v89 = vld [vmem:[%s1 + $0xf0] sm:$0xf]
    %v90 = vld [vmem:[%s1 + $0xf4] sm:$0xf]
    %v91 = vld [vmem:[%s1 + $0xf8] sm:$0xf]
    %v92 = vld [vmem:[%s1 + $0xfc] sm:$0xf]
    %v93 = vld [vmem:[%s1 + $0x100] sm:$0xf]
    %v94 = vld [vmem:[%s1 + $0x104] sm:$0xf]
    %v95 = vld [vmem:[%s1 + $0x108] sm:$0xf]
    %v96 = vld [vmem:[%s1 + $0x10c] sm:$0xf]
    %v97 = vld [vmem:[%s1 + $0x110] sm:$0xf]
    %v98 = vld [vmem:[%s1 + $0x114] sm:$0xf]
    %v99 = vld [vmem:[%s1 + $0x118] sm:$0xf]
    %v100 = vld [vmem:[%s1 + $0x11c] sm:$0xf]
    %v101 = vld [vmem:[%s1 + $0x120] sm:$0xf]
    %v102 = vld [vmem:[%s1 + $0x124] sm:$0xf]
    %v103 = vld [vmem:[%s1 + $0x128] sm:$0xf]
    %v104 = vld [vmem:[%s1 + $0x12c] sm:$0xf]
    %v105 = vld [vmem:[%s1 + $0x130] sm:$0xf]
    %v106 = vld [vmem:[%s1 + $0x134] sm:$0xf]
    %v107 = vld [vmem:[%s1 + $0x138] sm:$0xf]
    %v108 = vld [vmem:[%s1 + $0x13c] sm:$0xf]
    %v109 = vld [vmem:[%s1 + $0x140] sm:$0xf]
    %v110 = vld [vmem:[%s1 + $0x144] sm:$0xf]
    %v111 = vld [vmem:[%s1 + $0x148] sm:$0xf]
    %v112 = vld [vmem:[%s1 + $0x14c] sm:$0xf]
    %v113 = vld [vmem:[%s1 + $0x150] sm:$0xf]
    %v114 = vld [vmem:[%s1 + $0x154] sm:$0xf]
    %v115 = vld [vmem:[%s1 + $0x158] sm:$0xf]
    %v116 = vld [vmem:[%s1 + $0x15c] sm:$0xf]
    %v117 = vld [vmem:[%s1 + $0x160] sm:$0xf]
    %v118 = vld [vmem:[%s1 + $0x164] sm:$0xf]
    %v119 = vld [vmem:[%s1 + $0x168] sm:$0xf]
    %v120 = vld [vmem:[%s1 + $0x16c] sm:$0xf]
    %v121 = vld [vmem:[%s1 + $0x170] sm:$0xf]
    %v122 = vld [vmem:[%s1 + $0x174] sm:$0xf]
    %v123 = vld [vmem:[%s1 + $0x178] sm:$0xf]
    %v124 = vld [vmem:[%s1 + $0x17c] sm:$0xf]
    %v125 = vld [vmem:[%s1 + $0x180] sm:$0xf]
    %v126 = vld [vmem:[%s1 + $0x184] sm:$0xf]
    %v127 = vld [vmem:[%s1 + $0x188] sm:$0xf]
    %v128 = vld [vmem:[%s1 + $0x18c] sm:$0xf]
    %v129 = vld [vmem:[%s1 + $0x190] sm:$0xf]
    %v130 = vld [vmem:[%s1 + $0x194] sm:$0xf]
    %v131 = vld [vmem:[%s1 + $0x198] sm:$0xf]
    %v132 = vld [vmem:[%s1 + $0x19c] sm:$0xf]
    %v133 = vld [vmem:[%s1 + $0x1a0] sm:$0xf]
    %v134 = vld [vmem:[%s1 + $0x1a4] sm:$0xf]
    %v135 = vld [vmem:[%s1 + $0x1a8] sm:$0xf]
    %v136 = vld [vmem:[%s1 + $0x1ac] sm:$0xf]
    %v137 = vld [vmem:[%s1 + $0x1b0] sm:$0xf]
    %v138 = vld [vmem:[%s1 + $0x1b4] sm:$0xf]
    %v139 = vld [vmem:[%s1 + $0x1b8] sm:$0xf]
    %v140 = vld [vmem:[%s1 + $0x1bc] sm:$0xf]
    %v141 = vld [vmem:[%s1 + $0x1c0] sm:$0xf]
    %v142 = vld [vmem:[%s1 + $0x1c4] sm:$0xf]
    %v143 = vld [vmem:[%s1 + $0x1c8] sm:$0xf]
    %v144 = vld [vmem:[%s1 + $0x1cc] sm:$0xf]
    %v145 = vld [vmem:[%s1 + $0x1d0] sm:$0xf]
    %v146 = vld [vmem:[%s1 + $0x1d4] sm:$0xf]
    %v147 = vld [vmem:[%s1 + $0x1d8] sm:$0xf]
    %v148 = vld [vmem:[%s1 + $0x1dc] sm:$0xf]
    %v149 = vld [vmem:[%s1 + $0x1e0] sm:$0xf]
    %v150 = vld [vmem:[%s1 + $0x1e4] sm:$0xf]
    %v151 = vld [vmem:[%s1 + $0x1e8] sm:$0xf]
    %v152 = vld [vmem:[%s1 + $0x1ec] sm:$0xf]
    %v153 = vld [vmem:[%s1 + $0x1f0] sm:$0xf]
    %v154 = vld [vmem:[%s1 + $0x1f4] sm:$0xf]
    %v155 = vld [vmem:[%s1 + $0x1f8] sm:$0xf]
    %v156 = vld [vmem:[%s1 + $0x1fc] sm:$0xf]
    %v157 = vld [vmem:[%s1 + $0x200] sm:$0xf]
    %v158 = vld [vmem:[%s1 + $0x204] sm:$0xf]
    %v159 = vld [vmem:[%s1 + $0x208] sm:$0xf]
    %v160 = vld [vmem:[%s1 + $0x20c] sm:$0xf]
    %v161 = vld [vmem:[%s1 + $0x210] sm:$0xf]
    %v162 = vld [vmem:[%s1 + $0x214] sm:$0xf]
    %v163 = vld [vmem:[%s1 + $0x218] sm:$0xf]
    %v164 = vld [vmem:[%s1 + $0x21c] sm:$0xf]
    %v165 = vld [vmem:[%s1 + $0x220] sm:$0xf]
    %v166 = vld [vmem:[%s1 + $0x224] sm:$0xf]
    %v167 = vld [vmem:[%s1 + $0x228] sm:$0xf]
    %v168 = vld [vmem:[%s1 + $0x22c] sm:$0xf]
    %v169 = vld [vmem:[%s1 + $0x230] sm:$0xf]
    %v170 = vld [vmem:[%s1 + $0x234] sm:$0xf]
    %v171 = vld [vmem:[%s1 + $0x238] sm:$0xf]
    %v172 = vld [vmem:[%s1 + $0x23c] sm:$0xf]
    %v173 = vld [vmem:[%s1 + $0x240] sm:$0xf]
    %v174 = vld [vmem:[%s1 + $0x244] sm:$0xf]
    %v175 = vld [vmem:[%s1 + $0x248] sm:$0xf]
    %v176 = vld [vmem:[%s1 + $0x24c] sm:$0xf]
    %v177 = vld [vmem:[%s1 + $0x250] sm:$0xf]
    %v178 = vld [vmem:[%s1 + $0x254] sm:$0xf]
    %v179 = vld [vmem:[%s1 + $0x258] sm:$0xf]
    %v180 = vld [vmem:[%s1 + $0x25c] sm:$0xf]
    %v181 = vld [vmem:[%s1 + $0x260] sm:$0xf]
    %v182 = vld [vmem:[%s1 + $0x264] sm:$0xf]
    %v183 = vld [vmem:[%s1 + $0x268] sm:$0xf]
    %v184 = vld [vmem:[%s1 + $0x26c] sm:$0xf]
    %v185 = vld [vmem:[%s1 + $0x270] sm:$0xf]
    %v186 = vld [vmem:[%s1 + $0x274] sm:$0xf]
    %v187 = vld [vmem:[%s1 + $0x278] sm:$0xf]
    %v188 = vld [vmem:[%s1 + $0x27c] sm:$0xf]
    %v189 = vld [vmem:[%s1 + $0x280] sm:$0xf]
    %v190 = vld [vmem:[%s1 + $0x284] sm:$0xf]
    %v191 = vld [vmem:[%s1 + $0x288] sm:$0xf]
    %v192 = vld [vmem:[%s1 + $0x28c] sm:$0xf]
    %v193 = vld [vmem:[%s1 + $0x290] sm:$0xf]
    %v194 = vld [vmem:[%s1 + $0x294] sm:$0xf]
    %v195 = vld [vmem:[%s1 + $0x298] sm:$0xf]
    %v196 = vld [vmem:[%s1 + $0x29c] sm:$0xf]
    %v197 = vld [vmem:[%s1 + $0x2a0] sm:$0xf]
    %v198 = vld [vmem:[%s1 + $0x2a4] sm:$0xf]
    %v199 = vld [vmem:[%s1 + $0x2a8] sm:$0xf]
    %v200 = vld [vmem:[%s1 + $0x2ac] sm:$0xf]
    %v201 = vld [vmem:[%s1 + $0x2b0] sm:$0xf]
    %v202 = vld [vmem:[%s1 + $0x2b4] sm:$0xf]
    %v203 = vld [vmem:[%s1 + $0x2b8] sm:$0xf]
    %v204 = vld [vmem:[%s1 + $0x2bc] sm:$0xf]
    %v205 = vld [vmem:[%s1 + $0x2c0] sm:$0xf]
    %v206 = vld [vmem:[%s1 + $0x2c4] sm:$0xf]
    %v207 = vld [vmem:[%s1 + $0x2c8] sm:$0xf]
    %v208 = vld [vmem:[%s1 + $0x2cc] sm:$0xf]
    %v209 = vld [vmem:[%s1 + $0x2d0] sm:$0xf]
    %v210 = vld [vmem:[%s1 + $0x2d4] sm:$0xf]
    %v211 = vld [vmem:[%s1 + $0x2d8] sm:$0xf]
    %v212 = vld [vmem:[%s1 + $0x2dc] sm:$0xf]
    %v213 = vld [vmem:[%s1 + $0x2e0] sm:$0xf]
    %v214 = vld [vmem:[%s1 + $0x2e4] sm:$0xf]
    %v215 = vld [vmem:[%s1 + $0x2e8] sm:$0xf]
    %v216 = vld [vmem:[%s1 + $0x2ec] sm:$0xf]
    %v217 = vld [vmem:[%s1 + $0x2f0] sm:$0xf]
    %v218 = vld [vmem:[%s1 + $0x2f4] sm:$0xf]
    %v219 = vld [vmem:[%s1 + $0x2f8] sm:$0xf]
    %v220 = vld [vmem:[%s1 + $0x2fc] sm:$0xf]
    %v221 = vld [vmem:[%s1 + $0x300] sm:$0xf]
    %v222 = vld [vmem:[%s1 + $0x304] sm:$0xf]
    %v223 = vld [vmem:[%s1 + $0x308] sm:$0xf]
    %v224 = vld [vmem:[%s1 + $0x30c] sm:$0xf]
    %v225 = vld [vmem:[%s1 + $0x310] sm:$0xf]
    %v226 = vld [vmem:[%s1 + $0x314] sm:$0xf]
    %v227 = vld [vmem:[%s1 + $0x318] sm:$0xf]
    %v228 = vld [vmem:[%s1 + $0x31c] sm:$0xf]
    %v229 = vld [vmem:[%s1 + $0x320] sm:$0xf]
    %v230 = vld [vmem:[%s1 + $0x324] sm:$0xf]
    %v231 = vld [vmem:[%s1 + $0x328] sm:$0xf]
    %v232 = vld [vmem:[%s1 + $0x32c] sm:$0xf]
    %v233 = vld [vmem:[%s1 + $0x330] sm:$0xf]
    %v234 = vld [vmem:[%s1 + $0x334] sm:$0xf]
    %v235 = vld [vmem:[%s1 + $0x338] sm:$0xf]
    %v236 = vld [vmem:[%s1 + $0x33c] sm:$0xf]
    %v237 = vld [vmem:[%s1 + $0x340] sm:$0xf]
    %v238 = vld [vmem:[%s1 + $0x344] sm:$0xf]
    %v239 = vld [vmem:[%s1 + $0x348] sm:$0xf]
    %v240 = vld [vmem:[%s1 + $0x34c] sm:$0xf]
    %v241 = vld [vmem:[%s1 + $0x350] sm:$0xf]
    %v242 = vld [vmem:[%s1 + $0x354] sm:$0xf]
    %v243 = vld [vmem:[%s1 + $0x358] sm:$0xf]
    %v244 = vld [vmem:[%s1 + $0x35c] sm:$0xf]
    %v245 = vld [vmem:[%s1 + $0x360] sm:$0xf]
    %v246 = vld [vmem:[%s1 + $0x364] sm:$0xf]
    %v247 = vld [vmem:[%s1 + $0x368] sm:$0xf]
    %v248 = vld [vmem:[%s1 + $0x36c] sm:$0xf]
    %v249 = vld [vmem:[%s1 + $0x370] sm:$0xf]
    %v250 = vld [vmem:[%s1 + $0x374] sm:$0xf]
    %v251 = vld [vmem:[%s1 + $0x378] sm:$0xf]
    %v252 = vld [vmem:[%s1 + $0x37c] sm:$0xf]
    %v253 = vld [vmem:[%s1 + $0x380] sm:$0xf]
    %v254 = vld [vmem:[%s1 + $0x384] sm:$0xf]
    %v255 = vld [vmem:[%s1 + $0x388] sm:$0xf]
    %v256 = vld [vmem:[%s1 + $0x38c] sm:$0xf]
    %v257 = vld [vmem:[%s1 + $0x390] sm:$0xf]
    %v258 = vld [vmem:[%s1 + $0x394] sm:$0xf]
    %v259 = vld [vmem:[%s1 + $0x398] sm:$0xf]
    %v260 = vld [vmem:[%s1 + $0x39c] sm:$0xf]
    %v261 = vld [vmem:[%s1 + $0x3a0] sm:$0xf]
    %v262 = vld [vmem:[%s1 + $0x3a4] sm:$0xf]
    %v263 = vld [vmem:[%s1 + $0x3a8] sm:$0xf]
    %v264 = vld [vmem:[%s1 + $0x3ac] sm:$0xf]
    %v265 = vld [vmem:[%s1 + $0x3b0] sm:$0xf]
    %v266 = vld [vmem:[%s1 + $0x3b4] sm:$0xf]
    %v267 = vld [vmem:[%s1 + $0x3b8] sm:$0xf]
    %v268 = vld [vmem:[%s1 + $0x3bc] sm:$0xf]
    %v269 = vld [vmem:[%s1 + $0x3c0] sm:$0xf]
    %v270 = vld [vmem:[%s1 + $0x3c4] sm:$0xf]
    %v271 = vld [vmem:[%s1 + $0x3c8] sm:$0xf]
    %v272 = vld [vmem:[%s1 + $0x3cc] sm:$0xf]
    %v273 = vld [vmem:[%s1 + $0x3d0] sm:$0xf]
    %v274 = vld [vmem:[%s1 + $0x3d4] sm:$0xf]
    %v275 = vld [vmem:[%s1 + $0x3d8] sm:$0xf]
    %v276 = vld [vmem:[%s1 + $0x3dc] sm:$0xf]
    %v277 = vld [vmem:[%s1 + $0x3e0] sm:$0xf]
    %v278 = vld [vmem:[%s1 + $0x3e4] sm:$0xf]
    %v279 = vld [vmem:[%s1 + $0x3e8] sm:$0xf]
    %v280 = vld [vmem:[%s1 + $0x3ec] sm:$0xf]
    %v281 = vld [vmem:[%s1 + $0x3f0] sm:$0xf]
    %v282 = vld [vmem:[%s1 + $0x3f4] sm:$0xf]
    %v283 = vld [vmem:[%s1 + $0x3f8] sm:$0xf]
    %v284 = vld [vmem:[%s1 + $0x3fc] sm:$0xf]
    %v285 = vld [vmem:[%s1 + $0x400] sm:$0xf]
    %v286 = vld [vmem:[%s1 + $0x404] sm:$0xf]
    %v287 = vld [vmem:[%s1 + $0x408] sm:$0xf]
    %v288 = vld [vmem:[%s1 + $0x40c] sm:$0xf]
    %v289 = vld [vmem:[%s1 + $0x410] sm:$0xf]
    %v290 = vld [vmem:[%s1 + $0x414] sm:$0xf]
    %v291 = vld [vmem:[%s1 + $0x418] sm:$0xf]
    %v292 = vld [vmem:[%s1 + $0x41c] sm:$0xf]
    %v293 = vld [vmem:[%s1 + $0x420] sm:$0xf]
    %v294 = vld [vmem:[%s1 + $0x424] sm:$0xf]
    %v295 = vld [vmem:[%s1 + $0x428] sm:$0xf]
    %v296 = vld [vmem:[%s1 + $0x42c] sm:$0xf]
    %v297 = vld [vmem:[%s1 + $0x430] sm:$0xf]
    %v298 = vld [vmem:[%s1 + $0x434] sm:$0xf]
    %v299 = vld [vmem:[%s1 + $0x438] sm:$0xf]
    %v300 = vld [vmem:[%s1 + $0x43c] sm:$0xf]
    %v301 = vld [vmem:[%s1 + $0x440] sm:$0xf]
    %v302 = vld [vmem:[%s1 + $0x444] sm:$0xf]
    %v303 = vld [vmem:[%s1 + $0x448] sm:$0xf]
    %v304 = vld [vmem:[%s1 + $0x44c] sm:$0xf]
    %v305 = vld [vmem:[%s1 + $0x450] sm:$0xf]
    %v306 = vld [vmem:[%s1 + $0x454] sm:$0xf]
    %v307 = vld [vmem:[%s1 + $0x458] sm:$0xf]
    %v308 = vld [vmem:[%s1 + $0x45c] sm:$0xf]
    %v309 = vld [vmem:[%s1 + $0x460] sm:$0xf]
    %v310 = vld [vmem:[%s1 + $0x464] sm:$0xf]
    %v311 = vld [vmem:[%s1 + $0x468] sm:$0xf]
    %v312 = vld [vmem:[%s1 + $0x46c] sm:$0xf]
    %v313 = vld [vmem:[%s1 + $0x470] sm:$0xf]
    %v314 = vld [vmem:[%s1 + $0x474] sm:$0xf]
    %v315 = vld [vmem:[%s1 + $0x478] sm:$0xf]
    %v316 = vld [vmem:[%s1 + $0x47c] sm:$0xf]
    %v317 = vld [vmem:[%s1 + $0x480] sm:$0xf]
    %v318 = vld [vmem:[%s1 + $0x484] sm:$0xf]
    %v319 = vld [vmem:[%s1 + $0x488] sm:$0xf]
    %v320 = vld [vmem:[%s1 + $0x48c] sm:$0xf]
    %v321 = vld [vmem:[%s1 + $0x490] sm:$0xf]
    %v322 = vld [vmem:[%s1 + $0x494] sm:$0xf]
    %v323 = vld [vmem:[%s1 + $0x498] sm:$0xf]
    %v324 = vld [vmem:[%s1 + $0x49c] sm:$0xf]
    %v325 = vld [vmem:[%s1 + $0x4a0] sm:$0xf]
    %v326 = vld [vmem:[%s1 + $0x4a4] sm:$0xf]
    %v327 = vld [vmem:[%s1 + $0x4a8] sm:$0xf]
    %v328 = vld [vmem:[%s1 + $0x4ac] sm:$0xf]
    %v329 = vld [vmem:[%s1 + $0x4b0] sm:$0xf]
    %v330 = vld [vmem:[%s1 + $0x4b4] sm:$0xf]
    %v331 = vld [vmem:[%s1 + $0x4b8] sm:$0xf]
    %v332 = vld [vmem:[%s1 + $0x4bc] sm:$0xf]
    %v333 = vld [vmem:[%s1 + $0x4c0] sm:$0xf]
    %v334 = vld [vmem:[%s1 + $0x4c4] sm:$0xf]
    %v335 = vld [vmem:[%s1 + $0x4c8] sm:$0xf]
    %v336 = vld [vmem:[%s1 + $0x4cc] sm:$0xf]
    %v337 = vld [vmem:[%s1 + $0x4d0] sm:$0xf]
    %v338 = vld [vmem:[%s1 + $0x4d4] sm:$0xf]
    %v339 = vld [vmem:[%s1 + $0x4d8] sm:$0xf]
    %v340 = vld [vmem:[%s1 + $0x4dc] sm:$0xf]
    %v341 = vld [vmem:[%s1 + $0x4e0] sm:$0xf]
    %v342 = vld [vmem:[%s1 + $0x4e4] sm:$0xf]
    %v343 = vld [vmem:[%s1 + $0x4e8] sm:$0xf]
    %v344 = vld [vmem:[%s1 + $0x4ec] sm:$0xf]
    %v345 = vld [vmem:[%s1 + $0x4f0] sm:$0xf]
    %v346 = vld [vmem:[%s1 + $0x4f4] sm:$0xf]
    %v347 = vld [vmem:[%s1 + $0x4f8] sm:$0xf]
    %v348 = vld [vmem:[%s1 + $0x4fc] sm:$0xf]
    %v349 = vld [vmem:[%s1 + $0x500] sm:$0xf]
    %v350 = vld [vmem:[%s1 + $0x504] sm:$0xf]
    %v351 = vld [vmem:[%s1 + $0x508] sm:$0xf]
    %v352 = vld [vmem:[%s1 + $0x50c] sm:$0xf]
    %v353 = vld [vmem:[%s1 + $0x510] sm:$0xf]
    %v354 = vld [vmem:[%s1 + $0x514] sm:$0xf]
    %v355 = vld [vmem:[%s1 + $0x518] sm:$0xf]
    %v356 = vld [vmem:[%s1 + $0x51c] sm:$0xf]
    %v357 = vld [vmem:[%s1 + $0x520] sm:$0xf]
    %v358 = vld [vmem:[%s1 + $0x524] sm:$0xf]
    %v359 = vld [vmem:[%s1 + $0x528] sm:$0xf]
    %v360 = vld [vmem:[%s1 + $0x52c] sm:$0xf]
    %v361 = vld [vmem:[%s1 + $0x530] sm:$0xf]
    %v362 = vld [vmem:[%s1 + $0x534] sm:$0xf]
    %v363 = vld [vmem:[%s1 + $0x538] sm:$0xf]
    %v364 = vld [vmem:[%s1 + $0x53c] sm:$0xf]
    %v365 = vld [vmem:[%s1 + $0x540] sm:$0xf]
    %v366 = vld [vmem:[%s1 + $0x544] sm:$0xf]
    %v367 = vld [vmem:[%s1 + $0x548] sm:$0xf]
    %v368 = vld [vmem:[%s1 + $0x54c] sm:$0xf]
    %v369 = vld [vmem:[%s1 + $0x550] sm:$0xf]
    %v370 = vld [vmem:[%s1 + $0x554] sm:$0xf]
    %v371 = vld [vmem:[%s1 + $0x558] sm:$0xf]
    %v372 = vld [vmem:[%s1 + $0x55c] sm:$0xf]
    %v373 = vld [vmem:[%s1 + $0x560] sm:$0xf]
    %v374 = vld [vmem:[%s1 + $0x564] sm:$0xf]
    %v375 = vld [vmem:[%s1 + $0x568] sm:$0xf]
    %v376 = vld [vmem:[%s1 + $0x56c] sm:$0xf]
    %v377 = vld [vmem:[%s1 + $0x570] sm:$0xf]
    %v378 = vld [vmem:[%s1 + $0x574] sm:$0xf]
    %v379 = vld [vmem:[%s1 + $0x578] sm:$0xf]
    %v380 = vld [vmem:[%s1 + $0x57c] sm:$0xf]
    %v381 = vld [vmem:[%s1 + $0x580] sm:$0xf]
    %v382 = vld [vmem:[%s1 + $0x584] sm:$0xf]
    %v383 = vld [vmem:[%s1 + $0x588] sm:$0xf]
    %v384 = vld [vmem:[%s1 + $0x58c] sm:$0xf]
    %v385 = vld [vmem:[%s1 + $0x590] sm:$0xf]
    %v386 = vld [vmem:[%s1 + $0x594] sm:$0xf]
    %v387 = vld [vmem:[%s1 + $0x598] sm:$0xf]
    %v388 = vld [vmem:[%s1 + $0x59c] sm:$0xf]
    %v389 = vld [vmem:[%s1 + $0x5a0] sm:$0xf]
    %v390 = vld [vmem:[%s1 + $0x5a4] sm:$0xf]
    %v391 = vld [vmem:[%s1 + $0x5a8] sm:$0xf]
    %v392 = vld [vmem:[%s1 + $0x5ac] sm:$0xf]
    %v393 = vld [vmem:[%s1 + $0x5b0] sm:$0xf]
    %v394 = vld [vmem:[%s1 + $0x5b4] sm:$0xf]
    %v395 = vld [vmem:[%s1 + $0x5b8] sm:$0xf]
    %v396 = vld [vmem:[%s1 + $0x5bc] sm:$0xf]
    %v397 = vld [vmem:[%s1 + $0x5c0] sm:$0xf]
    %v398 = vld [vmem:[%s1 + $0x5c4] sm:$0xf]
    %v399 = vld [vmem:[%s1 + $0x5c8] sm:$0xf]
    %v400 = vld [vmem:[%s1 + $0x5cc] sm:$0xf]
    %v401 = vld [vmem:[%s1 + $0x5d0] sm:$0xf]
    %v402 = vld [vmem:[%s1 + $0x5d4] sm:$0xf]
    %v403 = vld [vmem:[%s1 + $0x5d8] sm:$0xf]
    %v404 = vld [vmem:[%s1 + $0x5dc] sm:$0xf]
    %v405 = vld [vmem:[%s1 + $0x5e0] sm:$0xf]
    %v406 = vld [vmem:[%s1 + $0x5e4] sm:$0xf]
    %v407 = vld [vmem:[%s1 + $0x5e8] sm:$0xf]
    %v408 = vld [vmem:[%s1 + $0x5ec] sm:$0xf]
    %v409 = vld [vmem:[%s1 + $0x5f0] sm:$0xf]
    %v410 = vld [vmem:[%s1 + $0x5f4] sm:$0xf]
    %v411 = vld [vmem:[%s1 + $0x5f8] sm:$0xf]
    %v412 = vld [vmem:[%s1 + $0x5fc] sm:$0xf]
    %v413 = vld [vmem:[%s1 + $0x600] sm:$0xf]
    %v414 = vld [vmem:[%s1 + $0x604] sm:$0xf]
    %v415 = vld [vmem:[%s1 + $0x608] sm:$0xf]
    %v416 = vld [vmem:[%s1 + $0x60c] sm:$0xf]
    %v417 = vld [vmem:[%s1 + $0x610] sm:$0xf]
    %v418 = vld [vmem:[%s1 + $0x614] sm:$0xf]
    %v419 = vld [vmem:[%s1 + $0x618] sm:$0xf]
    %v420 = vld [vmem:[%s1 + $0x61c] sm:$0xf]
    %v421 = vld [vmem:[%s2] sm:$0x1]
    %v423 = vlaneseq
    %v424 = vshrl.u32 %v423, 7
    %v425 = vsub.s32 0, %v424
    %v426 = vrot.slane %v421, %v425
    %v432 = vcombine.high %v25, %v25
    %v434 = vunpack.c.l.s4 1966171168
    %v435 = vunpack.c.0.s8 %v434
    %v436 = vlaneseq
    %v437 = vshrl.u32 %v436, 7
    %v438 = vsub.s32 %v435, %v437
    %v439 = vrot.slane %v25, %v438
    %v441 = vunpack.c.l.s4 1966171168
    %v442 = vunpack.c.0.s8 %v441
    %v443 = vlaneseq
    %v444 = vshrl.u32 %v443, 7
    %v445 = vsub.s32 %v442, %v444
    %v446 = vrot.slane %v432, %v445
    %v447 = vcombine.high %v439, %v439
    %v448 = vcombine.high %v446, %v446
    %v450 = vunpack.c.l.s4 1966171168
    %v451 = vunpack.c.0.s8 %v450
    %v452 = vlaneseq
    %v453 = vshrl.u32 %v452, 7
    %v454 = vsub.s32 %v451, %v453
    %v455 = vrot.slane %v439, %v454
    %v457 = vunpack.c.l.s4 1966171168
    %v458 = vunpack.c.0.s8 %v457
    %v459 = vlaneseq
    %v460 = vshrl.u32 %v459, 7
    %v461 = vsub.s32 %v458, %v460
    %v462 = vrot.slane %v446, %v461
    %v464 = vunpack.c.l.s4 1966171168
    %v465 = vunpack.c.0.s8 %v464
    %v466 = vlaneseq
    %v467 = vshrl.u32 %v466, 7
    %v468 = vsub.s32 %v465, %v467
    %v469 = vrot.slane %v447, %v468
    %v471 = vunpack.c.l.s4 1966171168
    %v472 = vunpack.c.0.s8 %v471
    %v473 = vlaneseq
    %v474 = vshrl.u32 %v473, 7
    %v475 = vsub.s32 %v472, %v474
    %v476 = vrot.slane %v448, %v475
    %v477 = vcombine.high %v455, %v455
    %v478 = vcombine.high %v462, %v462
    %v479 = vcombine.high %v469, %v469
    %v480 = vcombine.high %v476, %v476
    %v481 = vcombine.high %v26, %v26
    %v483 = vunpack.c.l.s4 1966171168
    %v484 = vunpack.c.0.s8 %v483
    %v485 = vlaneseq
    %v486 = vshrl.u32 %v485, 7
    %v487 = vsub.s32 %v484, %v486
    %v488 = vrot.slane %v26, %v487
    %v490 = vunpack.c.l.s4 1966171168
    %v491 = vunpack.c.0.s8 %v490
    %v492 = vlaneseq
    %v493 = vshrl.u32 %v492, 7
    %v494 = vsub.s32 %v491, %v493
    %v495 = vrot.slane %v481, %v494
    %v496 = vcombine.high %v488, %v488
    %v497 = vcombine.high %v495, %v495
    %v499 = vunpack.c.l.s4 1966171168
    %v500 = vunpack.c.0.s8 %v499
    %v501 = vlaneseq
    %v502 = vshrl.u32 %v501, 7
    %v503 = vsub.s32 %v500, %v502
    %v504 = vrot.slane %v488, %v503
    %v506 = vunpack.c.l.s4 1966171168
    %v507 = vunpack.c.0.s8 %v506
    %v508 = vlaneseq
    %v509 = vshrl.u32 %v508, 7
    %v510 = vsub.s32 %v507, %v509
    %v511 = vrot.slane %v495, %v510
    %v513 = vunpack.c.l.s4 1966171168
    %v514 = vunpack.c.0.s8 %v513
    %v515 = vlaneseq
    %v516 = vshrl.u32 %v515, 7
    %v517 = vsub.s32 %v514, %v516
    %v518 = vrot.slane %v496, %v517
    %v520 = vunpack.c.l.s4 1966171168
    %v521 = vunpack.c.0.s8 %v520
    %v522 = vlaneseq
    %v523 = vshrl.u32 %v522, 7
    %v524 = vsub.s32 %v521, %v523
    %v525 = vrot.slane %v497, %v524
    %v526 = vcombine.high %v504, %v504
    %v527 = vcombine.high %v511, %v511
    %v528 = vcombine.high %v518, %v518
    %v529 = vcombine.high %v525, %v525
    %v530 = vcombine.high %v27, %v27
    %v532 = vunpack.c.l.s4 1966171168
    %v533 = vunpack.c.0.s8 %v532
    %v534 = vlaneseq
    %v535 = vshrl.u32 %v534, 7
    %v536 = vsub.s32 %v533, %v535
    %v537 = vrot.slane %v27, %v536
    %v539 = vunpack.c.l.s4 1966171168
    %v540 = vunpack.c.0.s8 %v539
    %v541 = vlaneseq
    %v542 = vshrl.u32 %v541, 7
    %v543 = vsub.s32 %v540, %v542
    %v544 = vrot.slane %v530, %v543
    %v545 = vcombine.high %v537, %v537
    %v546 = vcombine.high %v544, %v544
    %v548 = vunpack.c.l.s4 1966171168
    %v549 = vunpack.c.0.s8 %v548
    %v550 = vlaneseq
    %v551 = vshrl.u32 %v550, 7
    %v552 = vsub.s32 %v549, %v551
    %v553 = vrot.slane %v537, %v552
    %v555 = vunpack.c.l.s4 1966171168
    %v556 = vunpack.c.0.s8 %v555
    %v557 = vlaneseq
    %v558 = vshrl.u32 %v557, 7
    %v559 = vsub.s32 %v556, %v558
    %v560 = vrot.slane %v544, %v559
    %v562 = vunpack.c.l.s4 1966171168
    %v563 = vunpack.c.0.s8 %v562
    %v564 = vlaneseq
    %v565 = vshrl.u32 %v564, 7
    %v566 = vsub.s32 %v563, %v565
    %v567 = vrot.slane %v545, %v566
    %v569 = vunpack.c.l.s4 1966171168
    %v570 = vunpack.c.0.s8 %v569
    %v571 = vlaneseq
    %v572 = vshrl.u32 %v571, 7
    %v573 = vsub.s32 %v570, %v572
    %v574 = vrot.slane %v546, %v573
    %v575 = vcombine.high %v553, %v553
    %v576 = vcombine.high %v560, %v560
    %v577 = vcombine.high %v567, %v567
    %v578 = vcombine.high %v574, %v574
    %v580 = vunpack.c.l.s4 1966171168
    %v581 = vunpack.c.0.s8 %v580
    %v582 = vlaneseq
    %v583 = vshrl.u32 %v582, 7
    %v584 = vsub.s32 %v581, %v583
    %v585 = vrot.slane %v28, %v584
    %v587 = vunpack.c.l.s4 1966171168
    %v588 = vunpack.c.0.s8 %v587
    %v589 = vlaneseq
    %v590 = vshrl.u32 %v589, 7
    %v591 = vsub.s32 %v588, %v590
    %v592 = vrot.slane %v585, %v591
    %v1009 = vunpack.c.l.b16 %v29
    %v1010 = vunpack.c.l.b16 %v30
    %v1011 = vunpack.c.l.b16 %v31
    %v1012 = vunpack.c.l.b16 %v32
    %v1013 = vunpack.c.l.b16 %v33
    %v1014 = vunpack.c.l.b16 %v34
    %v1015 = vunpack.c.l.b16 %v35
    %v1016 = vunpack.c.l.b16 %v36
    %v1017 = vunpack.c.l.b16 %v37
    %v1018 = vunpack.c.l.b16 %v38
    %v1019 = vunpack.c.l.b16 %v39
    %v1020 = vunpack.c.l.b16 %v40
    %v1021 = vunpack.c.l.b16 %v41
    %v1022 = vunpack.c.l.b16 %v42
    %v1023 = vunpack.c.l.b16 %v43
    %v1024 = vunpack.c.l.b16 %v44
    %v1025 = vunpack.c.l.b16 %v45
    %v1026 = vunpack.c.l.b16 %v46
    %v1027 = vunpack.c.l.b16 %v47
    %v1028 = vunpack.c.l.b16 %v48
    %v1029 = vunpack.c.l.b16 %v49
    %v1030 = vunpack.c.l.b16 %v50
    %v1031 = vunpack.c.l.b16 %v51
    %v1032 = vunpack.c.l.b16 %v52
    %v1033 = vunpack.c.l.b16 %v53
    %v1034 = vunpack.c.l.b16 %v54
    %v1035 = vunpack.c.l.b16 %v55
    %v1036 = vunpack.c.l.b16 %v56
    %v1037 = vunpack.c.l.b16 %v57
    %v1038 = vunpack.c.l.b16 %v58
    %v1039 = vunpack.c.l.b16 %v59
    %v1040 = vunpack.c.l.b16 %v60
    %v1041 = vunpack.c.l.b16 %v61
    %v1042 = vunpack.c.l.b16 %v62
    %v1043 = vunpack.c.l.b16 %v63
    %v1044 = vunpack.c.l.b16 %v64
    %v1045 = vunpack.c.l.b16 %v65
    %v1046 = vunpack.c.l.b16 %v66
    %v1047 = vunpack.c.l.b16 %v67
    %v1048 = vunpack.c.l.b16 %v68
    %v1049 = vunpack.c.l.b16 %v69
    %v1050 = vunpack.c.l.b16 %v70
    %v1051 = vunpack.c.l.b16 %v71
    %v1052 = vunpack.c.l.b16 %v72
    %v1053 = vunpack.c.l.b16 %v73
    %v1054 = vunpack.c.l.b16 %v74
    %v1055 = vunpack.c.l.b16 %v75
    %v1056 = vunpack.c.l.b16 %v76
    %v1057 = vunpack.c.l.b16 %v77
    %v1058 = vunpack.c.l.b16 %v78
    %v1059 = vunpack.c.l.b16 %v79
    %v1060 = vunpack.c.l.b16 %v80
    %v1061 = vunpack.c.l.b16 %v81
    %v1062 = vunpack.c.l.b16 %v82
    %v1063 = vunpack.c.l.b16 %v83
    %v1064 = vunpack.c.l.b16 %v84
    %v1065 = vunpack.c.l.b16 %v85
    %v1066 = vunpack.c.l.b16 %v86
    %v1067 = vunpack.c.l.b16 %v87
    %v1068 = vunpack.c.l.b16 %v88
    %v1069 = vunpack.c.l.b16 %v89
    %v1070 = vunpack.c.l.b16 %v90
    %v1071 = vunpack.c.l.b16 %v91
    %v1072 = vunpack.c.l.b16 %v92
    %v1073 = vunpack.c.l.b16 %v93
    %v1074 = vunpack.c.l.b16 %v94
    %v1075 = vunpack.c.l.b16 %v95
    %v1076 = vunpack.c.l.b16 %v96
    %v1077 = vunpack.c.l.b16 %v97
    %v1078 = vunpack.c.l.b16 %v98
    %v1079 = vunpack.c.l.b16 %v99
    %v1080 = vunpack.c.l.b16 %v100
    %v1081 = vunpack.c.l.b16 %v101
    %v1082 = vunpack.c.l.b16 %v102
    %v1083 = vunpack.c.l.b16 %v103
    %v1084 = vunpack.c.l.b16 %v104
    %v1085 = vunpack.c.l.b16 %v105
    %v1086 = vunpack.c.l.b16 %v106
    %v1087 = vunpack.c.l.b16 %v107
    %v1088 = vunpack.c.l.b16 %v108
    %v1089 = vunpack.c.l.b16 %v109
    %v1090 = vunpack.c.l.b16 %v110
    %v1091 = vunpack.c.l.b16 %v111
    %v1092 = vunpack.c.l.b16 %v112
    %v1093 = vunpack.c.l.b16 %v113
    %v1094 = vunpack.c.l.b16 %v114
    %v1095 = vunpack.c.l.b16 %v115
    %v1096 = vunpack.c.l.b16 %v116
    %v1097 = vunpack.c.l.b16 %v117
    %v1098 = vunpack.c.l.b16 %v118
    %v1099 = vunpack.c.l.b16 %v119
    %v1100 = vunpack.c.l.b16 %v120
    %v1101 = vunpack.c.l.b16 %v121
    %v1102 = vunpack.c.l.b16 %v122
    %v1103 = vunpack.c.l.b16 %v123
    %v1104 = vunpack.c.l.b16 %v124
    %v1105 = vunpack.c.l.b16 %v125
    %v1106 = vunpack.c.l.b16 %v126
    %v1107 = vunpack.c.l.b16 %v127
    %v1108 = vunpack.c.l.b16 %v128
    %v1109 = vunpack.c.l.b16 %v129
    %v1110 = vunpack.c.l.b16 %v130
    %v1111 = vunpack.c.l.b16 %v131
    %v1112 = vunpack.c.l.b16 %v132
    %v1113 = vunpack.c.l.b16 %v133
    %v1114 = vunpack.c.l.b16 %v134
    %v1115 = vunpack.c.l.b16 %v135
    %v1116 = vunpack.c.l.b16 %v136
    %v1117 = vunpack.c.l.b16 %v137
    %v1118 = vunpack.c.l.b16 %v138
    %v1119 = vunpack.c.l.b16 %v139
    %v1120 = vunpack.c.l.b16 %v140
    %v1121 = vunpack.c.l.b16 %v141
    %v1122 = vunpack.c.l.b16 %v142
    %v1123 = vunpack.c.l.b16 %v143
    %v1124 = vunpack.c.l.b16 %v144
    %v1125 = vunpack.c.l.b16 %v145
    %v1126 = vunpack.c.l.b16 %v146
    %v1127 = vunpack.c.l.b16 %v147
    %v1128 = vunpack.c.l.b16 %v148
    %v1129 = vunpack.c.l.b16 %v149
    %v1130 = vunpack.c.l.b16 %v150
    %v1131 = vunpack.c.l.b16 %v151
    %v1132 = vunpack.c.l.b16 %v152
    %v1133 = vunpack.c.l.b16 %v153
    %v1134 = vunpack.c.l.b16 %v154
    %v1135 = vunpack.c.l.b16 %v155
    %v1136 = vunpack.c.l.b16 %v156
    %v1137 = vunpack.c.l.b16 %v157
    %v1138 = vunpack.c.l.b16 %v158
    %v1139 = vunpack.c.l.b16 %v159
    %v1140 = vunpack.c.l.b16 %v160
    %v1141 = vunpack.c.l.b16 %v161
    %v1142 = vunpack.c.l.b16 %v162
    %v1143 = vunpack.c.l.b16 %v163
    %v1144 = vunpack.c.l.b16 %v164
    %v1145 = vunpack.c.l.b16 %v165
    %v1146 = vunpack.c.l.b16 %v166
    %v1147 = vunpack.c.l.b16 %v167
    %v1148 = vunpack.c.l.b16 %v168
    %v1149 = vunpack.c.l.b16 %v169
    %v1150 = vunpack.c.l.b16 %v170
    %v1151 = vunpack.c.l.b16 %v171
    %v1152 = vunpack.c.l.b16 %v172
    %v1153 = vunpack.c.l.b16 %v173
    %v1154 = vunpack.c.l.b16 %v174
    %v1155 = vunpack.c.l.b16 %v175
    %v1156 = vunpack.c.l.b16 %v176
    %v1157 = vunpack.c.l.b16 %v177
    %v1158 = vunpack.c.l.b16 %v178
    %v1159 = vunpack.c.l.b16 %v179
    %v1160 = vunpack.c.l.b16 %v180
    %v1161 = vunpack.c.l.b16 %v181
    %v1162 = vunpack.c.l.b16 %v182
    %v1163 = vunpack.c.l.b16 %v183
    %v1164 = vunpack.c.l.b16 %v184
    %v1165 = vunpack.c.l.b16 %v185
    %v1166 = vunpack.c.l.b16 %v186
    %v1167 = vunpack.c.l.b16 %v187
    %v1168 = vunpack.c.l.b16 %v188
    %v1169 = vunpack.c.l.b16 %v189
    %v1170 = vunpack.c.l.b16 %v190
    %v1171 = vunpack.c.l.b16 %v191
    %v1172 = vunpack.c.l.b16 %v192
    %v1173 = vunpack.c.l.b16 %v193
    %v1174 = vunpack.c.l.b16 %v194
    %v1175 = vunpack.c.l.b16 %v195
    %v1176 = vunpack.c.l.b16 %v196
    %v1177 = vunpack.c.l.b16 %v197
    %v1178 = vunpack.c.l.b16 %v198
    %v1179 = vunpack.c.l.b16 %v199
    %v1180 = vunpack.c.l.b16 %v200
    %v1181 = vunpack.c.l.b16 %v201
    %v1182 = vunpack.c.l.b16 %v202
    %v1183 = vunpack.c.l.b16 %v203
    %v1184 = vunpack.c.l.b16 %v204
    %v1185 = vunpack.c.l.b16 %v205
    %v1186 = vunpack.c.l.b16 %v206
    %v1187 = vunpack.c.l.b16 %v207
    %v1188 = vunpack.c.l.b16 %v208
    %v1189 = vunpack.c.l.b16 %v209
    %v1190 = vunpack.c.l.b16 %v210
    %v1191 = vunpack.c.l.b16 %v211
    %v1192 = vunpack.c.l.b16 %v212
    %v1193 = vunpack.c.l.b16 %v213
    %v1194 = vunpack.c.l.b16 %v214
    %v1195 = vunpack.c.l.b16 %v215
    %v1196 = vunpack.c.l.b16 %v216
    %v1197 = vunpack.c.l.b16 %v217
    %v1198 = vunpack.c.l.b16 %v218
    %v1199 = vunpack.c.l.b16 %v219
    %v1200 = vunpack.c.l.b16 %v220
    %v1201 = vunpack.c.l.b16 %v221
    %v1202 = vunpack.c.l.b16 %v222
    %v1203 = vunpack.c.l.b16 %v223
    %v1204 = vunpack.c.l.b16 %v224
    %v1205 = vunpack.c.l.b16 %v225
    %v1206 = vunpack.c.l.b16 %v226
    %v1207 = vunpack.c.l.b16 %v227
    %v1208 = vunpack.c.l.b16 %v228
    %v1209 = vunpack.c.l.b16 %v229
    %v1210 = vunpack.c.l.b16 %v230
    %v1211 = vunpack.c.l.b16 %v231
    %v1212 = vunpack.c.l.b16 %v232
    %v1213 = vunpack.c.l.b16 %v233
    %v1214 = vunpack.c.l.b16 %v234
    %v1215 = vunpack.c.l.b16 %v235
    %v1216 = vunpack.c.l.b16 %v236
    %v1217 = vunpack.c.l.b16 %v237
    %v1218 = vunpack.c.l.b16 %v238
    %v1219 = vunpack.c.l.b16 %v239
    %v1220 = vunpack.c.l.b16 %v240
    %v1221 = vunpack.c.l.b16 %v241
    %v1222 = vunpack.c.l.b16 %v242
    %v1223 = vunpack.c.l.b16 %v243
    %v1224 = vunpack.c.l.b16 %v244
    %v1225 = vunpack.c.l.b16 %v245
    %v1226 = vunpack.c.l.b16 %v246
    %v1227 = vunpack.c.l.b16 %v247
    %v1228 = vunpack.c.l.b16 %v248
    %v1229 = vunpack.c.l.b16 %v249
    %v1230 = vunpack.c.l.b16 %v250
    %v1231 = vunpack.c.l.b16 %v251
    %v1232 = vunpack.c.l.b16 %v252
    %v1233 = vunpack.c.l.b16 %v253
    %v1234 = vunpack.c.l.b16 %v254
    %v1235 = vunpack.c.l.b16 %v255
    %v1236 = vunpack.c.l.b16 %v256
    %v1237 = vunpack.c.l.b16 %v257
    %v1238 = vunpack.c.l.b16 %v258
    %v1239 = vunpack.c.l.b16 %v259
    %v1240 = vunpack.c.l.b16 %v260
    %v1241 = vunpack.c.l.b16 %v261
    %v1242 = vunpack.c.l.b16 %v262
    %v1243 = vunpack.c.l.b16 %v263
    %v1244 = vunpack.c.l.b16 %v264
    %v1245 = vunpack.c.l.b16 %v265
    %v1246 = vunpack.c.l.b16 %v266
    %v1247 = vunpack.c.l.b16 %v267
    %v1248 = vunpack.c.l.b16 %v268
    %v1249 = vunpack.c.l.b16 %v269
    %v1250 = vunpack.c.l.b16 %v270
    %v1251 = vunpack.c.l.b16 %v271
    %v1252 = vunpack.c.l.b16 %v272
    %v1253 = vunpack.c.l.b16 %v273
    %v1254 = vunpack.c.l.b16 %v274
    %v1255 = vunpack.c.l.b16 %v275
    %v1256 = vunpack.c.l.b16 %v276
    %v1257 = vunpack.c.l.b16 %v277
    %v1258 = vunpack.c.l.b16 %v278
    %v1259 = vunpack.c.l.b16 %v279
    %v1260 = vunpack.c.l.b16 %v280
    %v1261 = vunpack.c.l.b16 %v281
    %v1262 = vunpack.c.l.b16 %v282
    %v1263 = vunpack.c.l.b16 %v283
    %v1264 = vunpack.c.l.b16 %v284
    %v1265 = vunpack.c.l.b16 %v285
    %v1266 = vunpack.c.l.b16 %v286
    %v1267 = vunpack.c.l.b16 %v287
    %v1268 = vunpack.c.l.b16 %v288
    %v1269 = vunpack.c.l.b16 %v289
    %v1270 = vunpack.c.l.b16 %v290
    %v1271 = vunpack.c.l.b16 %v291
    %v1272 = vunpack.c.l.b16 %v292
    %v1273 = vunpack.c.l.b16 %v293
    %v1274 = vunpack.c.l.b16 %v294
    %v1275 = vunpack.c.l.b16 %v295
    %v1276 = vunpack.c.l.b16 %v296
    %v1277 = vunpack.c.l.b16 %v297
    %v1278 = vunpack.c.l.b16 %v298
    %v1279 = vunpack.c.l.b16 %v299
    %v1280 = vunpack.c.l.b16 %v300
    %v1281 = vunpack.c.l.b16 %v301
    %v1282 = vunpack.c.l.b16 %v302
    %v1283 = vunpack.c.l.b16 %v303
    %v1284 = vunpack.c.l.b16 %v304
    %v1285 = vunpack.c.l.b16 %v305
    %v1286 = vunpack.c.l.b16 %v306
    %v1287 = vunpack.c.l.b16 %v307
    %v1288 = vunpack.c.l.b16 %v308
    %v1289 = vunpack.c.l.b16 %v309
    %v1290 = vunpack.c.l.b16 %v310
    %v1291 = vunpack.c.l.b16 %v311
    %v1292 = vunpack.c.l.b16 %v312
    %v1293 = vunpack.c.l.b16 %v313
    %v1294 = vunpack.c.l.b16 %v314
    %v1295 = vunpack.c.l.b16 %v315
    %v1296 = vunpack.c.l.b16 %v316
    %v1297 = vunpack.c.l.b16 %v317
    %v1298 = vunpack.c.l.b16 %v318
    %v1299 = vunpack.c.l.b16 %v319
    %v1300 = vunpack.c.l.b16 %v320
    %v1301 = vunpack.c.l.b16 %v321
    %v1302 = vunpack.c.l.b16 %v322
    %v1303 = vunpack.c.l.b16 %v323
    %v1304 = vunpack.c.l.b16 %v324
    %v1305 = vunpack.c.l.b16 %v325
    %v1306 = vunpack.c.l.b16 %v326
    %v1307 = vunpack.c.l.b16 %v327
    %v1308 = vunpack.c.l.b16 %v328
    %v1309 = vunpack.c.l.b16 %v329
    %v1310 = vunpack.c.l.b16 %v330
    %v1311 = vunpack.c.l.b16 %v331
    %v1312 = vunpack.c.l.b16 %v332
    %v1313 = vunpack.c.l.b16 %v333
    %v1314 = vunpack.c.l.b16 %v334
    %v1315 = vunpack.c.l.b16 %v335
    %v1316 = vunpack.c.l.b16 %v336
    %v1317 = vunpack.c.l.b16 %v337
    %v1318 = vunpack.c.l.b16 %v338
    %v1319 = vunpack.c.l.b16 %v339
    %v1320 = vunpack.c.l.b16 %v340
    %v1321 = vunpack.c.l.b16 %v341
    %v1322 = vunpack.c.l.b16 %v342
    %v1323 = vunpack.c.l.b16 %v343
    %v1324 = vunpack.c.l.b16 %v344
    %v1325 = vunpack.c.l.b16 %v345
    %v1326 = vunpack.c.l.b16 %v346
    %v1327 = vunpack.c.l.b16 %v347
    %v1328 = vunpack.c.l.b16 %v348
    %v1329 = vunpack.c.l.b16 %v349
    %v1330 = vunpack.c.l.b16 %v350
    %v1331 = vunpack.c.l.b16 %v351
    %v1332 = vunpack.c.l.b16 %v352
    %v1333 = vunpack.c.l.b16 %v353
    %v1334 = vunpack.c.l.b16 %v354
    %v1335 = vunpack.c.l.b16 %v355
    %v1336 = vunpack.c.l.b16 %v356
    %v1337 = vunpack.c.l.b16 %v357
    %v1338 = vunpack.c.l.b16 %v358
    %v1339 = vunpack.c.l.b16 %v359
    %v1340 = vunpack.c.l.b16 %v360
    %v1341 = vunpack.c.l.b16 %v361
    %v1342 = vunpack.c.l.b16 %v362
    %v1343 = vunpack.c.l.b16 %v363
    %v1344 = vunpack.c.l.b16 %v364
    %v1345 = vunpack.c.l.b16 %v365
    %v1346 = vunpack.c.l.b16 %v366
    %v1347 = vunpack.c.l.b16 %v367
    %v1348 = vunpack.c.l.b16 %v368
    %v1349 = vunpack.c.l.b16 %v369
    %v1350 = vunpack.c.l.b16 %v370
    %v1351 = vunpack.c.l.b16 %v371
    %v1352 = vunpack.c.l.b16 %v372
    %v1353 = vunpack.c.l.b16 %v373
    %v1354 = vunpack.c.l.b16 %v374
    %v1355 = vunpack.c.l.b16 %v375
    %v1356 = vunpack.c.l.b16 %v376
    %v1357 = vunpack.c.l.b16 %v377
    %v1358 = vunpack.c.l.b16 %v378
    %v1359 = vunpack.c.l.b16 %v379
    %v1360 = vunpack.c.l.b16 %v380
    %v1361 = vunpack.c.l.b16 %v381
    %v1362 = vunpack.c.l.b16 %v382
    %v1363 = vunpack.c.l.b16 %v383
    %v1364 = vunpack.c.l.b16 %v384
    %v1365 = vunpack.c.l.b16 %v385
    %v1366 = vunpack.c.l.b16 %v386
    %v1367 = vunpack.c.l.b16 %v387
    %v1368 = vunpack.c.l.b16 %v388
    %v1369 = vunpack.c.l.b16 %v389
    %v1370 = vunpack.c.l.b16 %v390
    %v1371 = vunpack.c.l.b16 %v391
    %v1372 = vunpack.c.l.b16 %v392
    %v1373 = vunpack.c.l.b16 %v393
    %v1374 = vunpack.c.l.b16 %v394
    %v1375 = vunpack.c.l.b16 %v395
    %v1376 = vunpack.c.l.b16 %v396
    %v1377 = vunpack.c.l.b16 %v397
    %v1378 = vunpack.c.l.b16 %v398
    %v1379 = vunpack.c.l.b16 %v399
    %v1380 = vunpack.c.l.b16 %v400
    %v1381 = vunpack.c.l.b16 %v401
    %v1382 = vunpack.c.l.b16 %v402
    %v1383 = vunpack.c.l.b16 %v403
    %v1384 = vunpack.c.l.b16 %v404
    %v1385 = vunpack.c.l.b16 %v405
    %v1386 = vunpack.c.l.b16 %v406
    %v1387 = vunpack.c.l.b16 %v407
    %v1388 = vunpack.c.l.b16 %v408
    %v1389 = vunpack.c.l.b16 %v409
    %v1390 = vunpack.c.l.b16 %v410
    %v1391 = vunpack.c.l.b16 %v411
    %v1392 = vunpack.c.l.b16 %v412
    %v1393 = vunpack.c.l.b16 %v413
    %v1394 = vunpack.c.l.b16 %v414
    %v1395 = vunpack.c.l.b16 %v415
    %v1396 = vunpack.c.l.b16 %v416
    %v1397 = vunpack.c.l.b16 %v417
    %v1398 = vunpack.c.l.b16 %v418
    %v1399 = vunpack.c.l.b16 %v419
    %v1400 = vunpack.c.l.b16 %v420
    %v1401 = vpack.c.b16 %v1010, %v1009
    %v1402 = vpack.c.b16 %v1012, %v1011
    %v1403 = vpack.c.b16 %v1014, %v1013
    %v1404 = vpack.c.b16 %v1016, %v1015
    %v1405 = vpack.c.b16 %v1018, %v1017
    %v1406 = vpack.c.b16 %v1020, %v1019
    %v1407 = vpack.c.b16 %v1022, %v1021
    %v1408 = vpack.c.b16 %v1024, %v1023
    %v1409 = vpack.c.b16 %v1026, %v1025
    %v1410 = vpack.c.b16 %v1028, %v1027
    %v1411 = vpack.c.b16 %v1030, %v1029
    %v1412 = vpack.c.b16 %v1032, %v1031
    %v1413 = vpack.c.b16 %v1034, %v1033
    %v1414 = vpack.c.b16 %v1036, %v1035
    %v1415 = vpack.c.b16 %v1038, %v1037
    %v1416 = vpack.c.b16 %v1040, %v1039
    %v1417 = vpack.c.b16 %v1042, %v1041
    %v1418 = vpack.c.b16 %v1044, %v1043
    %v1419 = vpack.c.b16 %v1046, %v1045
    %v1420 = vpack.c.b16 %v1048, %v1047
    %v1421 = vpack.c.b16 %v1050, %v1049
    %v1422 = vpack.c.b16 %v1052, %v1051
    %v1423 = vpack.c.b16 %v1054, %v1053
    %v1424 = vpack.c.b16 %v1056, %v1055
    %v1425 = vpack.c.b16 %v1058, %v1057
    %v1426 = vpack.c.b16 %v1060, %v1059
    %v1427 = vpack.c.b16 %v1062, %v1061
    %v1428 = vpack.c.b16 %v1064, %v1063
    %v1429 = vpack.c.b16 %v1066, %v1065
    %v1430 = vpack.c.b16 %v1068, %v1067
    %v1431 = vpack.c.b16 %v1070, %v1069
    %v1432 = vpack.c.b16 %v1072, %v1071
    %v1433 = vpack.c.b16 %v1074, %v1073
    %v1434 = vpack.c.b16 %v1076, %v1075
    %v1435 = vpack.c.b16 %v1078, %v1077
    %v1436 = vpack.c.b16 %v1080, %v1079
    %v1437 = vpack.c.b16 %v1082, %v1081
    %v1438 = vpack.c.b16 %v1084, %v1083
    %v1439 = vpack.c.b16 %v1086, %v1085
    %v1440 = vpack.c.b16 %v1088, %v1087
    %v1441 = vpack.c.b16 %v1090, %v1089
    %v1442 = vpack.c.b16 %v1092, %v1091
    %v1443 = vpack.c.b16 %v1094, %v1093
    %v1444 = vpack.c.b16 %v1096, %v1095
    %v1445 = vpack.c.b16 %v1098, %v1097
    %v1446 = vpack.c.b16 %v1100, %v1099
    %v1447 = vpack.c.b16 %v1102, %v1101
    %v1448 = vpack.c.b16 %v1104, %v1103
    %v1449 = vpack.c.b16 %v1106, %v1105
    %v1450 = vpack.c.b16 %v1108, %v1107
    %v1451 = vpack.c.b16 %v1110, %v1109
    %v1452 = vpack.c.b16 %v1112, %v1111
    %v1453 = vpack.c.b16 %v1114, %v1113
    %v1454 = vpack.c.b16 %v1116, %v1115
    %v1455 = vpack.c.b16 %v1118, %v1117
    %v1456 = vpack.c.b16 %v1120, %v1119
    %v1457 = vpack.c.b16 %v1122, %v1121
    %v1458 = vpack.c.b16 %v1124, %v1123
    %v1459 = vpack.c.b16 %v1126, %v1125
    %v1460 = vpack.c.b16 %v1128, %v1127
    %v1461 = vpack.c.b16 %v1130, %v1129
    %v1462 = vpack.c.b16 %v1132, %v1131
    %v1463 = vpack.c.b16 %v1134, %v1133
    %v1464 = vpack.c.b16 %v1136, %v1135
    %v1465 = vpack.c.b16 %v1138, %v1137
    %v1466 = vpack.c.b16 %v1140, %v1139
    %v1467 = vpack.c.b16 %v1142, %v1141
    %v1468 = vpack.c.b16 %v1144, %v1143
    %v1469 = vpack.c.b16 %v1146, %v1145
    %v1470 = vpack.c.b16 %v1148, %v1147
    %v1471 = vpack.c.b16 %v1150, %v1149
    %v1472 = vpack.c.b16 %v1152, %v1151
    %v1473 = vpack.c.b16 %v1154, %v1153
    %v1474 = vpack.c.b16 %v1156, %v1155
    %v1475 = vpack.c.b16 %v1158, %v1157
    %v1476 = vpack.c.b16 %v1160, %v1159
    %v1477 = vpack.c.b16 %v1162, %v1161
    %v1478 = vpack.c.b16 %v1164, %v1163
    %v1479 = vpack.c.b16 %v1166, %v1165
    %v1480 = vpack.c.b16 %v1168, %v1167
    %v1481 = vpack.c.b16 %v1170, %v1169
    %v1482 = vpack.c.b16 %v1172, %v1171
    %v1483 = vpack.c.b16 %v1174, %v1173
    %v1484 = vpack.c.b16 %v1176, %v1175
    %v1485 = vpack.c.b16 %v1178, %v1177
    %v1486 = vpack.c.b16 %v1180, %v1179
    %v1487 = vpack.c.b16 %v1182, %v1181
    %v1488 = vpack.c.b16 %v1184, %v1183
    %v1489 = vpack.c.b16 %v1186, %v1185
    %v1490 = vpack.c.b16 %v1188, %v1187
    %v1491 = vpack.c.b16 %v1190, %v1189
    %v1492 = vpack.c.b16 %v1192, %v1191
    %v1493 = vpack.c.b16 %v1194, %v1193
    %v1494 = vpack.c.b16 %v1196, %v1195
    %v1495 = vpack.c.b16 %v1198, %v1197
    %v1496 = vpack.c.b16 %v1200, %v1199
    %v1497 = vpack.c.b16 %v1202, %v1201
    %v1498 = vpack.c.b16 %v1204, %v1203
    %v1499 = vpack.c.b16 %v1206, %v1205
    %v1500 = vpack.c.b16 %v1208, %v1207
    %v1501 = vpack.c.b16 %v1210, %v1209
    %v1502 = vpack.c.b16 %v1212, %v1211
    %v1503 = vpack.c.b16 %v1214, %v1213
    %v1504 = vpack.c.b16 %v1216, %v1215
    %v1505 = vpack.c.b16 %v1218, %v1217
    %v1506 = vpack.c.b16 %v1220, %v1219
    %v1507 = vpack.c.b16 %v1222, %v1221
    %v1508 = vpack.c.b16 %v1224, %v1223
    %v1509 = vpack.c.b16 %v1226, %v1225
    %v1510 = vpack.c.b16 %v1228, %v1227
    %v1511 = vpack.c.b16 %v1230, %v1229
    %v1512 = vpack.c.b16 %v1232, %v1231
    %v1513 = vpack.c.b16 %v1234, %v1233
    %v1514 = vpack.c.b16 %v1236, %v1235
    %v1515 = vpack.c.b16 %v1238, %v1237
    %v1516 = vpack.c.b16 %v1240, %v1239
    %v1517 = vpack.c.b16 %v1242, %v1241
    %v1518 = vpack.c.b16 %v1244, %v1243
    %v1519 = vpack.c.b16 %v1246, %v1245
    %v1520 = vpack.c.b16 %v1248, %v1247
    %v1521 = vpack.c.b16 %v1250, %v1249
    %v1522 = vpack.c.b16 %v1252, %v1251
    %v1523 = vpack.c.b16 %v1254, %v1253
    %v1524 = vpack.c.b16 %v1256, %v1255
    %v1525 = vpack.c.b16 %v1258, %v1257
    %v1526 = vpack.c.b16 %v1260, %v1259
    %v1527 = vpack.c.b16 %v1262, %v1261
    %v1528 = vpack.c.b16 %v1264, %v1263
    %v1529 = vpack.c.b16 %v1266, %v1265
    %v1530 = vpack.c.b16 %v1268, %v1267
    %v1531 = vpack.c.b16 %v1270, %v1269
    %v1532 = vpack.c.b16 %v1272, %v1271
    %v1533 = vpack.c.b16 %v1274, %v1273
    %v1534 = vpack.c.b16 %v1276, %v1275
    %v1535 = vpack.c.b16 %v1278, %v1277
    %v1536 = vpack.c.b16 %v1280, %v1279
    %v1537 = vpack.c.b16 %v1282, %v1281
    %v1538 = vpack.c.b16 %v1284, %v1283
    %v1539 = vpack.c.b16 %v1286, %v1285
    %v1540 = vpack.c.b16 %v1288, %v1287
    %v1541 = vpack.c.b16 %v1290, %v1289
    %v1542 = vpack.c.b16 %v1292, %v1291
    %v1543 = vpack.c.b16 %v1294, %v1293
    %v1544 = vpack.c.b16 %v1296, %v1295
    %v1545 = vpack.c.b16 %v1298, %v1297
    %v1546 = vpack.c.b16 %v1300, %v1299
    %v1547 = vpack.c.b16 %v1302, %v1301
    %v1548 = vpack.c.b16 %v1304, %v1303
    %v1549 = vpack.c.b16 %v1306, %v1305
    %v1550 = vpack.c.b16 %v1308, %v1307
    %v1551 = vpack.c.b16 %v1310, %v1309
    %v1552 = vpack.c.b16 %v1312, %v1311
    %v1553 = vpack.c.b16 %v1314, %v1313
    %v1554 = vpack.c.b16 %v1316, %v1315
    %v1555 = vpack.c.b16 %v1318, %v1317
    %v1556 = vpack.c.b16 %v1320, %v1319
    %v1557 = vpack.c.b16 %v1322, %v1321
    %v1558 = vpack.c.b16 %v1324, %v1323
    %v1559 = vpack.c.b16 %v1326, %v1325
    %v1560 = vpack.c.b16 %v1328, %v1327
    %v1561 = vpack.c.b16 %v1330, %v1329
    %v1562 = vpack.c.b16 %v1332, %v1331
    %v1563 = vpack.c.b16 %v1334, %v1333
    %v1564 = vpack.c.b16 %v1336, %v1335
    %v1565 = vpack.c.b16 %v1338, %v1337
    %v1566 = vpack.c.b16 %v1340, %v1339
    %v1567 = vpack.c.b16 %v1342, %v1341
    %v1568 = vpack.c.b16 %v1344, %v1343
    %v1569 = vpack.c.b16 %v1346, %v1345
    %v1570 = vpack.c.b16 %v1348, %v1347
    %v1571 = vpack.c.b16 %v1350, %v1349
    %v1572 = vpack.c.b16 %v1352, %v1351
    %v1573 = vpack.c.b16 %v1354, %v1353
    %v1574 = vpack.c.b16 %v1356, %v1355
    %v1575 = vpack.c.b16 %v1358, %v1357
    %v1576 = vpack.c.b16 %v1360, %v1359
    %v1577 = vpack.c.b16 %v1362, %v1361
    %v1578 = vpack.c.b16 %v1364, %v1363
    %v1579 = vpack.c.b16 %v1366, %v1365
    %v1580 = vpack.c.b16 %v1368, %v1367
    %v1581 = vpack.c.b16 %v1370, %v1369
    %v1582 = vpack.c.b16 %v1372, %v1371
    %v1583 = vpack.c.b16 %v1374, %v1373
    %v1584 = vpack.c.b16 %v1376, %v1375
    %v1585 = vpack.c.b16 %v1378, %v1377
    %v1586 = vpack.c.b16 %v1380, %v1379
    %v1587 = vpack.c.b16 %v1382, %v1381
    %v1588 = vpack.c.b16 %v1384, %v1383
    %v1589 = vpack.c.b16 %v1386, %v1385
    %v1590 = vpack.c.b16 %v1388, %v1387
    %v1591 = vpack.c.b16 %v1390, %v1389
    %v1592 = vpack.c.b16 %v1392, %v1391
    %v1593 = vpack.c.b16 %v1394, %v1393
    %v1594 = vpack.c.b16 %v1396, %v1395
    %v1595 = vpack.c.b16 %v1398, %v1397
    %v1596 = vpack.c.b16 %v1400, %v1399
    %vm1793 = vcmask 523264
    %v1795 = vsel %vm1793, %v592, 0
    %1797 = vmatprep.subr.bf16.mxu0 0
    %1798 = vmatpush1.bf16.msra.mxu0 %v1401
    %1799 = vmatprep.subr.bf16.mxu0 0
    %1800 = vmatpush1.bf16.msra.mxu0 %v1402
    %1801 = vmatprep.subr.bf16.mxu0 0
    %1802 = vmatpush1.bf16.msra.mxu0 %v1403
    %1803 = vmatprep.subr.bf16.mxu0 0
    %1804 = vmatpush1.bf16.msra.mxu0 %v1404
    %1805 = vmatprep.subr.bf16.mxu0 0
    %1806 = vmatpush1.bf16.msra.mxu0 %v1405
    %1807 = vmatprep.subr.bf16.mxu0 0
    %1808 = vmatpush1.bf16.msra.mxu0 %v1406
    %1809 = vmatprep.subr.bf16.mxu0 0
    %1810 = vmatpush1.bf16.msra.mxu0 %v1407
    %1811 = vmatprep.subr.bf16.mxu0 0
    %1812 = vmatpush1.bf16.msra.mxu0 %v1408
    %1813 = vmatprep.subr.bf16.mxu0 0
    %1814 = vmatpush1.bf16.msra.mxu0 %v1409
    %1815 = vmatprep.subr.bf16.mxu0 0
    %1816 = vmatpush1.bf16.msra.mxu0 %v1410
    %1817 = vmatprep.subr.bf16.mxu0 0
    %1818 = vmatpush1.bf16.msra.mxu0 %v1411
    %1819 = vmatprep.subr.bf16.mxu0 0
    %1820 = vmatpush1.bf16.msra.mxu0 %v1412
    %1821 = vmatprep.subr.bf16.mxu0 0
    %1822 = vmatpush1.bf16.msra.mxu0 %v1413
    %1823 = vmatprep.subr.bf16.mxu0 0
    %1824 = vmatpush1.bf16.msra.mxu0 %v1414
    %1825 = vmatprep.subr.bf16.mxu0 0
    %1826 = vmatpush1.bf16.msra.mxu0 %v1415
    %1827 = vmatprep.subr.bf16.mxu0 0
    %1828 = vmatpush1.bf16.msra.mxu0 %v1416
    %1829 = vmatprep.mubr.bf16.mxu0 %v469
    %1830 = vmatmul.mubr.bf16.gmra.mrb[0].mxu0 %v455
    %v1831 = vpop.f32.mrb[0].mxu0
    %v1832 = vadd.f32 %v426, %v1831
    %v1833 = vpop.f32.mrb[0].mxu0
    %v1834 = vpop.f32.mrb[0].mxu0
    %v1835 = vpop.f32.mrb[0].mxu0
    %1836 = vdwg.mxu0
    %1837 = vmatprep.subr.bf16.mxu0 0
    %1838 = vmatpush1.bf16.msra.mxu0 %v1417
    %1839 = vmatprep.subr.bf16.mxu0 0
    %1840 = vmatpush1.bf16.msra.mxu0 %v1418
    %1841 = vmatprep.subr.bf16.mxu0 0
    %1842 = vmatpush1.bf16.msra.mxu0 %v1419
    %1843 = vmatprep.subr.bf16.mxu0 0
    %1844 = vmatpush1.bf16.msra.mxu0 %v1420
    %1845 = vmatprep.subr.bf16.mxu0 0
    %1846 = vmatpush1.bf16.msra.mxu0 %v1421
    %1847 = vmatprep.subr.bf16.mxu0 0
    %1848 = vmatpush1.bf16.msra.mxu0 %v1422
    %1849 = vmatprep.subr.bf16.mxu0 0
    %1850 = vmatpush1.bf16.msra.mxu0 %v1423
    %1851 = vmatprep.subr.bf16.mxu0 0
    %1852 = vmatpush1.bf16.msra.mxu0 %v1424
    %1853 = vmatprep.subr.bf16.mxu0 0
    %1854 = vmatpush1.bf16.msra.mxu0 %v1425
    %1855 = vmatprep.subr.bf16.mxu0 0
    %1856 = vmatpush1.bf16.msra.mxu0 %v1426
    %1857 = vmatprep.subr.bf16.mxu0 0
    %1858 = vmatpush1.bf16.msra.mxu0 %v1427
    %1859 = vmatprep.subr.bf16.mxu0 0
    %1860 = vmatpush1.bf16.msra.mxu0 %v1428
    %1861 = vmatprep.subr.bf16.mxu0 0
    %1862 = vmatpush1.bf16.msra.mxu0 %v1429
    %1863 = vmatprep.subr.bf16.mxu0 0
    %1864 = vmatpush1.bf16.msra.mxu0 %v1430
    %1865 = vmatprep.subr.bf16.mxu0 0
    %1866 = vmatpush1.bf16.msra.mxu0 %v1431
    %1867 = vmatprep.subr.bf16.mxu0 0
    %1868 = vmatpush1.bf16.msra.mxu0 %v1432
    %1869 = vmatprep.mubr.bf16.mxu0 %v479
    %1870 = vmatmul.mubr.bf16.gmra.mrb[0].mxu0 %v477
    %v1871 = vpop.f32.mrb[0].mxu0
    %v1872 = vadd.f32 %v1832, %v1871
    %v1873 = vpop.f32.mrb[0].mxu0
    %v1874 = vpop.f32.mrb[0].mxu0
    %v1875 = vpop.f32.mrb[0].mxu0
    %1876 = vdwg.mxu0
    %1877 = vmatprep.subr.bf16.mxu0 0
    %1878 = vmatpush1.bf16.msra.mxu0 %v1433
    %1879 = vmatprep.subr.bf16.mxu0 0
    %1880 = vmatpush1.bf16.msra.mxu0 %v1434
    %1881 = vmatprep.subr.bf16.mxu0 0
    %1882 = vmatpush1.bf16.msra.mxu0 %v1435
    %1883 = vmatprep.subr.bf16.mxu0 0
    %1884 = vmatpush1.bf16.msra.mxu0 %v1436
    %1885 = vmatprep.subr.bf16.mxu0 0
    %1886 = vmatpush1.bf16.msra.mxu0 %v1437
    %1887 = vmatprep.subr.bf16.mxu0 0
    %1888 = vmatpush1.bf16.msra.mxu0 %v1438
    %1889 = vmatprep.subr.bf16.mxu0 0
    %1890 = vmatpush1.bf16.msra.mxu0 %v1439
    %1891 = vmatprep.subr.bf16.mxu0 0
    %1892 = vmatpush1.bf16.msra.mxu0 %v1440
    %1893 = vmatprep.subr.bf16.mxu0 0
    %1894 = vmatpush1.bf16.msra.mxu0 %v1441
    %1895 = vmatprep.subr.bf16.mxu0 0
    %1896 = vmatpush1.bf16.msra.mxu0 %v1442
    %1897 = vmatprep.subr.bf16.mxu0 0
    %1898 = vmatpush1.bf16.msra.mxu0 %v1443
    %1899 = vmatprep.subr.bf16.mxu0 0
    %1900 = vmatpush1.bf16.msra.mxu0 %v1444
    %1901 = vmatprep.subr.bf16.mxu0 0
    %1902 = vmatpush1.bf16.msra.mxu0 %v1445
    %1903 = vmatprep.subr.bf16.mxu0 0
    %1904 = vmatpush1.bf16.msra.mxu0 %v1446
    %1905 = vmatprep.subr.bf16.mxu0 0
    %1906 = vmatpush1.bf16.msra.mxu0 %v1447
    %1907 = vmatprep.subr.bf16.mxu0 0
    %1908 = vmatpush1.bf16.msra.mxu0 %v1448
    %1909 = vmatprep.mubr.bf16.mxu0 %v476
    %1910 = vmatmul.mubr.bf16.gmra.mrb[0].mxu0 %v462
    %v1911 = vpop.f32.mrb[0].mxu0
    %v1912 = vadd.f32 %v1872, %v1911
    %v1913 = vpop.f32.mrb[0].mxu0
    %v1914 = vpop.f32.mrb[0].mxu0
    %v1915 = vpop.f32.mrb[0].mxu0
    %1916 = vdwg.mxu0
    %1917 = vmatprep.subr.bf16.mxu0 0
    %1918 = vmatpush1.bf16.msra.mxu0 %v1449
    %1919 = vmatprep.subr.bf16.mxu0 0
    %1920 = vmatpush1.bf16.msra.mxu0 %v1450
    %1921 = vmatprep.subr.bf16.mxu0 0
    %1922 = vmatpush1.bf16.msra.mxu0 %v1451
    %1923 = vmatprep.subr.bf16.mxu0 0
    %1924 = vmatpush1.bf16.msra.mxu0 %v1452
    %1925 = vmatprep.subr.bf16.mxu0 0
    %1926 = vmatpush1.bf16.msra.mxu0 %v1453
    %1927 = vmatprep.subr.bf16.mxu0 0
    %1928 = vmatpush1.bf16.msra.mxu0 %v1454
    %1929 = vmatprep.subr.bf16.mxu0 0
    %1930 = vmatpush1.bf16.msra.mxu0 %v1455
    %1931 = vmatprep.subr.bf16.mxu0 0
    %1932 = vmatpush1.bf16.msra.mxu0 %v1456
    %1933 = vmatprep.subr.bf16.mxu0 0
    %1934 = vmatpush1.bf16.msra.mxu0 %v1457
    %1935 = vmatprep.subr.bf16.mxu0 0
    %1936 = vmatpush1.bf16.msra.mxu0 %v1458
    %1937 = vmatprep.subr.bf16.mxu0 0
    %1938 = vmatpush1.bf16.msra.mxu0 %v1459
    %1939 = vmatprep.subr.bf16.mxu0 0
    %1940 = vmatpush1.bf16.msra.mxu0 %v1460
    %1941 = vmatprep.subr.bf16.mxu0 0
    %1942 = vmatpush1.bf16.msra.mxu0 %v1461
    %1943 = vmatprep.subr.bf16.mxu0 0
    %1944 = vmatpush1.bf16.msra.mxu0 %v1462
    %1945 = vmatprep.subr.bf16.mxu0 0
    %1946 = vmatpush1.bf16.msra.mxu0 %v1463
    %1947 = vmatprep.subr.bf16.mxu0 0
    %1948 = vmatpush1.bf16.msra.mxu0 %v1464
    %1949 = vmatprep.mubr.bf16.mxu0 %v480
    %1950 = vmatmul.mubr.bf16.gmra.mrb[0].mxu0 %v478
    %v1951 = vpop.f32.mrb[0].mxu0
    %v1952 = vadd.f32 %v1912, %v1951
    %v1953 = vpop.f32.mrb[0].mxu0
    %v1954 = vpop.f32.mrb[0].mxu0
    %v1955 = vpop.f32.mrb[0].mxu0
    %1956 = vdwg.mxu0
    %1957 = vmatprep.subr.bf16.mxu0 0
    %1958 = vmatpush1.bf16.msra.mxu0 %v1465
    %1959 = vmatprep.subr.bf16.mxu0 0
    %1960 = vmatpush1.bf16.msra.mxu0 %v1466
    %1961 = vmatprep.subr.bf16.mxu0 0
    %1962 = vmatpush1.bf16.msra.mxu0 %v1467
    %1963 = vmatprep.subr.bf16.mxu0 0
    %1964 = vmatpush1.bf16.msra.mxu0 %v1468
    %1965 = vmatprep.subr.bf16.mxu0 0
    %1966 = vmatpush1.bf16.msra.mxu0 %v1469
    %1967 = vmatprep.subr.bf16.mxu0 0
    %1968 = vmatpush1.bf16.msra.mxu0 %v1470
    %1969 = vmatprep.subr.bf16.mxu0 0
    %1970 = vmatpush1.bf16.msra.mxu0 %v1471
    %1971 = vmatprep.subr.bf16.mxu0 0
    %1972 = vmatpush1.bf16.msra.mxu0 %v1472
    %1973 = vmatprep.subr.bf16.mxu0 0
    %1974 = vmatpush1.bf16.msra.mxu0 %v1473
    %1975 = vmatprep.subr.bf16.mxu0 0
    %1976 = vmatpush1.bf16.msra.mxu0 %v1474
    %1977 = vmatprep.subr.bf16.mxu0 0
    %1978 = vmatpush1.bf16.msra.mxu0 %v1475
    %1979 = vmatprep.subr.bf16.mxu0 0
    %1980 = vmatpush1.bf16.msra.mxu0 %v1476
    %1981 = vmatprep.subr.bf16.mxu0 0
    %1982 = vmatpush1.bf16.msra.mxu0 %v1477
    %1983 = vmatprep.subr.bf16.mxu0 0
    %1984 = vmatpush1.bf16.msra.mxu0 %v1478
    %1985 = vmatprep.subr.bf16.mxu0 0
    %1986 = vmatpush1.bf16.msra.mxu0 %v1479
    %1987 = vmatprep.subr.bf16.mxu0 0
    %1988 = vmatpush1.bf16.msra.mxu0 %v1480
    %1989 = vmatprep.mubr.bf16.mxu0 %v518
    %1990 = vmatmul.mubr.bf16.gmra.mrb[0].mxu0 %v504
    %v1991 = vpop.f32.mrb[0].mxu0
    %v1992 = vadd.f32 %v1952, %v1991
    %v1993 = vpop.f32.mrb[0].mxu0
    %v1994 = vpop.f32.mrb[0].mxu0
    %v1995 = vpop.f32.mrb[0].mxu0
    %1996 = vdwg.mxu0
    %1997 = vmatprep.subr.bf16.mxu0 0
    %1998 = vmatpush1.bf16.msra.mxu0 %v1481
    %1999 = vmatprep.subr.bf16.mxu0 0
    %2000 = vmatpush1.bf16.msra.mxu0 %v1482
    %2001 = vmatprep.subr.bf16.mxu0 0
    %2002 = vmatpush1.bf16.msra.mxu0 %v1483
    %2003 = vmatprep.subr.bf16.mxu0 0
    %2004 = vmatpush1.bf16.msra.mxu0 %v1484
    %2005 = vmatprep.subr.bf16.mxu0 0
    %2006 = vmatpush1.bf16.msra.mxu0 %v1485
    %2007 = vmatprep.subr.bf16.mxu0 0
    %2008 = vmatpush1.bf16.msra.mxu0 %v1486
    %2009 = vmatprep.subr.bf16.mxu0 0
    %2010 = vmatpush1.bf16.msra.mxu0 %v1487
    %2011 = vmatprep.subr.bf16.mxu0 0
    %2012 = vmatpush1.bf16.msra.mxu0 %v1488
    %2013 = vmatprep.subr.bf16.mxu0 0
    %2014 = vmatpush1.bf16.msra.mxu0 %v1489
    %2015 = vmatprep.subr.bf16.mxu0 0
    %2016 = vmatpush1.bf16.msra.mxu0 %v1490
    %2017 = vmatprep.subr.bf16.mxu0 0
    %2018 = vmatpush1.bf16.msra.mxu0 %v1491
    %2019 = vmatprep.subr.bf16.mxu0 0
    %2020 = vmatpush1.bf16.msra.mxu0 %v1492
    %2021 = vmatprep.subr.bf16.mxu0 0
    %2022 = vmatpush1.bf16.msra.mxu0 %v1493
    %2023 = vmatprep.subr.bf16.mxu0 0
    %2024 = vmatpush1.bf16.msra.mxu0 %v1494
    %2025 = vmatprep.subr.bf16.mxu0 0
    %2026 = vmatpush1.bf16.msra.mxu0 %v1495
    %2027 = vmatprep.subr.bf16.mxu0 0
    %2028 = vmatpush1.bf16.msra.mxu0 %v1496
    %2029 = vmatprep.mubr.bf16.mxu0 %v528
    %2030 = vmatmul.mubr.bf16.gmra.mrb[0].mxu0 %v526
    %v2031 = vpop.f32.mrb[0].mxu0
    %v2032 = vadd.f32 %v1992, %v2031
    %v2033 = vpop.f32.mrb[0].mxu0
    %v2034 = vpop.f32.mrb[0].mxu0
    %v2035 = vpop.f32.mrb[0].mxu0
    %2036 = vdwg.mxu0
    %2037 = vmatprep.subr.bf16.mxu0 0
    %2038 = vmatpush1.bf16.msra.mxu0 %v1497
    %2039 = vmatprep.subr.bf16.mxu0 0
    %2040 = vmatpush1.bf16.msra.mxu0 %v1498
    %2041 = vmatprep.subr.bf16.mxu0 0
    %2042 = vmatpush1.bf16.msra.mxu0 %v1499
    %2043 = vmatprep.subr.bf16.mxu0 0
    %2044 = vmatpush1.bf16.msra.mxu0 %v1500
    %2045 = vmatprep.subr.bf16.mxu0 0
    %2046 = vmatpush1.bf16.msra.mxu0 %v1501
    %2047 = vmatprep.subr.bf16.mxu0 0
    %2048 = vmatpush1.bf16.msra.mxu0 %v1502
    %2049 = vmatprep.subr.bf16.mxu0 0
    %2050 = vmatpush1.bf16.msra.mxu0 %v1503
    %2051 = vmatprep.subr.bf16.mxu0 0
    %2052 = vmatpush1.bf16.msra.mxu0 %v1504
    %2053 = vmatprep.subr.bf16.mxu0 0
    %2054 = vmatpush1.bf16.msra.mxu0 %v1505
    %2055 = vmatprep.subr.bf16.mxu0 0
    %2056 = vmatpush1.bf16.msra.mxu0 %v1506
    %2057 = vmatprep.subr.bf16.mxu0 0
    %2058 = vmatpush1.bf16.msra.mxu0 %v1507
    %2059 = vmatprep.subr.bf16.mxu0 0
    %2060 = vmatpush1.bf16.msra.mxu0 %v1508
    %2061 = vmatprep.subr.bf16.mxu0 0
    %2062 = vmatpush1.bf16.msra.mxu0 %v1509
    %2063 = vmatprep.subr.bf16.mxu0 0
    %2064 = vmatpush1.bf16.msra.mxu0 %v1510
    %2065 = vmatprep.subr.bf16.mxu0 0
    %2066 = vmatpush1.bf16.msra.mxu0 %v1511
    %2067 = vmatprep.subr.bf16.mxu0 0
    %2068 = vmatpush1.bf16.msra.mxu0 %v1512
    %2069 = vmatprep.mubr.bf16.mxu0 %v525
    %2070 = vmatmul.mubr.bf16.gmra.mrb[0].mxu0 %v511
    %v2071 = vpop.f32.mrb[0].mxu0
    %v2072 = vadd.f32 %v2032, %v2071
    %v2073 = vpop.f32.mrb[0].mxu0
    %v2074 = vpop.f32.mrb[0].mxu0
    %v2075 = vpop.f32.mrb[0].mxu0
    %2076 = vdwg.mxu0
    %2077 = vmatprep.subr.bf16.mxu0 0
    %2078 = vmatpush1.bf16.msra.mxu0 %v1513
    %2079 = vmatprep.subr.bf16.mxu0 0
    %2080 = vmatpush1.bf16.msra.mxu0 %v1514
    %2081 = vmatprep.subr.bf16.mxu0 0
    %2082 = vmatpush1.bf16.msra.mxu0 %v1515
    %2083 = vmatprep.subr.bf16.mxu0 0
    %2084 = vmatpush1.bf16.msra.mxu0 %v1516
    %2085 = vmatprep.subr.bf16.mxu0 0
    %2086 = vmatpush1.bf16.msra.mxu0 %v1517
    %2087 = vmatprep.subr.bf16.mxu0 0
    %2088 = vmatpush1.bf16.msra.mxu0 %v1518
    %2089 = vmatprep.subr.bf16.mxu0 0
    %2090 = vmatpush1.bf16.msra.mxu0 %v1519
    %2091 = vmatprep.subr.bf16.mxu0 0
    %2092 = vmatpush1.bf16.msra.mxu0 %v1520
    %2093 = vmatprep.subr.bf16.mxu0 0
    %2094 = vmatpush1.bf16.msra.mxu0 %v1521
    %2095 = vmatprep.subr.bf16.mxu0 0
    %2096 = vmatpush1.bf16.msra.mxu0 %v1522
    %2097 = vmatprep.subr.bf16.mxu0 0
    %2098 = vmatpush1.bf16.msra.mxu0 %v1523
    %2099 = vmatprep.subr.bf16.mxu0 0
    %2100 = vmatpush1.bf16.msra.mxu0 %v1524
    %2101 = vmatprep.subr.bf16.mxu0 0
    %2102 = vmatpush1.bf16.msra.mxu0 %v1525
    %2103 = vmatprep.subr.bf16.mxu0 0
    %2104 = vmatpush1.bf16.msra.mxu0 %v1526
    %2105 = vmatprep.subr.bf16.mxu0 0
    %2106 = vmatpush1.bf16.msra.mxu0 %v1527
    %2107 = vmatprep.subr.bf16.mxu0 0
    %2108 = vmatpush1.bf16.msra.mxu0 %v1528
    %2109 = vmatprep.mubr.bf16.mxu0 %v529
    %2110 = vmatmul.mubr.bf16.gmra.mrb[0].mxu0 %v527
    %v2111 = vpop.f32.mrb[0].mxu0
    %v2112 = vadd.f32 %v2072, %v2111
    %v2113 = vpop.f32.mrb[0].mxu0
    %v2114 = vpop.f32.mrb[0].mxu0
    %v2115 = vpop.f32.mrb[0].mxu0
    %2116 = vdwg.mxu0
    %2117 = vmatprep.subr.bf16.mxu0 0
    %2118 = vmatpush1.bf16.msra.mxu0 %v1529
    %2119 = vmatprep.subr.bf16.mxu0 0
    %2120 = vmatpush1.bf16.msra.mxu0 %v1530
    %2121 = vmatprep.subr.bf16.mxu0 0
    %2122 = vmatpush1.bf16.msra.mxu0 %v1531
    %2123 = vmatprep.subr.bf16.mxu0 0
    %2124 = vmatpush1.bf16.msra.mxu0 %v1532
    %2125 = vmatprep.subr.bf16.mxu0 0
    %2126 = vmatpush1.bf16.msra.mxu0 %v1533
    %2127 = vmatprep.subr.bf16.mxu0 0
    %2128 = vmatpush1.bf16.msra.mxu0 %v1534
    %2129 = vmatprep.subr.bf16.mxu0 0
    %2130 = vmatpush1.bf16.msra.mxu0 %v1535
    %2131 = vmatprep.subr.bf16.mxu0 0
    %2132 = vmatpush1.bf16.msra.mxu0 %v1536
    %2133 = vmatprep.subr.bf16.mxu0 0
    %2134 = vmatpush1.bf16.msra.mxu0 %v1537
    %2135 = vmatprep.subr.bf16.mxu0 0
    %2136 = vmatpush1.bf16.msra.mxu0 %v1538
    %2137 = vmatprep.subr.bf16.mxu0 0
    %2138 = vmatpush1.bf16.msra.mxu0 %v1539
    %2139 = vmatprep.subr.bf16.mxu0 0
    %2140 = vmatpush1.bf16.msra.mxu0 %v1540
    %2141 = vmatprep.subr.bf16.mxu0 0
    %2142 = vmatpush1.bf16.msra.mxu0 %v1541
    %2143 = vmatprep.subr.bf16.mxu0 0
    %2144 = vmatpush1.bf16.msra.mxu0 %v1542
    %2145 = vmatprep.subr.bf16.mxu0 0
    %2146 = vmatpush1.bf16.msra.mxu0 %v1543
    %2147 = vmatprep.subr.bf16.mxu0 0
    %2148 = vmatpush1.bf16.msra.mxu0 %v1544
    %2149 = vmatprep.mubr.bf16.mxu0 %v567
    %2150 = vmatmul.mubr.bf16.gmra.mrb[0].mxu0 %v553
    %v2151 = vpop.f32.mrb[0].mxu0
    %v2152 = vadd.f32 %v2112, %v2151
    %v2153 = vpop.f32.mrb[0].mxu0
    %v2154 = vpop.f32.mrb[0].mxu0
    %v2155 = vpop.f32.mrb[0].mxu0
    %2156 = vdwg.mxu0
    %2157 = vmatprep.subr.bf16.mxu0 0
    %2158 = vmatpush1.bf16.msra.mxu0 %v1545
    %2159 = vmatprep.subr.bf16.mxu0 0
    %2160 = vmatpush1.bf16.msra.mxu0 %v1546
    %2161 = vmatprep.subr.bf16.mxu0 0
    %2162 = vmatpush1.bf16.msra.mxu0 %v1547
    %2163 = vmatprep.subr.bf16.mxu0 0
    %2164 = vmatpush1.bf16.msra.mxu0 %v1548
    %2165 = vmatprep.subr.bf16.mxu0 0
    %2166 = vmatpush1.bf16.msra.mxu0 %v1549
    %2167 = vmatprep.subr.bf16.mxu0 0
    %2168 = vmatpush1.bf16.msra.mxu0 %v1550
    %2169 = vmatprep.subr.bf16.mxu0 0
    %2170 = vmatpush1.bf16.msra.mxu0 %v1551
    %2171 = vmatprep.subr.bf16.mxu0 0
    %2172 = vmatpush1.bf16.msra.mxu0 %v1552
    %2173 = vmatprep.subr.bf16.mxu0 0
    %2174 = vmatpush1.bf16.msra.mxu0 %v1553
    %2175 = vmatprep.subr.bf16.mxu0 0
    %2176 = vmatpush1.bf16.msra.mxu0 %v1554
    %2177 = vmatprep.subr.bf16.mxu0 0
    %2178 = vmatpush1.bf16.msra.mxu0 %v1555
    %2179 = vmatprep.subr.bf16.mxu0 0
    %2180 = vmatpush1.bf16.msra.mxu0 %v1556
    %2181 = vmatprep.subr.bf16.mxu0 0
    %2182 = vmatpush1.bf16.msra.mxu0 %v1557
    %2183 = vmatprep.subr.bf16.mxu0 0
    %2184 = vmatpush1.bf16.msra.mxu0 %v1558
    %2185 = vmatprep.subr.bf16.mxu0 0
    %2186 = vmatpush1.bf16.msra.mxu0 %v1559
    %2187 = vmatprep.subr.bf16.mxu0 0
    %2188 = vmatpush1.bf16.msra.mxu0 %v1560
    %2189 = vmatprep.mubr.bf16.mxu0 %v577
    %2190 = vmatmul.mubr.bf16.gmra.mrb[0].mxu0 %v575
    %v2191 = vpop.f32.mrb[0].mxu0
    %v2192 = vadd.f32 %v2152, %v2191
    %v2193 = vpop.f32.mrb[0].mxu0
    %v2194 = vpop.f32.mrb[0].mxu0
    %v2195 = vpop.f32.mrb[0].mxu0
    %2196 = vdwg.mxu0
    %2197 = vmatprep.subr.bf16.mxu0 0
    %2198 = vmatpush1.bf16.msra.mxu0 %v1561
    %2199 = vmatprep.subr.bf16.mxu0 0
    %2200 = vmatpush1.bf16.msra.mxu0 %v1562
    %2201 = vmatprep.subr.bf16.mxu0 0
    %2202 = vmatpush1.bf16.msra.mxu0 %v1563
    %2203 = vmatprep.subr.bf16.mxu0 0
    %2204 = vmatpush1.bf16.msra.mxu0 %v1564
    %2205 = vmatprep.subr.bf16.mxu0 0
    %2206 = vmatpush1.bf16.msra.mxu0 %v1565
    %2207 = vmatprep.subr.bf16.mxu0 0
    %2208 = vmatpush1.bf16.msra.mxu0 %v1566
    %2209 = vmatprep.subr.bf16.mxu0 0
    %2210 = vmatpush1.bf16.msra.mxu0 %v1567
    %2211 = vmatprep.subr.bf16.mxu0 0
    %2212 = vmatpush1.bf16.msra.mxu0 %v1568
    %2213 = vmatprep.subr.bf16.mxu0 0
    %2214 = vmatpush1.bf16.msra.mxu0 %v1569
    %2215 = vmatprep.subr.bf16.mxu0 0
    %2216 = vmatpush1.bf16.msra.mxu0 %v1570
    %2217 = vmatprep.subr.bf16.mxu0 0
    %2218 = vmatpush1.bf16.msra.mxu0 %v1571
    %2219 = vmatprep.subr.bf16.mxu0 0
    %2220 = vmatpush1.bf16.msra.mxu0 %v1572
    %2221 = vmatprep.subr.bf16.mxu0 0
    %2222 = vmatpush1.bf16.msra.mxu0 %v1573
    %2223 = vmatprep.subr.bf16.mxu0 0
    %2224 = vmatpush1.bf16.msra.mxu0 %v1574
    %2225 = vmatprep.subr.bf16.mxu0 0
    %2226 = vmatpush1.bf16.msra.mxu0 %v1575
    %2227 = vmatprep.subr.bf16.mxu0 0
    %2228 = vmatpush1.bf16.msra.mxu0 %v1576
    %2229 = vmatprep.mubr.bf16.mxu0 %v574
    %2230 = vmatmul.mubr.bf16.gmra.mrb[0].mxu0 %v560
    %v2231 = vpop.f32.mrb[0].mxu0
    %v2232 = vadd.f32 %v2192, %v2231
    %v2233 = vpop.f32.mrb[0].mxu0
    %v2234 = vpop.f32.mrb[0].mxu0
    %v2235 = vpop.f32.mrb[0].mxu0
    %2236 = vdwg.mxu0
    %2237 = vmatprep.subr.bf16.mxu0 0
    %2238 = vmatpush1.bf16.msra.mxu0 %v1577
    %2239 = vmatprep.subr.bf16.mxu0 0
    %2240 = vmatpush1.bf16.msra.mxu0 %v1578
    %2241 = vmatprep.subr.bf16.mxu0 0
    %2242 = vmatpush1.bf16.msra.mxu0 %v1579
    %2243 = vmatprep.subr.bf16.mxu0 0
    %2244 = vmatpush1.bf16.msra.mxu0 %v1580
    %2245 = vmatprep.subr.bf16.mxu0 0
    %2246 = vmatpush1.bf16.msra.mxu0 %v1581
    %2247 = vmatprep.subr.bf16.mxu0 0
    %2248 = vmatpush1.bf16.msra.mxu0 %v1582
    %2249 = vmatprep.subr.bf16.mxu0 0
    %2250 = vmatpush1.bf16.msra.mxu0 %v1583
    %2251 = vmatprep.subr.bf16.mxu0 0
    %2252 = vmatpush1.bf16.msra.mxu0 %v1584
    %2253 = vmatprep.subr.bf16.mxu0 0
    %2254 = vmatpush1.bf16.msra.mxu0 %v1585
    %2255 = vmatprep.subr.bf16.mxu0 0
    %2256 = vmatpush1.bf16.msra.mxu0 %v1586
    %2257 = vmatprep.subr.bf16.mxu0 0
    %2258 = vmatpush1.bf16.msra.mxu0 %v1587
    %2259 = vmatprep.subr.bf16.mxu0 0
    %2260 = vmatpush1.bf16.msra.mxu0 %v1588
    %2261 = vmatprep.subr.bf16.mxu0 0
    %2262 = vmatpush1.bf16.msra.mxu0 %v1589
    %2263 = vmatprep.subr.bf16.mxu0 0
    %2264 = vmatpush1.bf16.msra.mxu0 %v1590
    %2265 = vmatprep.subr.bf16.mxu0 0
    %2266 = vmatpush1.bf16.msra.mxu0 %v1591
    %2267 = vmatprep.subr.bf16.mxu0 0
    %2268 = vmatpush1.bf16.msra.mxu0 %v1592
    %2269 = vmatprep.mubr.bf16.mxu0 %v578
    %2270 = vmatmul.mubr.bf16.gmra.mrb[0].mxu0 %v576
    %v2271 = vpop.f32.mrb[0].mxu0
    %v2272 = vadd.f32 %v2232, %v2271
    %v2273 = vpop.f32.mrb[0].mxu0
    %v2274 = vpop.f32.mrb[0].mxu0
    %v2275 = vpop.f32.mrb[0].mxu0
    %2276 = vdwg.mxu0
    %2277 = vmatprep.subr.bf16.mxu0 0
    %2278 = vmatpush1.bf16.msra.mxu0 %v1593
    %2279 = vmatprep.subr.bf16.mxu0 0
    %2280 = vmatpush1.bf16.msra.mxu0 %v1594
    %2281 = vmatprep.subr.bf16.mxu0 0
    %2282 = vmatpush1.bf16.msra.mxu0 %v1595
    %2283 = vmatprep.subr.bf16.mxu0 0
    %2284 = vmatpush1.bf16.msra.mxu0 %v1596
    %2285 = vmatprep.subr.bf16.mxu0 0
    %2286 = vmatpush1.bf16.msra.mxu0 0
    %2287 = vmatprep.subr.bf16.mxu0 0
    %2288 = vmatpush1.bf16.msra.mxu0 0
    %2289 = vmatprep.subr.bf16.mxu0 0
    %2290 = vmatpush1.bf16.msra.mxu0 0
    %2291 = vmatprep.subr.bf16.mxu0 0
    %2292 = vmatpush1.bf16.msra.mxu0 0
    %2293 = vmatprep.subr.bf16.mxu0 0
    %2294 = vmatpush1.bf16.msra.mxu0 0
    %2295 = vmatprep.subr.bf16.mxu0 0
    %2296 = vmatpush1.bf16.msra.mxu0 0
    %2297 = vmatprep.subr.bf16.mxu0 0
    %2298 = vmatpush1.bf16.msra.mxu0 0
    %2299 = vmatprep.subr.bf16.mxu0 0
    %2300 = vmatpush1.bf16.msra.mxu0 0
    %2301 = vmatprep.subr.bf16.mxu0 0
    %2302 = vmatpush1.bf16.msra.mxu0 0
    %2303 = vmatprep.subr.bf16.mxu0 0
    %2304 = vmatpush1.bf16.msra.mxu0 0
    %2305 = vmatprep.subr.bf16.mxu0 0
    %2306 = vmatpush1.bf16.msra.mxu0 0
    %2307 = vmatprep.subr.bf16.mxu0 0
    %2308 = vmatpush1.bf16.msra.mxu0 0
    %2309 = vmatprep.mubr.bf16.mxu0 0
    %2310 = vmatmul.mubr.bf16.gmra.mrb[0].mxu0 %v1795
    %v2311 = vpop.f32.mrb[0].mxu0
    %v2312 = vadd.f32 %v2272, %v2311
    %v2313 = vpop.f32.mrb[0].mxu0
    %v2314 = vpop.f32.mrb[0].mxu0
    %v2315 = vpop.f32.mrb[0].mxu0
    %2316 = vdwg.mxu0
    %v2317 = vmax.f32 %v2312, 0.0
    %2318 = vst [vmem:[#allocation2] sm:$0x3] %v2317
    %v2319 = vpack.c.bf16 %v2317, %v2317
    %v2320 = vld [vmem:[%s3] sm:$0xf]
    %v2321 = vld [vmem:[%s3 + $0x4] sm:$0xf]
    %v2322 = vld [vmem:[%s3 + $0x8] sm:$0xf]
    %v2323 = vld [vmem:[%s3 + $0xc] sm:$0xf]
    %v2324 = vld [vmem:[%s3 + $0x10] sm:$0xf]
    %v2325 = vld [vmem:[%s3 + $0x14] sm:$0xf]
    %v2326 = vld [vmem:[%s3 + $0x18] sm:$0xf]
    %v2327 = vld [vmem:[%s3 + $0x1c] sm:$0xf]
    %v2328 = vld [vmem:[%s3 + $0x20] sm:$0xf]
    %v2329 = vld [vmem:[%s3 + $0x24] sm:$0xf]
    %v2330 = vld [vmem:[%s3 + $0x28] sm:$0xf]
    %v2331 = vld [vmem:[%s3 + $0x2c] sm:$0xf]
    %v2332 = vld [vmem:[%s3 + $0x30] sm:$0xf]
    %v2333 = vld [vmem:[%s3 + $0x34] sm:$0xf]
    %v2334 = vld [vmem:[%s3 + $0x38] sm:$0xf]
    %v2335 = vld [vmem:[%s3 + $0x3c] sm:$0xf]
    %v2336 = vld [vmem:[%s4] sm:$0x1]
    %v2338 = vlaneseq
    %v2339 = vshrl.u32 %v2338, 7
    %v2340 = vsub.s32 0, %v2339
    %v2341 = vrot.slane %v2336, %v2340
    %v2359 = vunpack.c.l.b16 %v2320
    %v2360 = vunpack.c.l.b16 %v2321
    %v2361 = vunpack.c.l.b16 %v2322
    %v2362 = vunpack.c.l.b16 %v2323
    %v2363 = vunpack.c.l.b16 %v2324
    %v2364 = vunpack.c.l.b16 %v2325
    %v2365 = vunpack.c.l.b16 %v2326
    %v2366 = vunpack.c.l.b16 %v2327
    %v2367 = vunpack.c.l.b16 %v2328
    %v2368 = vunpack.c.l.b16 %v2329
    %v2369 = vunpack.c.l.b16 %v2330
    %v2370 = vunpack.c.l.b16 %v2331
    %v2371 = vunpack.c.l.b16 %v2332
    %v2372 = vunpack.c.l.b16 %v2333
    %v2373 = vunpack.c.l.b16 %v2334
    %v2374 = vunpack.c.l.b16 %v2335
    %v2375 = vpack.c.b16 %v2360, %v2359
    %v2376 = vpack.c.b16 %v2362, %v2361
    %v2377 = vpack.c.b16 %v2364, %v2363
    %v2378 = vpack.c.b16 %v2366, %v2365
    %v2379 = vpack.c.b16 %v2368, %v2367
    %v2380 = vpack.c.b16 %v2370, %v2369
    %v2381 = vpack.c.b16 %v2372, %v2371
    %v2382 = vpack.c.b16 %v2374, %v2373
    %2391 = vmatprep.subr.bf16.mxu0 0
    %2392 = vmatpush1.bf16.msra.mxu0 %v2375
    %2393 = vmatprep.subr.bf16.mxu0 0
    %2394 = vmatpush1.bf16.msra.mxu0 %v2376
    %2395 = vmatprep.subr.bf16.mxu0 0
    %2396 = vmatpush1.bf16.msra.mxu0 %v2377
    %2397 = vmatprep.subr.bf16.mxu0 0
    %2398 = vmatpush1.bf16.msra.mxu0 %v2378
    %2399 = vmatprep.subr.bf16.mxu0 0
    %2400 = vmatpush1.bf16.msra.mxu0 %v2379
    %2401 = vmatprep.subr.bf16.mxu0 0
    %2402 = vmatpush1.bf16.msra.mxu0 %v2380
    %2403 = vmatprep.subr.bf16.mxu0 0
    %2404 = vmatpush1.bf16.msra.mxu0 %v2381
    %2405 = vmatprep.subr.bf16.mxu0 0
    %2406 = vmatpush1.bf16.msra.mxu0 %v2382
    %2407 = vmatprep.subr.bf16.mxu0 0
    %2408 = vmatpush1.bf16.msra.mxu0 0
    %2409 = vmatprep.subr.bf16.mxu0 0
    %2410 = vmatpush1.bf16.msra.mxu0 0
    %2411 = vmatprep.subr.bf16.mxu0 0
    %2412 = vmatpush1.bf16.msra.mxu0 0
    %2413 = vmatprep.subr.bf16.mxu0 0
    %2414 = vmatpush1.bf16.msra.mxu0 0
    %2415 = vmatprep.subr.bf16.mxu0 0
    %2416 = vmatpush1.bf16.msra.mxu0 0
    %2417 = vmatprep.subr.bf16.mxu0 0
    %2418 = vmatpush1.bf16.msra.mxu0 0
    %2419 = vmatprep.subr.bf16.mxu0 0
    %2420 = vmatpush1.bf16.msra.mxu0 0
    %2421 = vmatprep.subr.bf16.mxu0 0
    %2422 = vmatpush1.bf16.msra.mxu0 0
    %2423 = vmatprep.mubr.bf16.mxu0 0
    %2424 = vmatmul.mubr.bf16.gmra.mrb[0].mxu0 %v2319
    %v2425 = vpop.f32.mrb[0].mxu0
    %v2426 = vadd.f32 %v2341, %v2425
    %v2427 = vpop.f32.mrb[0].mxu0
    %v2428 = vpop.f32.mrb[0].mxu0
    %v2429 = vpop.f32.mrb[0].mxu0
    %2430 = vdwg.mxu0
    %2431 = vst [vmem:[#allocation4] sm:$0x3] %v2426
    // Predicated region
    $region22: #{net_forward.9} parent=1 // pred_check
      _
    $region23: #{net_forward.9} parent=1 // pred_check_branch
      %2433 = sbr.rel (0) target = $region25
    $region24: #{net_forward.9} parent=1 // pred_region
      %s2435 = ssub.s32 32, 32
      %2436 = vsyncadd [#allocation3], %s2435
      %s2438 = sshll.u32 [#allocation2], 4
      %s2439 = int_to_ptr.vmem [resolvable:$true] %s2438
      %2441 = dma.vmem_to_hbm [thread:$0]  %s2439, 32, %s5, [#allocation3]
    $region25: #{net_forward.9} parent=1 // pred_fallthru
      _
    // Predicated region
    $region26: #{net_forward.9} parent=1 // pred_check
      _
    $region27: #{net_forward.9} parent=1 // pred_check_branch
      %2443 = sbr.rel (0) target = $region29
    $region28: #{net_forward.9} parent=1 // pred_region
      %s2445 = ssub.s32 32, 32
      %2446 = vsyncadd [#allocation5], %s2445
      %s2448 = sshll.u32 [#allocation4], 4
      %s2449 = int_to_ptr.vmem [resolvable:$true] %s2448
      %2451 = dma.vmem_to_hbm [thread:$0]  %s2449, 32, %s6, [#allocation5]
    $region29: #{net_forward.9} parent=1 // pred_fallthru
      _
    // Predicated region
    $region30: #{net_forward.9} parent=1 // pred_check
      _
    $region31: #{net_forward.9} parent=1 // pred_check_branch
      %2453 = sbr.rel (0) target = $region33
    $region32: #{net_forward.9} parent=1 // pred_region
      %2454 = dma.done [#allocation3], 32
    $region33: #{net_forward.9} parent=1 // pred_fallthru
      _
    // Predicated region
    $region34: #{net_forward.9} parent=1 // pred_check
      _
    $region35: #{net_forward.9} parent=1 // pred_check_branch
      %2456 = sbr.rel (0) target = $region37
    $region36: #{net_forward.9} parent=1 // pred_region
      %2457 = dma.done [#allocation5], 32
    $region37: #{net_forward.9} parent=1 // pred_fallthru
      _
    %2458 = vsyncpa [#allocation3], 1
    %2459 = vsyncpa [#allocation5], 1

</llo_original>
